<compile_context>
chip_gen: v6e
topology: v6e:2x2x1
jax: 0.10.0
libtpu: 0.0.40
codegen_flags: <defaults>
</compile_context>

<pallas_src>
import functools

import jax
import jax.numpy as jnp
from jax.experimental import pallas as pl
from jax.experimental.pallas import tpu as pltpu


# ---------------------------------------------------------------------------
# shared in-kernel math
# ---------------------------------------------------------------------------
def _layer_norm(h, gamma, beta, eps=1e-5):
    mu = jnp.mean(h, axis=-1, keepdims=True)
    var = jnp.mean((h - mu) ** 2, axis=-1, keepdims=True)
    return (h - mu) * jax.lax.rsqrt(var + eps) * gamma + beta


def _attn_ffn_layer(h, bb, seq, nhead,
                    w_qkv, b_qkv, w_o, b_o, ln1_g, ln1_b,
                    w_ff1, b_ff1, w_ff2, b_ff2, ln2_g, ln2_b):
    """One post-norm TransformerEncoderLayer (eval-mode dropout = identity).

    `h` is (Bb*S, d_model) f32.  The large weights may be bf16 (weight streaming);
    matmul operands are cast to the weight dtype and accumulated in f32.
    """
    n_rows, d_model = h.shape
    hd = d_model // nhead
    scale = 1.0 / (hd ** 0.5)
    cdt = w_qkv.dtype                                   # matmul operand dtype

    # ---- self-attention ----
    qkv = (jnp.dot(h.astype(cdt), w_qkv, preferred_element_type=jnp.float32)
           + b_qkv.astype(jnp.float32))                 # (N, 3*d_model)

    # Head-major merged batch (nhead*Bb, S, hd): per-head column slices plus one
    # axis-0 concat per tensor, then single-batch-dim dot_generals (the batched
    # matmul form Mosaic lowers reliably today).
    def heads(col0):
        return jnp.concatenate(
            [qkv[:, col0 + i * hd:col0 + (i + 1) * hd].reshape(bb, seq, hd)
             for i in range(nhead)], axis=0)            # (H*Bb, S, hd)

    qh, kh, vh = heads(0), heads(d_model), heads(2 * d_model)

    s = jax.lax.dot_general(qh, kh, (((2,), (2,)), ((0,), (0,))),
                            preferred_element_type=jnp.float32) * scale   # (H*Bb,S,S)
    m = jnp.max(s, axis=-1, keepdims=True)
    e = jnp.exp(s - m)
    p = e * pl.reciprocal(jnp.sum(e, axis=-1, keepdims=True), approx=True)
    ctx = jax.lax.dot_general(p, vh, (((2,), (1,)), ((0,), (0,))),
                              preferred_element_type=jnp.float32)          # (H*Bb,S,hd)

    # merge heads back onto the feature (lane) axis
    ctx = jnp.concatenate([ctx[i * bb:(i + 1) * bb] for i in range(nhead)],
                          axis=-1).reshape(n_rows, d_model)

    attn = (jnp.dot(ctx.astype(cdt), w_o, preferred_element_type=jnp.float32)
            + b_o.astype(jnp.float32))
    h = _layer_norm(h + attn, ln1_g.astype(jnp.float32), ln1_b.astype(jnp.float32))

    # ---- feed-forward ----
    ff = (jnp.dot(h.astype(cdt), w_ff1, preferred_element_type=jnp.float32)
          + b_ff1.astype(jnp.float32))
    ff = jnp.maximum(ff, 0.0)
    ff = (jnp.dot(ff.astype(cdt), w_ff2, preferred_element_type=jnp.float32)
          + b_ff2.astype(jnp.float32))
    return _layer_norm(h + ff, ln2_g.astype(jnp.float32), ln2_b.astype(jnp.float32))


# ---------------------------------------------------------------------------
# kernels
# ---------------------------------------------------------------------------
def _resident_kernel(x_ref, w_in_ref, b_in_ref,
                     w_qkv_ref, b_qkv_ref, w_o_ref, b_o_ref,
                     ln1_g_ref, ln1_b_ref,
                     w_ff1_ref, b_ff1_ref, w_ff2_ref, b_ff2_ref,
                     ln2_g_ref, ln2_b_ref,
                     w_out_ref, b_out_ref,
                     o_ref, *, nhead, num_layers):
    """Small-model path: all layers' weights VMEM-resident, grid = (batch tiles,)."""
    bb, seq, din = x_ref.shape
    d_model = w_in_ref.shape[1]
    n_rows = bb * seq

    x2 = x_ref[...].reshape(n_rows, din)                               # (Bb*S, Din)
    h = jnp.dot(x2, w_in_ref[...], preferred_element_type=jnp.float32) + b_in_ref[...]

    for l in range(num_layers):            # static unroll: weights indexed statically
        h = _attn_ffn_layer(h, bb, seq, nhead,
                            w_qkv_ref[l], b_qkv_ref[l], w_o_ref[l], b_o_ref[l],
                            ln1_g_ref[l], ln1_b_ref[l],
                            w_ff1_ref[l], b_ff1_ref[l], w_ff2_ref[l], b_ff2_ref[l],
                            ln2_g_ref[l], ln2_b_ref[l])

    h_last = h.reshape(bb, seq, d_model)[:, seq - 1, :]                # (Bb, d_model)
    o_ref[...] = (jnp.dot(h_last, w_out_ref[...], preferred_element_type=jnp.float32)
                  + b_out_ref[...])


def _streamed_kernel(x_ref, w_in_ref, b_in_ref,
                     w_qkv_ref, b_qkv_ref, w_o_ref, b_o_ref,
                     ln1_g_ref, ln1_b_ref,
                     w_ff1_ref, b_ff1_ref, w_ff2_ref, b_ff2_ref,
                     ln2_g_ref, ln2_b_ref,
                     w_out_ref, b_out_ref,
                     o_ref, h_ref, *, nhead):
    """Large-model path: grid step = (batch tile, encoder layer); weights streamed.

    NOTE: correctness of the carried h_ref scratch requires the layer axis to be
    the innermost, "arbitrary" grid dimension (it is re-initialised under
    pl.when(layer == 0)).  Do not reorder the grid or mark that axis parallel.
    """
    layer = pl.program_id(1)
    bb, seq, din = x_ref.shape
    d_model = w_in_ref.shape[1]
    n_rows = bb * seq

    # ---- input projection, only on the first layer step of this batch tile ----
    @pl.when(layer == 0)
    def _():
        x2 = x_ref[...].reshape(n_rows, din)
        h_ref[...] = (jnp.dot(x2, w_in_ref[...], preferred_element_type=jnp.float32)
                      + b_in_ref[...])

    h = _attn_ffn_layer(h_ref[...], bb, seq, nhead,
                        w_qkv_ref[...], b_qkv_ref[...], w_o_ref[...], b_o_ref[...],
                        ln1_g_ref[...], ln1_b_ref[...],
                        w_ff1_ref[...], b_ff1_ref[...], w_ff2_ref[...], b_ff2_ref[...],
                        ln2_g_ref[...], ln2_b_ref[...])
    h_ref[...] = h

    # ---- output head, only on the last layer step: x[:, -1, :] @ W_out + b ----
    @pl.when(layer == pl.num_programs(1) - 1)
    def _():
        h_last = h.reshape(bb, seq, d_model)[:, seq - 1, :]
        o_ref[...] = (jnp.dot(h_last, w_out_ref[...],
                              preferred_element_type=jnp.float32) + b_out_ref[...])


# ---------------------------------------------------------------------------
# wrapper helpers
# ---------------------------------------------------------------------------
def _vmem_cap_bytes():
    """~0.8x physical VMEM of the attached chip (64 MiB v7x, 128 MiB v5e/v6e)."""
    try:
        phys = int(pltpu.get_tpu_info().vmem_capacity_bytes)
    except Exception:                       # conservative fallback (v7x physical)
        phys = 64 << 20
    return int(phys * 0.8)


def _pick_block_b(batch, seq, target_rows=512):
    """Batch-tile size.

    Preferences: 8-aligned divisors of `batch` (sublane-aligned (Bb, F) output
    block); >= 2 tiles for batch >= 16 so the "parallel" batch axis can shard
    across v7x's two TensorCores; Bb*S close to `target_rows` so per-layer weight
    DMA is amortised over many MXU rows.
    """
    cands = [c for c in range(8, batch + 1, 8) if batch % c == 0]
    if batch >= 16:
        two_tile = [c for c in cands if c <= batch // 2]
        if two_tile:
            cands = two_tile
    if not cands:
        return batch                        # tiny batches: one full-batch tile
    want = max(8, target_rows // max(seq, 1))
    le = [c for c in cands if c <= want]
    return max(le) if le else min(cands)


def _vmem_estimate_streamed(bb, seq, din, d, dff, fpad, nhead, w_bytes):
    f32 = 4
    n = bb * seq
    per_step = ((bb * seq * din + din * d + d) * f32
                + (d * 3 * d + d * d + d * dff + dff * d) * w_bytes
                + (3 * d + 5 * d + dff) * f32
                + (d * fpad + fpad + bb * fpad) * f32)
    pipelined = 2 * per_step                               # double-buffered blocks
    scratch = n * d * f32                                  # carried hidden state
    temps = (n * 3 * d + 6 * n * d + 2 * nhead * bb * seq * seq + 2 * n * dff) * f32
    return pipelined + scratch + temps + (4 << 20)


def _vmem_estimate_resident(bb, seq, din, d, dff, fpad, nhead, num_layers):
    f32 = 4
    n = bb * seq
    weights = (din * d + d
               + num_layers * (3 * d * d + d * d + 2 * d * dff + 10 * d + dff)
               + d * fpad + fpad) * f32
    io_blocks = 2 * (bb * seq * din + bb * fpad) * f32
    temps = (n * d + n * 3 * d + 6 * n * d + 2 * nhead * bb * seq * seq + 2 * n * dff) * f32
    return 2 * weights + io_blocks + temps + (4 << 20)


# ---------------------------------------------------------------------------
# public entry point
# ---------------------------------------------------------------------------
def transformer_forward(x, params, *, nhead, num_layers, block_b=None,
                        stream_weights_bf16=True, force_streamed=False):
    B, S, Din = x.shape
    d_model = params["w_in"].shape[1]
    dff = params["w_ff1"].shape[2]
    F = params["w_out"].shape[1]
    L = num_layers
    assert d_model % nhead == 0, "d_model must be divisible by nhead"

    # Lane-dense output head: pad forecast_steps up to a lane multiple so the
    # output block uses unmasked vector stores; the pad is sliced off afterwards.
    F_pad = ((F + 127) // 128) * 128
    w_out, b_out = params["w_out"], params["b_out"]
    if F_pad != F:
        w_out = jnp.pad(w_out, ((0, 0), (0, F_pad - F)))
        b_out = jnp.pad(b_out, ((0, 0), (0, F_pad - F)))

    vmem_cap = _vmem_cap_bytes()

    # Small models: keep every layer's weights resident and drop the layer grid axis.
    resident_weight_bytes = 4 * (Din * d_model + d_model
                                 + L * (3 * d_model * d_model + d_model * d_model
                                        + 2 * d_model * dff + 10 * d_model + dff)
                                 + d_model * F_pad + F_pad)
    use_resident = ((not force_streamed) and d_model <= 128
                    and 2 * resident_weight_bytes <= (6 << 20))

    w_bytes = 4 if (use_resident or not stream_weights_bf16) else 2

    # Pick the batch tile; shrink it (rather than over-requesting VMEM) if the
    # estimated working set exceeds this generation's cap.
    target_rows = 512
    while True:
        Bb = block_b if block_b is not None else _pick_block_b(B, S, target_rows)
        if use_resident:
            est = _vmem_estimate_resident(Bb, S, Din, d_model, dff, F_pad, nhead, L)
        else:
            est = _vmem_estimate_streamed(Bb, S, Din, d_model, dff, F_pad, nhead, w_bytes)
        if block_b is not None or est <= vmem_cap or target_rows <= 8:
            break
        target_rows //= 2
    assert B % Bb == 0, "block_b must divide the batch size"

    wdt = jnp.bfloat16 if (not use_resident and stream_weights_bf16) else jnp.float32
    p = params
    ordered = [p["w_in"], p["b_in"],
               p["w_qkv"].astype(wdt), p["b_qkv"],
               p["w_o"].astype(wdt), p["b_o"],
               p["ln1_g"], p["ln1_b"],
               p["w_ff1"].astype(wdt), p["b_ff1"],
               p["w_ff2"].astype(wdt), p["b_ff2"],
               p["ln2_g"], p["ln2_b"],
               w_out, b_out]

    if use_resident:
        grid = (B // Bb,)
        in_specs = [
            pl.BlockSpec((Bb, S, Din), lambda bt: (bt, 0, 0)),              # x
            pl.BlockSpec((Din, d_model), lambda bt: (0, 0)),                # w_in
            pl.BlockSpec((1, d_model), lambda bt: (0, 0)),                  # b_in
            pl.BlockSpec((L, d_model, 3 * d_model), lambda bt: (0, 0, 0)),  # w_qkv
            pl.BlockSpec((L, 1, 3 * d_model), lambda bt: (0, 0, 0)),        # b_qkv
            pl.BlockSpec((L, d_model, d_model), lambda bt: (0, 0, 0)),      # w_o
            pl.BlockSpec((L, 1, d_model), lambda bt: (0, 0, 0)),            # b_o
            pl.BlockSpec((L, 1, d_model), lambda bt: (0, 0, 0)),            # ln1_g
            pl.BlockSpec((L, 1, d_model), lambda bt: (0, 0, 0)),            # ln1_b
            pl.BlockSpec((L, d_model, dff), lambda bt: (0, 0, 0)),          # w_ff1
            pl.BlockSpec((L, 1, dff), lambda bt: (0, 0, 0)),                # b_ff1
            pl.BlockSpec((L, dff, d_model), lambda bt: (0, 0, 0)),          # w_ff2
            pl.BlockSpec((L, 1, d_model), lambda bt: (0, 0, 0)),            # b_ff2
            pl.BlockSpec((L, 1, d_model), lambda bt: (0, 0, 0)),            # ln2_g
            pl.BlockSpec((L, 1, d_model), lambda bt: (0, 0, 0)),            # ln2_b
            pl.BlockSpec((d_model, F_pad), lambda bt: (0, 0)),              # w_out
            pl.BlockSpec((1, F_pad), lambda bt: (0, 0)),                    # b_out
        ]
        out_specs = pl.BlockSpec((Bb, F_pad), lambda bt: (bt, 0))
        scratch_shapes = []
        kernel = functools.partial(_resident_kernel, nhead=nhead, num_layers=L)
        dim_sem = ("parallel",)
    else:
        # Layer axis MUST stay innermost + "arbitrary": the h scratch carry depends
        # on it (re-initialised under pl.when(layer == 0)).
        grid = (B // Bb, L)
        in_specs = [
            pl.BlockSpec((Bb, S, Din), lambda bt, l: (bt, 0, 0)),           # x
            pl.BlockSpec((Din, d_model), lambda bt, l: (0, 0)),             # w_in
            pl.BlockSpec((1, d_model), lambda bt, l: (0, 0)),               # b_in
            # `None` squeezes the per-layer axis so the kernel sees 2-D refs.
            pl.BlockSpec((None, d_model, 3 * d_model), lambda bt, l: (l, 0, 0)),  # w_qkv
            pl.BlockSpec((None, 1, 3 * d_model), lambda bt, l: (l, 0, 0)),        # b_qkv
            pl.BlockSpec((None, d_model, d_model), lambda bt, l: (l, 0, 0)),      # w_o
            pl.BlockSpec((None, 1, d_model), lambda bt, l: (l, 0, 0)),            # b_o
            pl.BlockSpec((None, 1, d_model), lambda bt, l: (l, 0, 0)),            # ln1_g
            pl.BlockSpec((None, 1, d_model), lambda bt, l: (l, 0, 0)),            # ln1_b
            pl.BlockSpec((None, d_model, dff), lambda bt, l: (l, 0, 0)),          # w_ff1
            pl.BlockSpec((None, 1, dff), lambda bt, l: (l, 0, 0)),                # b_ff1
            pl.BlockSpec((None, dff, d_model), lambda bt, l: (l, 0, 0)),          # w_ff2
            pl.BlockSpec((None, 1, d_model), lambda bt, l: (l, 0, 0)),            # b_ff2
            pl.BlockSpec((None, 1, d_model), lambda bt, l: (l, 0, 0)),            # ln2_g
            pl.BlockSpec((None, 1, d_model), lambda bt, l: (l, 0, 0)),            # ln2_b
            pl.BlockSpec((d_model, F_pad), lambda bt, l: (0, 0)),           # w_out
            pl.BlockSpec((1, F_pad), lambda bt, l: (0, 0)),                 # b_out
        ]
        out_specs = pl.BlockSpec((Bb, F_pad), lambda bt, l: (bt, 0))
        scratch_shapes = [pltpu.VMEM((Bb * S, d_model), jnp.float32)]       # carried h
        kernel = functools.partial(_streamed_kernel, nhead=nhead)
        dim_sem = ("parallel", "arbitrary")

    cp_kwargs = dict(dimension_semantics=dim_sem)
    if est > (16 << 20):                       # most conservative scoped default (v5e)
        cp_kwargs["vmem_limit_bytes"] = int(min(max(est, 16 << 20), vmem_cap))

    out = pl.pallas_call(
        kernel,
        out_shape=jax.ShapeDtypeStruct((B, F_pad), jnp.float32),
        grid=grid,
        in_specs=in_specs,
        out_specs=out_specs,
        scratch_shapes=scratch_shapes,
        compiler_params=pltpu.CompilerParams(**cp_kwargs),
    )(x, *ordered)
    return out[:, :F] if F_pad != F else out


# ------------------------- pure-JAX reference -------------------------
def reference_forward(x, params, *, nhead, num_layers):
    d_model = params["w_in"].shape[1]
    head_dim = d_model // nhead
    scale = 1.0 / (head_dim ** 0.5)

    h = x @ params["w_in"] + params["b_in"]
    for l in range(num_layers):
        qkv = h @ params["w_qkv"][l] + params["b_qkv"][l]
        q, k, v = jnp.split(qkv, 3, axis=-1)
        outs = []
        for hd in range(nhead):
            sl = slice(hd * head_dim, (hd + 1) * head_dim)
            s = jnp.einsum("bqd,bkd->bqk", q[..., sl], k[..., sl]) * scale
            p = jax.nn.softmax(s, axis=-1)
            outs.append(jnp.einsum("bqk,bkd->bqd", p, v[..., sl]))
        ctx = jnp.concatenate(outs, axis=-1)
        attn = ctx @ params["w_o"][l] + params["b_o"][l]
        h = h + attn
        mu = h.mean(-1, keepdims=True)
        var = ((h - mu) ** 2).mean(-1, keepdims=True)
        h = (h - mu) / jnp.sqrt(var + 1e-5) * params["ln1_g"][l] + params["ln1_b"][l]
        ff = jnp.maximum(h @ params["w_ff1"][l] + params["b_ff1"][l], 0.0)
        ff = ff @ params["w_ff2"][l] + params["b_ff2"][l]
        h = h + ff
        mu = h.mean(-1, keepdims=True)
        var = ((h - mu) ** 2).mean(-1, keepdims=True)
        h = (h - mu) / jnp.sqrt(var + 1e-5) * params["ln2_g"][l] + params["ln2_b"][l]
    h_last = h[:, -1, :]
    return h_last @ params["w_out"] + params["b_out"]


# ------------------------- deterministic init -------------------------
def init_params(key, input_size, d_model, nhead, num_layers, dff, forecast_steps):
    ks = iter(jax.random.split(key, 32))

    def w(shape, scale=0.05):
        return jax.random.normal(next(ks), shape, jnp.float32) * scale

    L = num_layers
    return {
        "w_in":  w((input_size, d_model)),
        "b_in":  w((1, d_model)),
        "w_qkv": w((L, d_model, 3 * d_model)),
        "b_qkv": w((L, 1, 3 * d_model)),
        "w_o":   w((L, d_model, d_model)),
        "b_o":   w((L, 1, d_model)),
        "ln1_g": jnp.ones((L, 1, d_model), jnp.float32),
        "ln1_b": jnp.zeros((L, 1, d_model), jnp.float32),
        "w_ff1": w((L, d_model, dff)),
        "b_ff1": w((L, 1, dff)),
        "w_ff2": w((L, dff, d_model)),
        "b_ff2": w((L, 1, d_model)),
        "ln2_g": jnp.ones((L, 1, d_model), jnp.float32),
        "ln2_b": jnp.zeros((L, 1, d_model), jnp.float32),
        "w_out": w((d_model, forecast_steps)),
        "b_out": w((1, forecast_steps)),
    }


if __name__ == "__main__":
    key = jax.random.PRNGKey(0)
    kx, kp, kx2, kp2 = jax.random.split(key, 4)

    # --- small config (module-scale toy shapes): exercises the resident path ---
    B, S, input_size = 2, 8, 4
    d_model, nhead, num_layers = 32, 4, 2
    dim_feedforward, forecast_steps = 64, 3

    x = jax.random.normal(kx, (B, S, input_size), jnp.float32)
    params = init_params(kp, input_size, d_model, nhead, num_layers,
                         dim_feedforward, forecast_steps)

    out = transformer_forward(x, params, nhead=nhead, num_layers=num_layers)
    out = jax.block_until_ready(out)
    ref = reference_forward(x, params, nhead=nhead, num_layers=num_layers)
    assert out.shape == (B, forecast_steps)
    # tolerance covers the approximate (EUP) reciprocal used in the softmax
    assert jnp.allclose(out, ref, atol=2e-3, rtol=2e-3), (out, ref)

    # --- larger config: exercises the layer-streamed path with bf16 weights ---
    B2, S2, in2 = 16, 8, 8
    d2, nh2, L2, dff2, F2 = 256, 8, 2, 512, 3
    x2 = jax.random.normal(kx2, (B2, S2, in2), jnp.float32)
    params2 = init_params(kp2, in2, d2, nh2, L2, dff2, F2)

    out2 = transformer_forward(x2, params2, nhead=nh2, num_layers=L2,
                               force_streamed=True, stream_weights_bf16=True)
    out2 = jax.block_until_ready(out2)
    ref2 = reference_forward(x2, params2, nhead=nh2, num_layers=L2)
    assert out2.shape == (B2, F2)
    # bf16 weight/activation streaming: widened tolerance
    assert jnp.allclose(out2, ref2, atol=6e-2, rtol=6e-2), (
        float(jnp.max(jnp.abs(out2 - ref2))))

    print("KERNEL_OK")
</pallas_src>

<mosaic_0001>
module attributes {stable_mosaic.version = 11 : i64} {
  func.func @_resident_kernel(%arg0: i32, %arg1: memref<2x8x4xf32, #tpu.memory_space<vmem>>, %arg2: memref<4x32xf32, #tpu.memory_space<vmem>>, %arg3: memref<1x32xf32, #tpu.memory_space<vmem>>, %arg4: memref<2x32x96xf32, #tpu.memory_space<vmem>>, %arg5: memref<2x1x96xf32, #tpu.memory_space<vmem>>, %arg6: memref<2x32x32xf32, #tpu.memory_space<vmem>>, %arg7: memref<2x1x32xf32, #tpu.memory_space<vmem>>, %arg8: memref<2x1x32xf32, #tpu.memory_space<vmem>>, %arg9: memref<2x1x32xf32, #tpu.memory_space<vmem>>, %arg10: memref<2x32x64xf32, #tpu.memory_space<vmem>>, %arg11: memref<2x1x64xf32, #tpu.memory_space<vmem>>, %arg12: memref<2x64x32xf32, #tpu.memory_space<vmem>>, %arg13: memref<2x1x32xf32, #tpu.memory_space<vmem>>, %arg14: memref<2x1x32xf32, #tpu.memory_space<vmem>>, %arg15: memref<2x1x32xf32, #tpu.memory_space<vmem>>, %arg16: memref<32x128xf32, #tpu.memory_space<vmem>>, %arg17: memref<1x128xf32, #tpu.memory_space<vmem>>, %arg18: memref<2x128xf32, #tpu.memory_space<vmem>>) attributes {dimension_semantics = [#tpu.dimension_semantics<parallel>], iteration_bounds = array<i64: 1>, scalar_prefetch = 0 : i64, scratch_operands = 0 : i64, tpu.core_type = #tpu.core_type<tc>, window_params = [{transform_indices = @transform_0, window_bounds = array<i64: 2, 8, 4>}, {pipeline_mode = #tpu.pipeline_mode<synchronous>, transform_indices = @transform_1, window_bounds = array<i64: 4, 32>}, {pipeline_mode = #tpu.pipeline_mode<synchronous>, transform_indices = @transform_2, window_bounds = array<i64: 1, 32>}, {pipeline_mode = #tpu.pipeline_mode<synchronous>, transform_indices = @transform_3, window_bounds = array<i64: 2, 32, 96>}, {pipeline_mode = #tpu.pipeline_mode<synchronous>, transform_indices = @transform_4, window_bounds = array<i64: 2, 1, 96>}, {pipeline_mode = #tpu.pipeline_mode<synchronous>, transform_indices = @transform_5, window_bounds = array<i64: 2, 32, 32>}, {pipeline_mode = #tpu.pipeline_mode<synchronous>, transform_indices = @transform_6, window_bounds = array<i64: 2, 1, 32>}, {pipeline_mode = #tpu.pipeline_mode<synchronous>, transform_indices = @transform_7, window_bounds = array<i64: 2, 1, 32>}, {pipeline_mode = #tpu.pipeline_mode<synchronous>, transform_indices = @transform_8, window_bounds = array<i64: 2, 1, 32>}, {pipeline_mode = #tpu.pipeline_mode<synchronous>, transform_indices = @transform_9, window_bounds = array<i64: 2, 32, 64>}, {pipeline_mode = #tpu.pipeline_mode<synchronous>, transform_indices = @transform_10, window_bounds = array<i64: 2, 1, 64>}, {pipeline_mode = #tpu.pipeline_mode<synchronous>, transform_indices = @transform_11, window_bounds = array<i64: 2, 64, 32>}, {pipeline_mode = #tpu.pipeline_mode<synchronous>, transform_indices = @transform_12, window_bounds = array<i64: 2, 1, 32>}, {pipeline_mode = #tpu.pipeline_mode<synchronous>, transform_indices = @transform_13, window_bounds = array<i64: 2, 1, 32>}, {pipeline_mode = #tpu.pipeline_mode<synchronous>, transform_indices = @transform_14, window_bounds = array<i64: 2, 1, 32>}, {pipeline_mode = #tpu.pipeline_mode<synchronous>, transform_indices = @transform_15, window_bounds = array<i64: 32, 128>}, {pipeline_mode = #tpu.pipeline_mode<synchronous>, transform_indices = @transform_16, window_bounds = array<i64: 1, 128>}, {transform_indices = @transform_17, window_bounds = array<i64: 2, 128>}]} {
    %c0 = arith.constant 0 : index
    %c0_0 = arith.constant 0 : index
    %c0_1 = arith.constant 0 : index
    %0 = vector.load %arg1[%c0, %c0_0, %c0_1] : memref<2x8x4xf32, #tpu.memory_space<vmem>>, vector<2x8x4xf32>
    %1 = vector.shape_cast %0 : vector<2x8x4xf32> to vector<16x4xf32>
    %c0_2 = arith.constant 0 : index
    %c0_3 = arith.constant 0 : index
    %2 = vector.load %arg2[%c0_2, %c0_3] : memref<4x32xf32, #tpu.memory_space<vmem>>, vector<4x32xf32>
    %cst = arith.constant dense<0.000000e+00> : vector<16x32xf32>
    %3 = tpu.matmul %1, %2, %cst {dimension_numbers = #tpu.dot_dimension_numbers<[1], [0], [0], [1], [0, 0, 1, 1], [], []>} : vector<16x4xf32>, vector<4x32xf32>, vector<16x32xf32> -> vector<16x32xf32>
    %c0_4 = arith.constant 0 : index
    %c0_5 = arith.constant 0 : index
    %4 = vector.load %arg3[%c0_4, %c0_5] : memref<1x32xf32, #tpu.memory_space<vmem>>, vector<1x32xf32>
    %5 = vector.broadcast %4 : vector<1x32xf32> to vector<16x32xf32>
    %6 = arith.addf %3, %5 : vector<16x32xf32>
    %c0_6 = arith.constant 0 : index
    %c0_7 = arith.constant 0 : index
    %c0_8 = arith.constant 0 : index
    %7 = vector.load %arg4[%c0_6, %c0_7, %c0_8] : memref<2x32x96xf32, #tpu.memory_space<vmem>>, vector<1x32x96xf32>
    %8 = vector.shape_cast %7 : vector<1x32x96xf32> to vector<32x96xf32>
    %c0_9 = arith.constant 0 : index
    %c0_10 = arith.constant 0 : index
    %c0_11 = arith.constant 0 : index
    %9 = vector.load %arg5[%c0_9, %c0_10, %c0_11] : memref<2x1x96xf32, #tpu.memory_space<vmem>>, vector<1x1x96xf32>
    %10 = vector.shape_cast %9 : vector<1x1x96xf32> to vector<1x96xf32>
    %c0_12 = arith.constant 0 : index
    %c0_13 = arith.constant 0 : index
    %c0_14 = arith.constant 0 : index
    %11 = vector.load %arg6[%c0_12, %c0_13, %c0_14] : memref<2x32x32xf32, #tpu.memory_space<vmem>>, vector<1x32x32xf32>
    %12 = vector.shape_cast %11 : vector<1x32x32xf32> to vector<32x32xf32>
    %c0_15 = arith.constant 0 : index
    %c0_16 = arith.constant 0 : index
    %c0_17 = arith.constant 0 : index
    %13 = vector.load %arg7[%c0_15, %c0_16, %c0_17] : memref<2x1x32xf32, #tpu.memory_space<vmem>>, vector<1x1x32xf32>
    %14 = vector.shape_cast %13 : vector<1x1x32xf32> to vector<1x32xf32>
    %c0_18 = arith.constant 0 : index
    %c0_19 = arith.constant 0 : index
    %c0_20 = arith.constant 0 : index
    %15 = vector.load %arg8[%c0_18, %c0_19, %c0_20] : memref<2x1x32xf32, #tpu.memory_space<vmem>>, vector<1x1x32xf32>
    %16 = vector.shape_cast %15 : vector<1x1x32xf32> to vector<1x32xf32>
    %c0_21 = arith.constant 0 : index
    %c0_22 = arith.constant 0 : index
    %c0_23 = arith.constant 0 : index
    %17 = vector.load %arg9[%c0_21, %c0_22, %c0_23] : memref<2x1x32xf32, #tpu.memory_space<vmem>>, vector<1x1x32xf32>
    %18 = vector.shape_cast %17 : vector<1x1x32xf32> to vector<1x32xf32>
    %c0_24 = arith.constant 0 : index
    %c0_25 = arith.constant 0 : index
    %c0_26 = arith.constant 0 : index
    %19 = vector.load %arg10[%c0_24, %c0_25, %c0_26] : memref<2x32x64xf32, #tpu.memory_space<vmem>>, vector<1x32x64xf32>
    %20 = vector.shape_cast %19 : vector<1x32x64xf32> to vector<32x64xf32>
    %c0_27 = arith.constant 0 : index
    %c0_28 = arith.constant 0 : index
    %c0_29 = arith.constant 0 : index
    %21 = vector.load %arg11[%c0_27, %c0_28, %c0_29] : memref<2x1x64xf32, #tpu.memory_space<vmem>>, vector<1x1x64xf32>
    %22 = vector.shape_cast %21 : vector<1x1x64xf32> to vector<1x64xf32>
    %c0_30 = arith.constant 0 : index
    %c0_31 = arith.constant 0 : index
    %c0_32 = arith.constant 0 : index
    %23 = vector.load %arg12[%c0_30, %c0_31, %c0_32] : memref<2x64x32xf32, #tpu.memory_space<vmem>>, vector<1x64x32xf32>
    %24 = vector.shape_cast %23 : vector<1x64x32xf32> to vector<64x32xf32>
    %c0_33 = arith.constant 0 : index
    %c0_34 = arith.constant 0 : index
    %c0_35 = arith.constant 0 : index
    %25 = vector.load %arg13[%c0_33, %c0_34, %c0_35] : memref<2x1x32xf32, #tpu.memory_space<vmem>>, vector<1x1x32xf32>
    %26 = vector.shape_cast %25 : vector<1x1x32xf32> to vector<1x32xf32>
    %c0_36 = arith.constant 0 : index
    %c0_37 = arith.constant 0 : index
    %c0_38 = arith.constant 0 : index
    %27 = vector.load %arg14[%c0_36, %c0_37, %c0_38] : memref<2x1x32xf32, #tpu.memory_space<vmem>>, vector<1x1x32xf32>
    %28 = vector.shape_cast %27 : vector<1x1x32xf32> to vector<1x32xf32>
    %c0_39 = arith.constant 0 : index
    %c0_40 = arith.constant 0 : index
    %c0_41 = arith.constant 0 : index
    %29 = vector.load %arg15[%c0_39, %c0_40, %c0_41] : memref<2x1x32xf32, #tpu.memory_space<vmem>>, vector<1x1x32xf32>
    %30 = vector.shape_cast %29 : vector<1x1x32xf32> to vector<1x32xf32>
    %cst_42 = arith.constant dense<0.000000e+00> : vector<16x96xf32>
    %31 = tpu.matmul %6, %8, %cst_42 {dimension_numbers = #tpu.dot_dimension_numbers<[1], [0], [0], [1], [0, 0, 1, 1], [], []>} : vector<16x32xf32>, vector<32x96xf32>, vector<16x96xf32> -> vector<16x96xf32>
    %32 = vector.broadcast %10 : vector<1x96xf32> to vector<16x96xf32>
    %33 = arith.addf %31, %32 : vector<16x96xf32>
    %34 = vector.extract_strided_slice %33 {offsets = [0, 0], sizes = [16, 8], strides = [1, 1]} : vector<16x96xf32> to vector<16x8xf32>
    %35 = vector.shape_cast %34 : vector<16x8xf32> to vector<2x8x8xf32>
    %36 = vector.extract_strided_slice %33 {offsets = [0, 8], sizes = [16, 8], strides = [1, 1]} : vector<16x96xf32> to vector<16x8xf32>
    %37 = vector.shape_cast %36 : vector<16x8xf32> to vector<2x8x8xf32>
    %38 = vector.extract_strided_slice %33 {offsets = [0, 16], sizes = [16, 8], strides = [1, 1]} : vector<16x96xf32> to vector<16x8xf32>
    %39 = vector.shape_cast %38 : vector<16x8xf32> to vector<2x8x8xf32>
    %40 = vector.extract_strided_slice %33 {offsets = [0, 24], sizes = [16, 8], strides = [1, 1]} : vector<16x96xf32> to vector<16x8xf32>
    %41 = vector.shape_cast %40 : vector<16x8xf32> to vector<2x8x8xf32>
    %42 = tpu.concatenate %35, %37, %39, %41 in 0 : vector<2x8x8xf32>, vector<2x8x8xf32>, vector<2x8x8xf32>, vector<2x8x8xf32> -> vector<8x8x8xf32>
    %43 = vector.extract_strided_slice %33 {offsets = [0, 32], sizes = [16, 8], strides = [1, 1]} : vector<16x96xf32> to vector<16x8xf32>
    %44 = vector.shape_cast %43 : vector<16x8xf32> to vector<2x8x8xf32>
    %45 = vector.extract_strided_slice %33 {offsets = [0, 40], sizes = [16, 8], strides = [1, 1]} : vector<16x96xf32> to vector<16x8xf32>
    %46 = vector.shape_cast %45 : vector<16x8xf32> to vector<2x8x8xf32>
    %47 = vector.extract_strided_slice %33 {offsets = [0, 48], sizes = [16, 8], strides = [1, 1]} : vector<16x96xf32> to vector<16x8xf32>
    %48 = vector.shape_cast %47 : vector<16x8xf32> to vector<2x8x8xf32>
    %49 = vector.extract_strided_slice %33 {offsets = [0, 56], sizes = [16, 8], strides = [1, 1]} : vector<16x96xf32> to vector<16x8xf32>
    %50 = vector.shape_cast %49 : vector<16x8xf32> to vector<2x8x8xf32>
    %51 = tpu.concatenate %44, %46, %48, %50 in 0 : vector<2x8x8xf32>, vector<2x8x8xf32>, vector<2x8x8xf32>, vector<2x8x8xf32> -> vector<8x8x8xf32>
    %52 = vector.extract_strided_slice %33 {offsets = [0, 64], sizes = [16, 8], strides = [1, 1]} : vector<16x96xf32> to vector<16x8xf32>
    %53 = vector.shape_cast %52 : vector<16x8xf32> to vector<2x8x8xf32>
    %54 = vector.extract_strided_slice %33 {offsets = [0, 72], sizes = [16, 8], strides = [1, 1]} : vector<16x96xf32> to vector<16x8xf32>
    %55 = vector.shape_cast %54 : vector<16x8xf32> to vector<2x8x8xf32>
    %56 = vector.extract_strided_slice %33 {offsets = [0, 80], sizes = [16, 8], strides = [1, 1]} : vector<16x96xf32> to vector<16x8xf32>
    %57 = vector.shape_cast %56 : vector<16x8xf32> to vector<2x8x8xf32>
    %58 = vector.extract_strided_slice %33 {offsets = [0, 88], sizes = [16, 8], strides = [1, 1]} : vector<16x96xf32> to vector<16x8xf32>
    %59 = vector.shape_cast %58 : vector<16x8xf32> to vector<2x8x8xf32>
    %60 = tpu.concatenate %53, %55, %57, %59 in 0 : vector<2x8x8xf32>, vector<2x8x8xf32>, vector<2x8x8xf32>, vector<2x8x8xf32> -> vector<8x8x8xf32>
    %cst_43 = arith.constant dense<0.000000e+00> : vector<8x8x8xf32>
    %61 = tpu.matmul %42, %51, %cst_43 {dimension_numbers = #tpu.dot_dimension_numbers<[2], [2], [1], [1], [0, 0, 0, 1, 1, 1], [0], [0]>} : vector<8x8x8xf32>, vector<8x8x8xf32>, vector<8x8x8xf32> -> vector<8x8x8xf32>
    %cst_44 = arith.constant 0.353553385 : f32
    %62 = vector.broadcast %cst_44 : f32 to vector<8x8x8xf32>
    %63 = arith.mulf %61, %62 : vector<8x8x8xf32>
    %cst_45 = arith.constant dense<0xFF800000> : vector<8x8xf32>
    %64 = vector.multi_reduction <maximumf>, %63, %cst_45 [2] : vector<8x8x8xf32> to vector<8x8xf32>
    %65 = vector.shape_cast %64 : vector<8x8xf32> to vector<8x8x1xf32>
    %66 = vector.broadcast %65 : vector<8x8x1xf32> to vector<8x8x8xf32>
    %67 = arith.subf %63, %66 : vector<8x8x8xf32>
    %68 = math.exp %67 : vector<8x8x8xf32>
    %cst_46 = arith.constant dense<0.000000e+00> : vector<8x8xf32>
    %69 = vector.multi_reduction <add>, %68, %cst_46 [2] : vector<8x8x8xf32> to vector<8x8xf32>
    %70 = vector.shape_cast %69 : vector<8x8xf32> to vector<8x8x1xf32>
    %71 = tpu.reciprocal %70 {approx = true} : vector<8x8x1xf32> -> vector<8x8x1xf32>
    %72 = vector.broadcast %71 : vector<8x8x1xf32> to vector<8x8x8xf32>
    %73 = arith.mulf %68, %72 : vector<8x8x8xf32>
    %cst_47 = arith.constant dense<0.000000e+00> : vector<8x8x8xf32>
    %74 = tpu.matmul %73, %60, %cst_47 {dimension_numbers = #tpu.dot_dimension_numbers<[2], [1], [1], [2], [0, 0, 0, 1, 1, 2], [0], [0]>} : vector<8x8x8xf32>, vector<8x8x8xf32>, vector<8x8x8xf32> -> vector<8x8x8xf32>
    %75 = vector.extract_strided_slice %74 {offsets = [0, 0, 0], sizes = [2, 8, 8], strides = [1, 1, 1]} : vector<8x8x8xf32> to vector<2x8x8xf32>
    %76 = vector.extract_strided_slice %74 {offsets = [2, 0, 0], sizes = [2, 8, 8], strides = [1, 1, 1]} : vector<8x8x8xf32> to vector<2x8x8xf32>
    %77 = vector.extract_strided_slice %74 {offsets = [4, 0, 0], sizes = [2, 8, 8], strides = [1, 1, 1]} : vector<8x8x8xf32> to vector<2x8x8xf32>
    %78 = vector.extract_strided_slice %74 {offsets = [6, 0, 0], sizes = [2, 8, 8], strides = [1, 1, 1]} : vector<8x8x8xf32> to vector<2x8x8xf32>
    %79 = tpu.concatenate %75, %76, %77, %78 in 2 : vector<2x8x8xf32>, vector<2x8x8xf32>, vector<2x8x8xf32>, vector<2x8x8xf32> -> vector<2x8x32xf32>
    %80 = vector.shape_cast %79 : vector<2x8x32xf32> to vector<16x32xf32>
    %cst_48 = arith.constant dense<0.000000e+00> : vector<16x32xf32>
    %81 = tpu.matmul %80, %12, %cst_48 {dimension_numbers = #tpu.dot_dimension_numbers<[1], [0], [0], [1], [0, 0, 1, 1], [], []>} : vector<16x32xf32>, vector<32x32xf32>, vector<16x32xf32> -> vector<16x32xf32>
    %82 = vector.broadcast %14 : vector<1x32xf32> to vector<16x32xf32>
    %83 = arith.addf %81, %82 : vector<16x32xf32>
    %84 = arith.addf %6, %83 : vector<16x32xf32>
    %cst_49 = arith.constant dense<0.000000e+00> : vector<16xf32>
    %85 = vector.multi_reduction <add>, %84, %cst_49 [1] : vector<16x32xf32> to vector<16xf32>
    %86 = vector.shape_cast %85 : vector<16xf32> to vector<16x1xf32>
    %cst_50 = arith.constant 3.200000e+01 : f32
    %87 = vector.broadcast %cst_50 : f32 to vector<16x1xf32>
    %88 = arith.divf %86, %87 : vector<16x1xf32>
    %89 = vector.broadcast %88 : vector<16x1xf32> to vector<16x32xf32>
    %90 = arith.subf %84, %89 : vector<16x32xf32>
    %91 = arith.mulf %90, %90 : vector<16x32xf32>
    %cst_51 = arith.constant dense<0.000000e+00> : vector<16xf32>
    %92 = vector.multi_reduction <add>, %91, %cst_51 [1] : vector<16x32xf32> to vector<16xf32>
    %93 = vector.shape_cast %92 : vector<16xf32> to vector<16x1xf32>
    %cst_52 = arith.constant 3.200000e+01 : f32
    %94 = vector.broadcast %cst_52 : f32 to vector<16x1xf32>
    %95 = arith.divf %93, %94 : vector<16x1xf32>
    %96 = vector.broadcast %88 : vector<16x1xf32> to vector<16x32xf32>
    %97 = arith.subf %84, %96 : vector<16x32xf32>
    %cst_53 = arith.constant 9.99999974E-6 : f32
    %98 = vector.broadcast %cst_53 : f32 to vector<16x1xf32>
    %99 = arith.addf %95, %98 : vector<16x1xf32>
    %100 = math.rsqrt %99 : vector<16x1xf32>
    %101 = vector.broadcast %100 : vector<16x1xf32> to vector<16x32xf32>
    %102 = arith.mulf %97, %101 : vector<16x32xf32>
    %103 = vector.broadcast %16 : vector<1x32xf32> to vector<16x32xf32>
    %104 = arith.mulf %102, %103 : vector<16x32xf32>
    %105 = vector.broadcast %18 : vector<1x32xf32> to vector<16x32xf32>
    %106 = arith.addf %104, %105 : vector<16x32xf32>
    %cst_54 = arith.constant dense<0.000000e+00> : vector<16x64xf32>
    %107 = tpu.matmul %106, %20, %cst_54 {dimension_numbers = #tpu.dot_dimension_numbers<[1], [0], [0], [1], [0, 0, 1, 1], [], []>} : vector<16x32xf32>, vector<32x64xf32>, vector<16x64xf32> -> vector<16x64xf32>
    %108 = vector.broadcast %22 : vector<1x64xf32> to vector<16x64xf32>
    %109 = arith.addf %107, %108 : vector<16x64xf32>
    %cst_55 = arith.constant 0.000000e+00 : f32
    %110 = vector.broadcast %cst_55 : f32 to vector<16x64xf32>
    %111 = arith.maximumf %109, %110 : vector<16x64xf32>
    %cst_56 = arith.constant dense<0.000000e+00> : vector<16x32xf32>
    %112 = tpu.matmul %111, %24, %cst_56 {dimension_numbers = #tpu.dot_dimension_numbers<[1], [0], [0], [1], [0, 0, 1, 1], [], []>} : vector<16x64xf32>, vector<64x32xf32>, vector<16x32xf32> -> vector<16x32xf32>
    %113 = vector.broadcast %26 : vector<1x32xf32> to vector<16x32xf32>
    %114 = arith.addf %112, %113 : vector<16x32xf32>
    %115 = arith.addf %106, %114 : vector<16x32xf32>
    %cst_57 = arith.constant dense<0.000000e+00> : vector<16xf32>
    %116 = vector.multi_reduction <add>, %115, %cst_57 [1] : vector<16x32xf32> to vector<16xf32>
    %117 = vector.shape_cast %116 : vector<16xf32> to vector<16x1xf32>
    %cst_58 = arith.constant 3.200000e+01 : f32
    %118 = vector.broadcast %cst_58 : f32 to vector<16x1xf32>
    %119 = arith.divf %117, %118 : vector<16x1xf32>
    %120 = vector.broadcast %119 : vector<16x1xf32> to vector<16x32xf32>
    %121 = arith.subf %115, %120 : vector<16x32xf32>
    %122 = arith.mulf %121, %121 : vector<16x32xf32>
    %cst_59 = arith.constant dense<0.000000e+00> : vector<16xf32>
    %123 = vector.multi_reduction <add>, %122, %cst_59 [1] : vector<16x32xf32> to vector<16xf32>
    %124 = vector.shape_cast %123 : vector<16xf32> to vector<16x1xf32>
    %cst_60 = arith.constant 3.200000e+01 : f32
    %125 = vector.broadcast %cst_60 : f32 to vector<16x1xf32>
    %126 = arith.divf %124, %125 : vector<16x1xf32>
    %127 = vector.broadcast %119 : vector<16x1xf32> to vector<16x32xf32>
    %128 = arith.subf %115, %127 : vector<16x32xf32>
    %cst_61 = arith.constant 9.99999974E-6 : f32
    %129 = vector.broadcast %cst_61 : f32 to vector<16x1xf32>
    %130 = arith.addf %126, %129 : vector<16x1xf32>
    %131 = math.rsqrt %130 : vector<16x1xf32>
    %132 = vector.broadcast %131 : vector<16x1xf32> to vector<16x32xf32>
    %133 = arith.mulf %128, %132 : vector<16x32xf32>
    %134 = vector.broadcast %28 : vector<1x32xf32> to vector<16x32xf32>
    %135 = arith.mulf %133, %134 : vector<16x32xf32>
    %136 = vector.broadcast %30 : vector<1x32xf32> to vector<16x32xf32>
    %137 = arith.addf %135, %136 : vector<16x32xf32>
    %c1 = arith.constant 1 : index
    %c0_62 = arith.constant 0 : index
    %c0_63 = arith.constant 0 : index
    %138 = vector.load %arg4[%c1, %c0_62, %c0_63] : memref<2x32x96xf32, #tpu.memory_space<vmem>>, vector<1x32x96xf32>
    %139 = vector.shape_cast %138 : vector<1x32x96xf32> to vector<32x96xf32>
    %c1_64 = arith.constant 1 : index
    %c0_65 = arith.constant 0 : index
    %c0_66 = arith.constant 0 : index
    %140 = vector.load %arg5[%c1_64, %c0_65, %c0_66] : memref<2x1x96xf32, #tpu.memory_space<vmem>>, vector<1x1x96xf32>
    %141 = vector.shape_cast %140 : vector<1x1x96xf32> to vector<1x96xf32>
    %c1_67 = arith.constant 1 : index
    %c0_68 = arith.constant 0 : index
    %c0_69 = arith.constant 0 : index
    %142 = vector.load %arg6[%c1_67, %c0_68, %c0_69] : memref<2x32x32xf32, #tpu.memory_space<vmem>>, vector<1x32x32xf32>
    %143 = vector.shape_cast %142 : vector<1x32x32xf32> to vector<32x32xf32>
    %c1_70 = arith.constant 1 : index
    %c0_71 = arith.constant 0 : index
    %c0_72 = arith.constant 0 : index
    %144 = vector.load %arg7[%c1_70, %c0_71, %c0_72] : memref<2x1x32xf32, #tpu.memory_space<vmem>>, vector<1x1x32xf32>
    %145 = vector.shape_cast %144 : vector<1x1x32xf32> to vector<1x32xf32>
    %c1_73 = arith.constant 1 : index
    %c0_74 = arith.constant 0 : index
    %c0_75 = arith.constant 0 : index
    %146 = vector.load %arg8[%c1_73, %c0_74, %c0_75] : memref<2x1x32xf32, #tpu.memory_space<vmem>>, vector<1x1x32xf32>
    %147 = vector.shape_cast %146 : vector<1x1x32xf32> to vector<1x32xf32>
    %c1_76 = arith.constant 1 : index
    %c0_77 = arith.constant 0 : index
    %c0_78 = arith.constant 0 : index
    %148 = vector.load %arg9[%c1_76, %c0_77, %c0_78] : memref<2x1x32xf32, #tpu.memory_space<vmem>>, vector<1x1x32xf32>
    %149 = vector.shape_cast %148 : vector<1x1x32xf32> to vector<1x32xf32>
    %c1_79 = arith.constant 1 : index
    %c0_80 = arith.constant 0 : index
    %c0_81 = arith.constant 0 : index
    %150 = vector.load %arg10[%c1_79, %c0_80, %c0_81] : memref<2x32x64xf32, #tpu.memory_space<vmem>>, vector<1x32x64xf32>
    %151 = vector.shape_cast %150 : vector<1x32x64xf32> to vector<32x64xf32>
    %c1_82 = arith.constant 1 : index
    %c0_83 = arith.constant 0 : index
    %c0_84 = arith.constant 0 : index
    %152 = vector.load %arg11[%c1_82, %c0_83, %c0_84] : memref<2x1x64xf32, #tpu.memory_space<vmem>>, vector<1x1x64xf32>
    %153 = vector.shape_cast %152 : vector<1x1x64xf32> to vector<1x64xf32>
    %c1_85 = arith.constant 1 : index
    %c0_86 = arith.constant 0 : index
    %c0_87 = arith.constant 0 : index
    %154 = vector.load %arg12[%c1_85, %c0_86, %c0_87] : memref<2x64x32xf32, #tpu.memory_space<vmem>>, vector<1x64x32xf32>
    %155 = vector.shape_cast %154 : vector<1x64x32xf32> to vector<64x32xf32>
    %c1_88 = arith.constant 1 : index
    %c0_89 = arith.constant 0 : index
    %c0_90 = arith.constant 0 : index
    %156 = vector.load %arg13[%c1_88, %c0_89, %c0_90] : memref<2x1x32xf32, #tpu.memory_space<vmem>>, vector<1x1x32xf32>
    %157 = vector.shape_cast %156 : vector<1x1x32xf32> to vector<1x32xf32>
    %c1_91 = arith.constant 1 : index
    %c0_92 = arith.constant 0 : index
    %c0_93 = arith.constant 0 : index
    %158 = vector.load %arg14[%c1_91, %c0_92, %c0_93] : memref<2x1x32xf32, #tpu.memory_space<vmem>>, vector<1x1x32xf32>
    %159 = vector.shape_cast %158 : vector<1x1x32xf32> to vector<1x32xf32>
    %c1_94 = arith.constant 1 : index
    %c0_95 = arith.constant 0 : index
    %c0_96 = arith.constant 0 : index
    %160 = vector.load %arg15[%c1_94, %c0_95, %c0_96] : memref<2x1x32xf32, #tpu.memory_space<vmem>>, vector<1x1x32xf32>
    %161 = vector.shape_cast %160 : vector<1x1x32xf32> to vector<1x32xf32>
    %cst_97 = arith.constant dense<0.000000e+00> : vector<16x96xf32>
    %162 = tpu.matmul %137, %139, %cst_97 {dimension_numbers = #tpu.dot_dimension_numbers<[1], [0], [0], [1], [0, 0, 1, 1], [], []>} : vector<16x32xf32>, vector<32x96xf32>, vector<16x96xf32> -> vector<16x96xf32>
    %163 = vector.broadcast %141 : vector<1x96xf32> to vector<16x96xf32>
    %164 = arith.addf %162, %163 : vector<16x96xf32>
    %165 = vector.extract_strided_slice %164 {offsets = [0, 0], sizes = [16, 8], strides = [1, 1]} : vector<16x96xf32> to vector<16x8xf32>
    %166 = vector.shape_cast %165 : vector<16x8xf32> to vector<2x8x8xf32>
    %167 = vector.extract_strided_slice %164 {offsets = [0, 8], sizes = [16, 8], strides = [1, 1]} : vector<16x96xf32> to vector<16x8xf32>
    %168 = vector.shape_cast %167 : vector<16x8xf32> to vector<2x8x8xf32>
    %169 = vector.extract_strided_slice %164 {offsets = [0, 16], sizes = [16, 8], strides = [1, 1]} : vector<16x96xf32> to vector<16x8xf32>
    %170 = vector.shape_cast %169 : vector<16x8xf32> to vector<2x8x8xf32>
    %171 = vector.extract_strided_slice %164 {offsets = [0, 24], sizes = [16, 8], strides = [1, 1]} : vector<16x96xf32> to vector<16x8xf32>
    %172 = vector.shape_cast %171 : vector<16x8xf32> to vector<2x8x8xf32>
    %173 = tpu.concatenate %166, %168, %170, %172 in 0 : vector<2x8x8xf32>, vector<2x8x8xf32>, vector<2x8x8xf32>, vector<2x8x8xf32> -> vector<8x8x8xf32>
    %174 = vector.extract_strided_slice %164 {offsets = [0, 32], sizes = [16, 8], strides = [1, 1]} : vector<16x96xf32> to vector<16x8xf32>
    %175 = vector.shape_cast %174 : vector<16x8xf32> to vector<2x8x8xf32>
    %176 = vector.extract_strided_slice %164 {offsets = [0, 40], sizes = [16, 8], strides = [1, 1]} : vector<16x96xf32> to vector<16x8xf32>
    %177 = vector.shape_cast %176 : vector<16x8xf32> to vector<2x8x8xf32>
    %178 = vector.extract_strided_slice %164 {offsets = [0, 48], sizes = [16, 8], strides = [1, 1]} : vector<16x96xf32> to vector<16x8xf32>
    %179 = vector.shape_cast %178 : vector<16x8xf32> to vector<2x8x8xf32>
    %180 = vector.extract_strided_slice %164 {offsets = [0, 56], sizes = [16, 8], strides = [1, 1]} : vector<16x96xf32> to vector<16x8xf32>
    %181 = vector.shape_cast %180 : vector<16x8xf32> to vector<2x8x8xf32>
    %182 = tpu.concatenate %175, %177, %179, %181 in 0 : vector<2x8x8xf32>, vector<2x8x8xf32>, vector<2x8x8xf32>, vector<2x8x8xf32> -> vector<8x8x8xf32>
    %183 = vector.extract_strided_slice %164 {offsets = [0, 64], sizes = [16, 8], strides = [1, 1]} : vector<16x96xf32> to vector<16x8xf32>
    %184 = vector.shape_cast %183 : vector<16x8xf32> to vector<2x8x8xf32>
    %185 = vector.extract_strided_slice %164 {offsets = [0, 72], sizes = [16, 8], strides = [1, 1]} : vector<16x96xf32> to vector<16x8xf32>
    %186 = vector.shape_cast %185 : vector<16x8xf32> to vector<2x8x8xf32>
    %187 = vector.extract_strided_slice %164 {offsets = [0, 80], sizes = [16, 8], strides = [1, 1]} : vector<16x96xf32> to vector<16x8xf32>
    %188 = vector.shape_cast %187 : vector<16x8xf32> to vector<2x8x8xf32>
    %189 = vector.extract_strided_slice %164 {offsets = [0, 88], sizes = [16, 8], strides = [1, 1]} : vector<16x96xf32> to vector<16x8xf32>
    %190 = vector.shape_cast %189 : vector<16x8xf32> to vector<2x8x8xf32>
    %191 = tpu.concatenate %184, %186, %188, %190 in 0 : vector<2x8x8xf32>, vector<2x8x8xf32>, vector<2x8x8xf32>, vector<2x8x8xf32> -> vector<8x8x8xf32>
    %cst_98 = arith.constant dense<0.000000e+00> : vector<8x8x8xf32>
    %192 = tpu.matmul %173, %182, %cst_98 {dimension_numbers = #tpu.dot_dimension_numbers<[2], [2], [1], [1], [0, 0, 0, 1, 1, 1], [0], [0]>} : vector<8x8x8xf32>, vector<8x8x8xf32>, vector<8x8x8xf32> -> vector<8x8x8xf32>
    %cst_99 = arith.constant 0.353553385 : f32
    %193 = vector.broadcast %cst_99 : f32 to vector<8x8x8xf32>
    %194 = arith.mulf %192, %193 : vector<8x8x8xf32>
    %cst_100 = arith.constant dense<0xFF800000> : vector<8x8xf32>
    %195 = vector.multi_reduction <maximumf>, %194, %cst_100 [2] : vector<8x8x8xf32> to vector<8x8xf32>
    %196 = vector.shape_cast %195 : vector<8x8xf32> to vector<8x8x1xf32>
    %197 = vector.broadcast %196 : vector<8x8x1xf32> to vector<8x8x8xf32>
    %198 = arith.subf %194, %197 : vector<8x8x8xf32>
    %199 = math.exp %198 : vector<8x8x8xf32>
    %cst_101 = arith.constant dense<0.000000e+00> : vector<8x8xf32>
    %200 = vector.multi_reduction <add>, %199, %cst_101 [2] : vector<8x8x8xf32> to vector<8x8xf32>
    %201 = vector.shape_cast %200 : vector<8x8xf32> to vector<8x8x1xf32>
    %202 = tpu.reciprocal %201 {approx = true} : vector<8x8x1xf32> -> vector<8x8x1xf32>
    %203 = vector.broadcast %202 : vector<8x8x1xf32> to vector<8x8x8xf32>
    %204 = arith.mulf %199, %203 : vector<8x8x8xf32>
    %cst_102 = arith.constant dense<0.000000e+00> : vector<8x8x8xf32>
    %205 = tpu.matmul %204, %191, %cst_102 {dimension_numbers = #tpu.dot_dimension_numbers<[2], [1], [1], [2], [0, 0, 0, 1, 1, 2], [0], [0]>} : vector<8x8x8xf32>, vector<8x8x8xf32>, vector<8x8x8xf32> -> vector<8x8x8xf32>
    %206 = vector.extract_strided_slice %205 {offsets = [0, 0, 0], sizes = [2, 8, 8], strides = [1, 1, 1]} : vector<8x8x8xf32> to vector<2x8x8xf32>
    %207 = vector.extract_strided_slice %205 {offsets = [2, 0, 0], sizes = [2, 8, 8], strides = [1, 1, 1]} : vector<8x8x8xf32> to vector<2x8x8xf32>
    %208 = vector.extract_strided_slice %205 {offsets = [4, 0, 0], sizes = [2, 8, 8], strides = [1, 1, 1]} : vector<8x8x8xf32> to vector<2x8x8xf32>
    %209 = vector.extract_strided_slice %205 {offsets = [6, 0, 0], sizes = [2, 8, 8], strides = [1, 1, 1]} : vector<8x8x8xf32> to vector<2x8x8xf32>
    %210 = tpu.concatenate %206, %207, %208, %209 in 2 : vector<2x8x8xf32>, vector<2x8x8xf32>, vector<2x8x8xf32>, vector<2x8x8xf32> -> vector<2x8x32xf32>
    %211 = vector.shape_cast %210 : vector<2x8x32xf32> to vector<16x32xf32>
    %cst_103 = arith.constant dense<0.000000e+00> : vector<16x32xf32>
    %212 = tpu.matmul %211, %143, %cst_103 {dimension_numbers = #tpu.dot_dimension_numbers<[1], [0], [0], [1], [0, 0, 1, 1], [], []>} : vector<16x32xf32>, vector<32x32xf32>, vector<16x32xf32> -> vector<16x32xf32>
    %213 = vector.broadcast %145 : vector<1x32xf32> to vector<16x32xf32>
    %214 = arith.addf %212, %213 : vector<16x32xf32>
    %215 = arith.addf %137, %214 : vector<16x32xf32>
    %cst_104 = arith.constant dense<0.000000e+00> : vector<16xf32>
    %216 = vector.multi_reduction <add>, %215, %cst_104 [1] : vector<16x32xf32> to vector<16xf32>
    %217 = vector.shape_cast %216 : vector<16xf32> to vector<16x1xf32>
    %cst_105 = arith.constant 3.200000e+01 : f32
    %218 = vector.broadcast %cst_105 : f32 to vector<16x1xf32>
    %219 = arith.divf %217, %218 : vector<16x1xf32>
    %220 = vector.broadcast %219 : vector<16x1xf32> to vector<16x32xf32>
    %221 = arith.subf %215, %220 : vector<16x32xf32>
    %222 = arith.mulf %221, %221 : vector<16x32xf32>
    %cst_106 = arith.constant dense<0.000000e+00> : vector<16xf32>
    %223 = vector.multi_reduction <add>, %222, %cst_106 [1] : vector<16x32xf32> to vector<16xf32>
    %224 = vector.shape_cast %223 : vector<16xf32> to vector<16x1xf32>
    %cst_107 = arith.constant 3.200000e+01 : f32
    %225 = vector.broadcast %cst_107 : f32 to vector<16x1xf32>
    %226 = arith.divf %224, %225 : vector<16x1xf32>
    %227 = vector.broadcast %219 : vector<16x1xf32> to vector<16x32xf32>
    %228 = arith.subf %215, %227 : vector<16x32xf32>
    %cst_108 = arith.constant 9.99999974E-6 : f32
    %229 = vector.broadcast %cst_108 : f32 to vector<16x1xf32>
    %230 = arith.addf %226, %229 : vector<16x1xf32>
    %231 = math.rsqrt %230 : vector<16x1xf32>
    %232 = vector.broadcast %231 : vector<16x1xf32> to vector<16x32xf32>
    %233 = arith.mulf %228, %232 : vector<16x32xf32>
    %234 = vector.broadcast %147 : vector<1x32xf32> to vector<16x32xf32>
    %235 = arith.mulf %233, %234 : vector<16x32xf32>
    %236 = vector.broadcast %149 : vector<1x32xf32> to vector<16x32xf32>
    %237 = arith.addf %235, %236 : vector<16x32xf32>
    %cst_109 = arith.constant dense<0.000000e+00> : vector<16x64xf32>
    %238 = tpu.matmul %237, %151, %cst_109 {dimension_numbers = #tpu.dot_dimension_numbers<[1], [0], [0], [1], [0, 0, 1, 1], [], []>} : vector<16x32xf32>, vector<32x64xf32>, vector<16x64xf32> -> vector<16x64xf32>
    %239 = vector.broadcast %153 : vector<1x64xf32> to vector<16x64xf32>
    %240 = arith.addf %238, %239 : vector<16x64xf32>
    %cst_110 = arith.constant 0.000000e+00 : f32
    %241 = vector.broadcast %cst_110 : f32 to vector<16x64xf32>
    %242 = arith.maximumf %240, %241 : vector<16x64xf32>
    %cst_111 = arith.constant dense<0.000000e+00> : vector<16x32xf32>
    %243 = tpu.matmul %242, %155, %cst_111 {dimension_numbers = #tpu.dot_dimension_numbers<[1], [0], [0], [1], [0, 0, 1, 1], [], []>} : vector<16x64xf32>, vector<64x32xf32>, vector<16x32xf32> -> vector<16x32xf32>
    %244 = vector.broadcast %157 : vector<1x32xf32> to vector<16x32xf32>
    %245 = arith.addf %243, %244 : vector<16x32xf32>
    %246 = arith.addf %237, %245 : vector<16x32xf32>
    %cst_112 = arith.constant dense<0.000000e+00> : vector<16xf32>
    %247 = vector.multi_reduction <add>, %246, %cst_112 [1] : vector<16x32xf32> to vector<16xf32>
    %248 = vector.shape_cast %247 : vector<16xf32> to vector<16x1xf32>
    %cst_113 = arith.constant 3.200000e+01 : f32
    %249 = vector.broadcast %cst_113 : f32 to vector<16x1xf32>
    %250 = arith.divf %248, %249 : vector<16x1xf32>
    %251 = vector.broadcast %250 : vector<16x1xf32> to vector<16x32xf32>
    %252 = arith.subf %246, %251 : vector<16x32xf32>
    %253 = arith.mulf %252, %252 : vector<16x32xf32>
    %cst_114 = arith.constant dense<0.000000e+00> : vector<16xf32>
    %254 = vector.multi_reduction <add>, %253, %cst_114 [1] : vector<16x32xf32> to vector<16xf32>
    %255 = vector.shape_cast %254 : vector<16xf32> to vector<16x1xf32>
    %cst_115 = arith.constant 3.200000e+01 : f32
    %256 = vector.broadcast %cst_115 : f32 to vector<16x1xf32>
    %257 = arith.divf %255, %256 : vector<16x1xf32>
    %258 = vector.broadcast %250 : vector<16x1xf32> to vector<16x32xf32>
    %259 = arith.subf %246, %258 : vector<16x32xf32>
    %cst_116 = arith.constant 9.99999974E-6 : f32
    %260 = vector.broadcast %cst_116 : f32 to vector<16x1xf32>
    %261 = arith.addf %257, %260 : vector<16x1xf32>
    %262 = math.rsqrt %261 : vector<16x1xf32>
    %263 = vector.broadcast %262 : vector<16x1xf32> to vector<16x32xf32>
    %264 = arith.mulf %259, %263 : vector<16x32xf32>
    %265 = vector.broadcast %159 : vector<1x32xf32> to vector<16x32xf32>
    %266 = arith.mulf %264, %265 : vector<16x32xf32>
    %267 = vector.broadcast %161 : vector<1x32xf32> to vector<16x32xf32>
    %268 = arith.addf %266, %267 : vector<16x32xf32>
    %269 = vector.shape_cast %268 : vector<16x32xf32> to vector<2x8x32xf32>
    %270 = vector.extract_strided_slice %269 {offsets = [0, 7, 0], sizes = [2, 1, 32], strides = [1, 1, 1]} : vector<2x8x32xf32> to vector<2x1x32xf32>
    %271 = vector.shape_cast %270 : vector<2x1x32xf32> to vector<2x32xf32>
    %c0_117 = arith.constant 0 : index
    %c0_118 = arith.constant 0 : index
    %272 = vector.load %arg16[%c0_117, %c0_118] : memref<32x128xf32, #tpu.memory_space<vmem>>, vector<32x128xf32>
    %cst_119 = arith.constant dense<0.000000e+00> : vector<2x128xf32>
    %273 = tpu.matmul %271, %272, %cst_119 {dimension_numbers = #tpu.dot_dimension_numbers<[1], [0], [0], [1], [0, 0, 1, 1], [], []>} : vector<2x32xf32>, vector<32x128xf32>, vector<2x128xf32> -> vector<2x128xf32>
    %c0_120 = arith.constant 0 : index
    %c0_121 = arith.constant 0 : index
    %274 = vector.load %arg17[%c0_120, %c0_121] : memref<1x128xf32, #tpu.memory_space<vmem>>, vector<1x128xf32>
    %275 = vector.broadcast %274 : vector<1x128xf32> to vector<2x128xf32>
    %276 = arith.addf %273, %275 : vector<2x128xf32>
    %c0_122 = arith.constant 0 : index
    %c0_123 = arith.constant 0 : index
    %277 = vector.load %arg18[%c0_122, %c0_123] : memref<2x128xf32, #tpu.memory_space<vmem>>, vector<2x128xf32>
    tpu.vector_store %arg18[%c0_122, %c0_123], %276 {strides = array<i32>} : memref<2x128xf32, #tpu.memory_space<vmem>>, vector<2x128xf32>,
    return
  }
  func.func @transform_0(%arg0: i32) -> (i32, i32, i32) {
    %c0_i32 = arith.constant 0 : i32
    %c0_i32_0 = arith.constant 0 : i32
    %c0_i32_1 = arith.constant 0 : i32
    return %arg0, %c0_i32, %c0_i32_0 : i32, i32, i32
  }
  func.func @transform_1(%arg0: i32) -> (i32, i32) {
    %c0_i32 = arith.constant 0 : i32
    %c0_i32_0 = arith.constant 0 : i32
    %c0_i32_1 = arith.constant 0 : i32
    return %c0_i32, %c0_i32_0 : i32, i32
  }
  func.func @transform_2(%arg0: i32) -> (i32, i32) {
    %c0_i32 = arith.constant 0 : i32
    %c0_i32_0 = arith.constant 0 : i32
    %c0_i32_1 = arith.constant 0 : i32
    return %c0_i32, %c0_i32_0 : i32, i32
  }
  func.func @transform_3(%arg0: i32) -> (i32, i32, i32) {
    %c0_i32 = arith.constant 0 : i32
    %c0_i32_0 = arith.constant 0 : i32
    %c0_i32_1 = arith.constant 0 : i32
    %c0_i32_2 = arith.constant 0 : i32
    return %c0_i32, %c0_i32_0, %c0_i32_1 : i32, i32, i32
  }
  func.func @transform_4(%arg0: i32) -> (i32, i32, i32) {
    %c0_i32 = arith.constant 0 : i32
    %c0_i32_0 = arith.constant 0 : i32
    %c0_i32_1 = arith.constant 0 : i32
    %c0_i32_2 = arith.constant 0 : i32
    return %c0_i32, %c0_i32_0, %c0_i32_1 : i32, i32, i32
  }
  func.func @transform_5(%arg0: i32) -> (i32, i32, i32) {
    %c0_i32 = arith.constant 0 : i32
    %c0_i32_0 = arith.constant 0 : i32
    %c0_i32_1 = arith.constant 0 : i32
    %c0_i32_2 = arith.constant 0 : i32
    return %c0_i32, %c0_i32_0, %c0_i32_1 : i32, i32, i32
  }
  func.func @transform_6(%arg0: i32) -> (i32, i32, i32) {
    %c0_i32 = arith.constant 0 : i32
    %c0_i32_0 = arith.constant 0 : i32
    %c0_i32_1 = arith.constant 0 : i32
    %c0_i32_2 = arith.constant 0 : i32
    return %c0_i32, %c0_i32_0, %c0_i32_1 : i32, i32, i32
  }
  func.func @transform_7(%arg0: i32) -> (i32, i32, i32) {
    %c0_i32 = arith.constant 0 : i32
    %c0_i32_0 = arith.constant 0 : i32
    %c0_i32_1 = arith.constant 0 : i32
    %c0_i32_2 = arith.constant 0 : i32
    return %c0_i32, %c0_i32_0, %c0_i32_1 : i32, i32, i32
  }
  func.func @transform_8(%arg0: i32) -> (i32, i32, i32) {
    %c0_i32 = arith.constant 0 : i32
    %c0_i32_0 = arith.constant 0 : i32
    %c0_i32_1 = arith.constant 0 : i32
    %c0_i32_2 = arith.constant 0 : i32
    return %c0_i32, %c0_i32_0, %c0_i32_1 : i32, i32, i32
  }
  func.func @transform_9(%arg0: i32) -> (i32, i32, i32) {
    %c0_i32 = arith.constant 0 : i32
    %c0_i32_0 = arith.constant 0 : i32
    %c0_i32_1 = arith.constant 0 : i32
    %c0_i32_2 = arith.constant 0 : i32
    return %c0_i32, %c0_i32_0, %c0_i32_1 : i32, i32, i32
  }
  func.func @transform_10(%arg0: i32) -> (i32, i32, i32) {
    %c0_i32 = arith.constant 0 : i32
    %c0_i32_0 = arith.constant 0 : i32
    %c0_i32_1 = arith.constant 0 : i32
    %c0_i32_2 = arith.constant 0 : i32
    return %c0_i32, %c0_i32_0, %c0_i32_1 : i32, i32, i32
  }
  func.func @transform_11(%arg0: i32) -> (i32, i32, i32) {
    %c0_i32 = arith.constant 0 : i32
    %c0_i32_0 = arith.constant 0 : i32
    %c0_i32_1 = arith.constant 0 : i32
    %c0_i32_2 = arith.constant 0 : i32
    return %c0_i32, %c0_i32_0, %c0_i32_1 : i32, i32, i32
  }
  func.func @transform_12(%arg0: i32) -> (i32, i32, i32) {
    %c0_i32 = arith.constant 0 : i32
    %c0_i32_0 = arith.constant 0 : i32
    %c0_i32_1 = arith.constant 0 : i32
    %c0_i32_2 = arith.constant 0 : i32
    return %c0_i32, %c0_i32_0, %c0_i32_1 : i32, i32, i32
  }
  func.func @transform_13(%arg0: i32) -> (i32, i32, i32) {
    %c0_i32 = arith.constant 0 : i32
    %c0_i32_0 = arith.constant 0 : i32
    %c0_i32_1 = arith.constant 0 : i32
    %c0_i32_2 = arith.constant 0 : i32
    return %c0_i32, %c0_i32_0, %c0_i32_1 : i32, i32, i32
  }
  func.func @transform_14(%arg0: i32) -> (i32, i32, i32) {
    %c0_i32 = arith.constant 0 : i32
    %c0_i32_0 = arith.constant 0 : i32
    %c0_i32_1 = arith.constant 0 : i32
    %c0_i32_2 = arith.constant 0 : i32
    return %c0_i32, %c0_i32_0, %c0_i32_1 : i32, i32, i32
  }
  func.func @transform_15(%arg0: i32) -> (i32, i32) {
    %c0_i32 = arith.constant 0 : i32
    %c0_i32_0 = arith.constant 0 : i32
    %c0_i32_1 = arith.constant 0 : i32
    return %c0_i32, %c0_i32_0 : i32, i32
  }
  func.func @transform_16(%arg0: i32) -> (i32, i32) {
    %c0_i32 = arith.constant 0 : i32
    %c0_i32_0 = arith.constant 0 : i32
    %c0_i32_1 = arith.constant 0 : i32
    return %c0_i32, %c0_i32_0 : i32, i32
  }
  func.func @transform_17(%arg0: i32) -> (i32, i32) {
    %c0_i32 = arith.constant 0 : i32
    %c0_i32_0 = arith.constant 0 : i32
    return %arg0, %c0_i32 : i32, i32
  }
}

</mosaic_0001>

<llo_original>
// kernel: tpu_custom_call.1
$region0: #{tpu_custom_call.1}
  #allocation0 [shape = 'u32[]', space=smem, size = 0x4, offset = 0x4, fixed_abs, tag = 'smem constant byte address 0x4 - core index']
  #allocation1 [shape = 'u32[144,128]{1,0:T(1,128)}', space=vmem, size = 0x12000, scoped, tag = 'internal scratch']
  %s0 = inlined_call_operand.vmem [shape: f32[2,8,4], index: 0, kind: input, shape index: {}]
  %s1 = inlined_call_operand.hbm [shape: f32[4,32], index: 1, kind: input, shape index: {}]
  %s2 = inlined_call_operand.hbm [shape: f32[1,32], index: 2, kind: input, shape index: {}]
  %s3 = inlined_call_operand.vmem [shape: f32[2,32,96], index: 3, kind: input, shape index: {}]
  %s4 = inlined_call_operand.vmem [shape: f32[2,1,96], index: 4, kind: input, shape index: {}]
  %s5 = inlined_call_operand.vmem [shape: f32[2,32,32], index: 5, kind: input, shape index: {}]
  %s6 = inlined_call_operand.hbm [shape: f32[2,1,32], index: 6, kind: input, shape index: {}]
  %s7 = inlined_call_operand.hbm [shape: f32[2,1,32], index: 7, kind: input, shape index: {}]
  %s8 = inlined_call_operand.vmem [shape: f32[2,1,32], index: 8, kind: input, shape index: {}]
  %s9 = inlined_call_operand.vmem [shape: f32[2,32,64], index: 9, kind: input, shape index: {}]
  %s10 = inlined_call_operand.vmem [shape: f32[2,1,64], index: 10, kind: input, shape index: {}]
  %s11 = inlined_call_operand.vmem [shape: f32[2,64,32], index: 11, kind: input, shape index: {}]
  %s12 = inlined_call_operand.vmem [shape: f32[2,1,32], index: 12, kind: input, shape index: {}]
  %s13 = inlined_call_operand.vmem [shape: f32[2,1,32], index: 13, kind: input, shape index: {}]
  %s14 = inlined_call_operand.vmem [shape: f32[2,1,32], index: 14, kind: input, shape index: {}]
  %s15 = inlined_call_operand.vmem [shape: f32[32,128], index: 15, kind: input, shape index: {}]
  %s16 = inlined_call_operand.vmem [shape: f32[1,128], index: 16, kind: input, shape index: {}]
  %s17 = inlined_call_operand.hbm [shape: f32[2,128], index: 17, kind: output, shape index: {}]
  %s18 = sld [smem:[#allocation0]]
  $region94: #{tpu_custom_call.1} parent=0
    _
  %s20 = ssub.s32 1, %s18
  %s21 = scalar_select 0, %s20, %s18
  $region1: #{tpu_custom_call.1} parent=0
    #allocation2 [shape = 'u8[2048]{0}', space=vmem, size = 0x800, scoped, tag = 'input window, operand 1, single buffered']
    #allocation3 [shape = 's32[1]{0}', space=sflag, size = 0x4, scoped, tag = 'scoped memory for tpu_custom_call.1']
    #allocation4 [shape = 's32[1]{0}', space=sflag, size = 0x4, scoped, tag = 'scoped memory for tpu_custom_call.1']
    #allocation5 [shape = 'u8[512]{0}', space=vmem, size = 0x400, scoped, tag = 'input window, operand 2, single buffered']
    #allocation6 [shape = 's32[1]{0}', space=sflag, size = 0x4, scoped, tag = 'scoped memory for tpu_custom_call.1']
    #allocation7 [shape = 'u8[1024]{0}', space=vmem, size = 0x400, scoped, tag = 'input window, operand 6, single buffered']
    #allocation8 [shape = 'u8[1024]{0}', space=vmem, size = 0x400, scoped, tag = 'input window, operand 7, single buffered']
    #allocation9 [shape = 's32[1]{0}', space=sflag, size = 0x4, scoped, tag = 'scoped memory for tpu_custom_call.1']
    #allocation10 [shape = 'u8[1024]{0}', space=vmem, size = 0x400, scoped, tag = 'output window, operand 0, single buffered']
    %22 = vsyncpa [#allocation3], 0
    %23 = vsyncpa [#allocation6], 0
    %24 = vsyncpa [#allocation9], 0
    %25 = vsyncpa [#allocation4], 0
    // Predicated region
    $region2: #{tpu_custom_call.1} parent=1 // pred_check
      _
    $region3: #{tpu_custom_call.1} parent=1 // pred_check_branch
      %27 = sbr.rel (0) target = $region5
    $region4: #{tpu_custom_call.1} parent=1 // pred_region
      _
    $region5: #{tpu_custom_call.1} parent=1 // pred_fallthru
      _
    // Predicated region
    $region6: #{tpu_custom_call.1} parent=1 // pred_check
      _
    $region7: #{tpu_custom_call.1} parent=1 // pred_check_branch
      %29 = sbr.rel (0) target = $region9
    $region8: #{tpu_custom_call.1} parent=1 // pred_region
      %s31 = ssub.s32 64, 64
      %32 = vsyncadd [#allocation3], %s31
      %s34 = sshll.u32 [#allocation2], 4
      %s35 = int_to_ptr.vmem [resolvable:$true] %s34
      %37 = dma.hbm_to_vmem [thread:$0]  %s1, 64, %s35, [#allocation3]
    $region9: #{tpu_custom_call.1} parent=1 // pred_fallthru
      _
    // Predicated region
    $region10: #{tpu_custom_call.1} parent=1 // pred_check
      _
    $region11: #{tpu_custom_call.1} parent=1 // pred_check_branch
      %39 = sbr.rel (0) target = $region13
    $region12: #{tpu_custom_call.1} parent=1 // pred_region
      %s41 = ssub.s32 16, 16
      %42 = vsyncadd [#allocation6], %s41
      %s44 = sshll.u32 [#allocation5], 4
      %s45 = int_to_ptr.vmem [resolvable:$true] %s44
      %47 = dma.hbm_to_vmem [thread:$0]  %s2, 16, %s45, [#allocation6]
    $region13: #{tpu_custom_call.1} parent=1 // pred_fallthru
      _
    // Predicated region
    $region14: #{tpu_custom_call.1} parent=1 // pred_check
      _
    $region15: #{tpu_custom_call.1} parent=1 // pred_check_branch
      %49 = sbr.rel (0) target = $region17
    $region16: #{tpu_custom_call.1} parent=1 // pred_region
      _
    $region17: #{tpu_custom_call.1} parent=1 // pred_fallthru
      _
    // Predicated region
    $region18: #{tpu_custom_call.1} parent=1 // pred_check
      _
    $region19: #{tpu_custom_call.1} parent=1 // pred_check_branch
      %51 = sbr.rel (0) target = $region21
    $region20: #{tpu_custom_call.1} parent=1 // pred_region
      _
    $region21: #{tpu_custom_call.1} parent=1 // pred_fallthru
      _
    // Predicated region
    $region22: #{tpu_custom_call.1} parent=1 // pred_check
      _
    $region23: #{tpu_custom_call.1} parent=1 // pred_check_branch
      %53 = sbr.rel (0) target = $region25
    $region24: #{tpu_custom_call.1} parent=1 // pred_region
      _
    $region25: #{tpu_custom_call.1} parent=1 // pred_fallthru
      _
    // Predicated region
    $region26: #{tpu_custom_call.1} parent=1 // pred_check
      _
    $region27: #{tpu_custom_call.1} parent=1 // pred_check_branch
      %55 = sbr.rel (0) target = $region29
    $region28: #{tpu_custom_call.1} parent=1 // pred_region
      %s57 = ssub.s32 32, 32
      %58 = vsyncadd [#allocation6], %s57
      %s59 = sshll.u32 [#allocation7], 4
      %s60 = int_to_ptr.vmem [resolvable:$true] %s59
      %65 = dma.hbm_to_vmem [thread:$0]  %s6, 32, %s60, [#allocation6], 16, 16, 1
    $region29: #{tpu_custom_call.1} parent=1 // pred_fallthru
      _
    // Predicated region
    $region30: #{tpu_custom_call.1} parent=1 // pred_check
      _
    $region31: #{tpu_custom_call.1} parent=1 // pred_check_branch
      %67 = sbr.rel (0) target = $region33
    $region32: #{tpu_custom_call.1} parent=1 // pred_region
      %s69 = ssub.s32 32, 32
      %70 = vsyncadd [#allocation9], %s69
      %s71 = sshll.u32 [#allocation8], 4
      %s72 = int_to_ptr.vmem [resolvable:$true] %s71
      %77 = dma.hbm_to_vmem [thread:$0]  %s7, 32, %s72, [#allocation9], 16, 16, 1
    $region33: #{tpu_custom_call.1} parent=1 // pred_fallthru
      _
    // Predicated region
    $region34: #{tpu_custom_call.1} parent=1 // pred_check
      _
    $region35: #{tpu_custom_call.1} parent=1 // pred_check_branch
      %79 = sbr.rel (0) target = $region37
    $region36: #{tpu_custom_call.1} parent=1 // pred_region
      _
    $region37: #{tpu_custom_call.1} parent=1 // pred_fallthru
      _
    // Predicated region
    $region38: #{tpu_custom_call.1} parent=1 // pred_check
      _
    $region39: #{tpu_custom_call.1} parent=1 // pred_check_branch
      %81 = sbr.rel (0) target = $region41
    $region40: #{tpu_custom_call.1} parent=1 // pred_region
      _
    $region41: #{tpu_custom_call.1} parent=1 // pred_fallthru
      _
    // Predicated region
    $region42: #{tpu_custom_call.1} parent=1 // pred_check
      _
    $region43: #{tpu_custom_call.1} parent=1 // pred_check_branch
      %83 = sbr.rel (0) target = $region45
    $region44: #{tpu_custom_call.1} parent=1 // pred_region
      _
    $region45: #{tpu_custom_call.1} parent=1 // pred_fallthru
      _
    // Predicated region
    $region46: #{tpu_custom_call.1} parent=1 // pred_check
      _
    $region47: #{tpu_custom_call.1} parent=1 // pred_check_branch
      %85 = sbr.rel (0) target = $region49
    $region48: #{tpu_custom_call.1} parent=1 // pred_region
      _
    $region49: #{tpu_custom_call.1} parent=1 // pred_fallthru
      _
    // Predicated region
    $region50: #{tpu_custom_call.1} parent=1 // pred_check
      _
    $region51: #{tpu_custom_call.1} parent=1 // pred_check_branch
      %87 = sbr.rel (0) target = $region53
    $region52: #{tpu_custom_call.1} parent=1 // pred_region
      _
    $region53: #{tpu_custom_call.1} parent=1 // pred_fallthru
      _
    // Predicated region
    $region54: #{tpu_custom_call.1} parent=1 // pred_check
      _
    $region55: #{tpu_custom_call.1} parent=1 // pred_check_branch
      %89 = sbr.rel (0) target = $region57
    $region56: #{tpu_custom_call.1} parent=1 // pred_region
      _
    $region57: #{tpu_custom_call.1} parent=1 // pred_fallthru
      _
    // Predicated region
    $region58: #{tpu_custom_call.1} parent=1 // pred_check
      _
    $region59: #{tpu_custom_call.1} parent=1 // pred_check_branch
      %91 = sbr.rel (0) target = $region61
    $region60: #{tpu_custom_call.1} parent=1 // pred_region
      _
    $region61: #{tpu_custom_call.1} parent=1 // pred_fallthru
      _
    // Predicated region
    $region62: #{tpu_custom_call.1} parent=1 // pred_check
      _
    $region63: #{tpu_custom_call.1} parent=1 // pred_check_branch
      %93 = sbr.rel (0) target = $region65
    $region64: #{tpu_custom_call.1} parent=1 // pred_region
      _
    $region65: #{tpu_custom_call.1} parent=1 // pred_fallthru
      _
    // Predicated region
    $region66: #{tpu_custom_call.1} parent=1 // pred_check
      _
    $region67: #{tpu_custom_call.1} parent=1 // pred_check_branch
      %95 = sbr.rel (0) target = $region69
    $region68: #{tpu_custom_call.1} parent=1 // pred_region
      _
    $region69: #{tpu_custom_call.1} parent=1 // pred_fallthru
      _
    // Predicated region
    $region70: #{tpu_custom_call.1} parent=1 // pred_check
      _
    $region71: #{tpu_custom_call.1} parent=1 // pred_check_branch
      %97 = sbr.rel (0) target = $region73
    $region72: #{tpu_custom_call.1} parent=1 // pred_region
      %98 = dma.done [#allocation3], 64
    $region73: #{tpu_custom_call.1} parent=1 // pred_fallthru
      _
    // Predicated region
    $region74: #{tpu_custom_call.1} parent=1 // pred_check
      _
    $region75: #{tpu_custom_call.1} parent=1 // pred_check_branch
      %100 = sbr.rel (0) target = $region77
    $region76: #{tpu_custom_call.1} parent=1 // pred_region
      %101 = dma.done [#allocation6], 16
    $region77: #{tpu_custom_call.1} parent=1 // pred_fallthru
      _
    // Predicated region
    $region78: #{tpu_custom_call.1} parent=1 // pred_check
      _
    $region79: #{tpu_custom_call.1} parent=1 // pred_check_branch
      %103 = sbr.rel (0) target = $region81
    $region80: #{tpu_custom_call.1} parent=1 // pred_region
      %104 = dma.done [#allocation6], 32
    $region81: #{tpu_custom_call.1} parent=1 // pred_fallthru
      _
    // Predicated region
    $region82: #{tpu_custom_call.1} parent=1 // pred_check
      _
    $region83: #{tpu_custom_call.1} parent=1 // pred_check_branch
      %106 = sbr.rel (0) target = $region85
    $region84: #{tpu_custom_call.1} parent=1 // pred_region
      %107 = dma.done [#allocation9], 32
    $region85: #{tpu_custom_call.1} parent=1 // pred_fallthru
      _
    %v108 = vld [vmem:[%s0] sm:$0xff]
    %v109 = vld [vmem:[%s0 + $0x8] sm:$0xff]
    %v110 = vld [vmem:[#allocation2] sm:$0xf]
    %v111 = vld [vmem:[#allocation5] sm:$0x1]
    %v113 = vlaneseq
    %v114 = vshrl.u32 %v113, 7
    %v115 = vsub.s32 0, %v114
    %v116 = vrot.slane %v111, %v115
    %vm118 = vcmask 31744
    %v120 = vsel %vm118, %v108, 0
    %v123 = vsel %vm118, %v109, 0
    %vm125 = vcmask 1043456
    %v127 = vsel %vm125, %v110, 0
    %129 = vmatprep.subr.mxu0 0.0
    %130 = vmatpush1.msra.mxu0 0.0
    %131 = vmatprep.subr.mxu0 0.0
    %132 = vmatpush1.msra.mxu0 0.0
    %133 = vmatprep.subr.mxu0 0.0
    %134 = vmatpush1.msra.mxu0 0.0
    %135 = vmatprep.subr.mxu0 0.0
    %136 = vmatpush1.msra.mxu0 0.0
    %137 = vmatprep.subr.mxu0 0.0
    %138 = vmatpush1.msra.mxu0 0.0
    %139 = vmatprep.subr.mxu0 0.0
    %140 = vmatpush1.msra.mxu0 0.0
    %141 = vmatprep.subr.mxu0 0.0
    %142 = vmatpush1.msra.mxu0 0.0
    %143 = vmatprep.subr.mxu0 0.0
    %144 = vmatpush1.msra.mxu0 0.0
    %145 = vmatprep.subr.mxu0 0.0
    %146 = vmatpush1.msra.mxu0 0.0
    %147 = vmatprep.subr.mxu0 0.0
    %148 = vmatpush1.msra.mxu0 0.0
    %149 = vmatprep.subr.mxu0 0.0
    %150 = vmatpush1.msra.mxu0 0.0
    %151 = vmatprep.subr.mxu0 0.0
    %152 = vmatpush1.msra.mxu0 0.0
    %153 = vmatprep.subr.mxu0 0.0
    %154 = vmatpush1.msra.mxu0 0.0
    %155 = vmatprep.subr.mxu0 0.0
    %156 = vmatpush1.msra.mxu0 0.0
    %157 = vmatprep.subr.mxu0 0.0
    %158 = vmatpush1.msra.mxu0 0.0
    %159 = vmatprep.subr.mxu0 0.0
    %160 = vmatpush1.msra.mxu0 %v127
    %161 = vmatprep.subr.mxu0 0.0
    %162 = vmatpush2.msra.mxu0 0.0
    %163 = vmatprep.subr.mxu0 0.0
    %164 = vmatpush2.msra.mxu0 0.0
    %165 = vmatprep.subr.mxu0 0.0
    %166 = vmatpush2.msra.mxu0 0.0
    %167 = vmatprep.subr.mxu0 0.0
    %168 = vmatpush2.msra.mxu0 0.0
    %169 = vmatprep.subr.mxu0 0.0
    %170 = vmatpush2.msra.mxu0 0.0
    %171 = vmatprep.subr.mxu0 0.0
    %172 = vmatpush2.msra.mxu0 0.0
    %173 = vmatprep.subr.mxu0 0.0
    %174 = vmatpush2.msra.mxu0 0.0
    %175 = vmatprep.subr.mxu0 0.0
    %176 = vmatpush2.msra.mxu0 0.0
    %177 = vmatprep.subr.mxu0 0.0
    %178 = vmatpush2.msra.mxu0 0.0
    %179 = vmatprep.subr.mxu0 0.0
    %180 = vmatpush2.msra.mxu0 0.0
    %181 = vmatprep.subr.mxu0 0.0
    %182 = vmatpush2.msra.mxu0 0.0
    %183 = vmatprep.subr.mxu0 0.0
    %184 = vmatpush2.msra.mxu0 0.0
    %185 = vmatprep.subr.mxu0 0.0
    %186 = vmatpush2.msra.mxu0 0.0
    %187 = vmatprep.subr.mxu0 0.0
    %188 = vmatpush2.msra.mxu0 0.0
    %189 = vmatprep.subr.mxu0 0.0
    %190 = vmatpush2.msra.mxu0 0.0
    %191 = vmatprep.subr.mxu0 0.0
    %192 = vmatpush2.msra.mxu0 0.0
    %193 = vmatprep.mubr.f32.mxu0 0.0
    %194 = vmatmul.mubr.f32.gmra.mxu0 %v120
    %v195 = vpop.f32.mrf.mxu0
    %v196 = vadd.f32 %v116, %v195
    %v197 = vpop.f32.mrf.mxu0
    %198 = vmatprep.mubr.f32.mxu0 0.0
    %199 = vmatmul.mubr.f32.gmra.mxu0 %v123
    %v200 = vpop.f32.mrf.mxu0
    %v201 = vadd.f32 %v116, %v200
    %v202 = vpop.f32.mrf.mxu0
    %203 = vdwg.mxu0
    %v204 = vld [vmem:[%s3] sm:$0xff]
    %v205 = vld [vmem:[%s3 + $0x8] sm:$0xff]
    %v206 = vld [vmem:[%s3 + $0x10] sm:$0xff]
    %v207 = vld [vmem:[%s3 + $0x18] sm:$0xff]
    %v208 = vld [vmem:[%s4] sm:$0x1]
    %v209 = vld [vmem:[%s5] sm:$0xff]
    %v210 = vld [vmem:[%s5 + $0x8] sm:$0xff]
    %v211 = vld [vmem:[%s5 + $0x10] sm:$0xff]
    %v212 = vld [vmem:[%s5 + $0x18] sm:$0xff]
    %v213 = vld [vmem:[#allocation7] sm:$0x1]
    %v214 = vld [vmem:[#allocation8] sm:$0x1]
    %v215 = vld [vmem:[%s8] sm:$0x1]
    %v216 = vld [vmem:[%s9] sm:$0xff]
    %v217 = vld [vmem:[%s9 + $0x8] sm:$0xff]
    %v218 = vld [vmem:[%s9 + $0x10] sm:$0xff]
    %v219 = vld [vmem:[%s9 + $0x18] sm:$0xff]
    %v220 = vld [vmem:[%s10] sm:$0x1]
    %v221 = vld [vmem:[%s11] sm:$0xff]
    %v222 = vld [vmem:[%s11 + $0x8] sm:$0xff]
    %v223 = vld [vmem:[%s11 + $0x10] sm:$0xff]
    %v224 = vld [vmem:[%s11 + $0x18] sm:$0xff]
    %v225 = vld [vmem:[%s11 + $0x20] sm:$0xff]
    %v226 = vld [vmem:[%s11 + $0x28] sm:$0xff]
    %v227 = vld [vmem:[%s11 + $0x30] sm:$0xff]
    %v228 = vld [vmem:[%s11 + $0x38] sm:$0xff]
    %v229 = vld [vmem:[%s12] sm:$0x1]
    %v230 = vld [vmem:[%s13] sm:$0x1]
    %v231 = vld [vmem:[%s14] sm:$0x1]
    %v233 = vlaneseq
    %v234 = vshrl.u32 %v233, 7
    %v235 = vsub.s32 0, %v234
    %v236 = vrot.slane %v208, %v235
    %vm238 = vcmask 261120
    %v240 = vsel %vm238, %v196, 0
    %v243 = vsel %vm238, %v201, 0
    %245 = vmatprep.subr.mxu0 0.0
    %246 = vmatpush1.msra.mxu0 0.0
    %247 = vmatprep.subr.mxu0 0.0
    %248 = vmatpush1.msra.mxu0 0.0
    %249 = vmatprep.subr.mxu0 0.0
    %250 = vmatpush1.msra.mxu0 0.0
    %251 = vmatprep.subr.mxu0 0.0
    %252 = vmatpush1.msra.mxu0 0.0
    %253 = vmatprep.subr.mxu0 0.0
    %254 = vmatpush1.msra.mxu0 0.0
    %255 = vmatprep.subr.mxu0 0.0
    %256 = vmatpush1.msra.mxu0 0.0
    %257 = vmatprep.subr.mxu0 0.0
    %258 = vmatpush1.msra.mxu0 0.0
    %259 = vmatprep.subr.mxu0 0.0
    %260 = vmatpush1.msra.mxu0 0.0
    %261 = vmatprep.subr.mxu0 0.0
    %262 = vmatpush1.msra.mxu0 0.0
    %263 = vmatprep.subr.mxu0 0.0
    %264 = vmatpush1.msra.mxu0 0.0
    %265 = vmatprep.subr.mxu0 0.0
    %266 = vmatpush1.msra.mxu0 0.0
    %267 = vmatprep.subr.mxu0 0.0
    %268 = vmatpush1.msra.mxu0 0.0
    %269 = vmatprep.subr.mxu0 0.0
    %270 = vmatpush1.msra.mxu0 %v207
    %271 = vmatprep.subr.mxu0 0.0
    %272 = vmatpush1.msra.mxu0 %v206
    %273 = vmatprep.subr.mxu0 0.0
    %274 = vmatpush1.msra.mxu0 %v205
    %275 = vmatprep.subr.mxu0 0.0
    %276 = vmatpush1.msra.mxu0 %v204
    %277 = vmatprep.subr.mxu0 0.0
    %278 = vmatpush2.msra.mxu0 0.0
    %279 = vmatprep.subr.mxu0 0.0
    %280 = vmatpush2.msra.mxu0 0.0
    %281 = vmatprep.subr.mxu0 0.0
    %282 = vmatpush2.msra.mxu0 0.0
    %283 = vmatprep.subr.mxu0 0.0
    %284 = vmatpush2.msra.mxu0 0.0
    %285 = vmatprep.subr.mxu0 0.0
    %286 = vmatpush2.msra.mxu0 0.0
    %287 = vmatprep.subr.mxu0 0.0
    %288 = vmatpush2.msra.mxu0 0.0
    %289 = vmatprep.subr.mxu0 0.0
    %290 = vmatpush2.msra.mxu0 0.0
    %291 = vmatprep.subr.mxu0 0.0
    %292 = vmatpush2.msra.mxu0 0.0
    %293 = vmatprep.subr.mxu0 0.0
    %294 = vmatpush2.msra.mxu0 0.0
    %295 = vmatprep.subr.mxu0 0.0
    %296 = vmatpush2.msra.mxu0 0.0
    %297 = vmatprep.subr.mxu0 0.0
    %298 = vmatpush2.msra.mxu0 0.0
    %299 = vmatprep.subr.mxu0 0.0
    %300 = vmatpush2.msra.mxu0 0.0
    %301 = vmatprep.subr.mxu0 0.0
    %302 = vmatpush2.msra.mxu0 0.0
    %303 = vmatprep.subr.mxu0 0.0
    %304 = vmatpush2.msra.mxu0 0.0
    %305 = vmatprep.subr.mxu0 0.0
    %306 = vmatpush2.msra.mxu0 0.0
    %307 = vmatprep.subr.mxu0 0.0
    %308 = vmatpush2.msra.mxu0 0.0
    %309 = vmatprep.mubr.f32.mxu0 0.0
    %310 = vmatmul.mubr.f32.gmra.mxu0 %v240
    %v311 = vpop.f32.mrf.mxu0
    %v312 = vadd.f32 %v236, %v311
    %v313 = vpop.f32.mrf.mxu0
    %314 = vmatprep.mubr.f32.mxu0 0.0
    %315 = vmatmul.mubr.f32.gmra.mxu0 %v243
    %v316 = vpop.f32.mrf.mxu0
    %v317 = vadd.f32 %v236, %v316
    %v318 = vpop.f32.mrf.mxu0
    %319 = vdwg.mxu0
    %322 = vrot.lane.b32.xlu0 %v312, 120
    %v323 = vpop.permute.xlu0 %322
    %324 = vrot.lane.b32.xlu0 %v317, 120
    %v325 = vpop.permute.xlu0 %324
    %326 = vrot.lane.b32.xlu0 %v312, 112
    %v327 = vpop.permute.xlu0 %326
    %328 = vrot.lane.b32.xlu0 %v317, 112
    %v329 = vpop.permute.xlu0 %328
    %330 = vrot.lane.b32.xlu0 %v312, 104
    %v331 = vpop.permute.xlu0 %330
    %332 = vrot.lane.b32.xlu0 %v317, 104
    %v333 = vpop.permute.xlu0 %332
    %334 = vrot.lane.b32.xlu0 %v312, 96
    %v335 = vpop.permute.xlu0 %334
    %vm336 = vcmask 64512
    %v337 = vsel %vm336, %v312, 0
    %v339 = vsel %vm336, %v335, 0
    %341 = vmatprep.subr.mxu0 0.0
    %342 = vmatpush1.xpose.msra.mxu0 0.0
    %343 = vmatprep.subr.mxu0 0.0
    %344 = vmatpush1.xpose.msra.mxu0 0.0
    %345 = vmatprep.subr.mxu0 0.0
    %346 = vmatpush1.xpose.msra.mxu0 0.0
    %347 = vmatprep.subr.mxu0 0.0
    %348 = vmatpush1.xpose.msra.mxu0 0.0
    %349 = vmatprep.subr.mxu0 0.0
    %350 = vmatpush1.xpose.msra.mxu0 0.0
    %351 = vmatprep.subr.mxu0 0.0
    %352 = vmatpush1.xpose.msra.mxu0 0.0
    %353 = vmatprep.subr.mxu0 0.0
    %354 = vmatpush1.xpose.msra.mxu0 0.0
    %355 = vmatprep.subr.mxu0 0.0
    %356 = vmatpush1.xpose.msra.mxu0 0.0
    %357 = vmatprep.subr.mxu0 0.0
    %358 = vmatpush1.xpose.msra.mxu0 0.0
    %359 = vmatprep.subr.mxu0 0.0
    %360 = vmatpush1.xpose.msra.mxu0 0.0
    %361 = vmatprep.subr.mxu0 0.0
    %362 = vmatpush1.xpose.msra.mxu0 0.0
    %363 = vmatprep.subr.mxu0 0.0
    %364 = vmatpush1.xpose.msra.mxu0 0.0
    %365 = vmatprep.subr.mxu0 0.0
    %366 = vmatpush1.xpose.msra.mxu0 0.0
    %367 = vmatprep.subr.mxu0 0.0
    %368 = vmatpush1.xpose.msra.mxu0 0.0
    %369 = vmatprep.subr.mxu0 0.0
    %370 = vmatpush1.xpose.msra.mxu0 0.0
    %371 = vmatprep.subr.mxu0 0.0
    %372 = vmatpush1.xpose.msra.mxu0 %v339
    %373 = vmatprep.subr.mxu0 0.0
    %374 = vmatpush2.xpose.msra.mxu0 0.0
    %375 = vmatprep.subr.mxu0 0.0
    %376 = vmatpush2.xpose.msra.mxu0 0.0
    %377 = vmatprep.subr.mxu0 0.0
    %378 = vmatpush2.xpose.msra.mxu0 0.0
    %379 = vmatprep.subr.mxu0 0.0
    %380 = vmatpush2.xpose.msra.mxu0 0.0
    %381 = vmatprep.subr.mxu0 0.0
    %382 = vmatpush2.xpose.msra.mxu0 0.0
    %383 = vmatprep.subr.mxu0 0.0
    %384 = vmatpush2.xpose.msra.mxu0 0.0
    %385 = vmatprep.subr.mxu0 0.0
    %386 = vmatpush2.xpose.msra.mxu0 0.0
    %387 = vmatprep.subr.mxu0 0.0
    %388 = vmatpush2.xpose.msra.mxu0 0.0
    %389 = vmatprep.subr.mxu0 0.0
    %390 = vmatpush2.xpose.msra.mxu0 0.0
    %391 = vmatprep.subr.mxu0 0.0
    %392 = vmatpush2.xpose.msra.mxu0 0.0
    %393 = vmatprep.subr.mxu0 0.0
    %394 = vmatpush2.xpose.msra.mxu0 0.0
    %395 = vmatprep.subr.mxu0 0.0
    %396 = vmatpush2.xpose.msra.mxu0 0.0
    %397 = vmatprep.subr.mxu0 0.0
    %398 = vmatpush2.xpose.msra.mxu0 0.0
    %399 = vmatprep.subr.mxu0 0.0
    %400 = vmatpush2.xpose.msra.mxu0 0.0
    %401 = vmatprep.subr.mxu0 0.0
    %402 = vmatpush2.xpose.msra.mxu0 0.0
    %403 = vmatprep.subr.mxu0 0.0
    %404 = vmatpush2.xpose.msra.mxu0 0.0
    %405 = vmatprep.mubr.f32.mxu0 0.0
    %406 = vmatmul.mubr.f32.gmra.mxu0 %v337
    %v407 = vpop.f32.mrf.mxu0
    %v408 = vadd.f32 0.0, %v407
    %v409 = vpop.f32.mrf.mxu0
    %410 = vdwg.mxu0
    %411 = vrot.lane.b32.xlu0 %v317, 96
    %v412 = vpop.permute.xlu0 %411
    %v413 = vsel %vm336, %v317, 0
    %v415 = vsel %vm336, %v412, 0
    %417 = vmatprep.subr.mxu0 0.0
    %418 = vmatpush1.xpose.msra.mxu0 0.0
    %419 = vmatprep.subr.mxu0 0.0
    %420 = vmatpush1.xpose.msra.mxu0 0.0
    %421 = vmatprep.subr.mxu0 0.0
    %422 = vmatpush1.xpose.msra.mxu0 0.0
    %423 = vmatprep.subr.mxu0 0.0
    %424 = vmatpush1.xpose.msra.mxu0 0.0
    %425 = vmatprep.subr.mxu0 0.0
    %426 = vmatpush1.xpose.msra.mxu0 0.0
    %427 = vmatprep.subr.mxu0 0.0
    %428 = vmatpush1.xpose.msra.mxu0 0.0
    %429 = vmatprep.subr.mxu0 0.0
    %430 = vmatpush1.xpose.msra.mxu0 0.0
    %431 = vmatprep.subr.mxu0 0.0
    %432 = vmatpush1.xpose.msra.mxu0 0.0
    %433 = vmatprep.subr.mxu0 0.0
    %434 = vmatpush1.xpose.msra.mxu0 0.0
    %435 = vmatprep.subr.mxu0 0.0
    %436 = vmatpush1.xpose.msra.mxu0 0.0
    %437 = vmatprep.subr.mxu0 0.0
    %438 = vmatpush1.xpose.msra.mxu0 0.0
    %439 = vmatprep.subr.mxu0 0.0
    %440 = vmatpush1.xpose.msra.mxu0 0.0
    %441 = vmatprep.subr.mxu0 0.0
    %442 = vmatpush1.xpose.msra.mxu0 0.0
    %443 = vmatprep.subr.mxu0 0.0
    %444 = vmatpush1.xpose.msra.mxu0 0.0
    %445 = vmatprep.subr.mxu0 0.0
    %446 = vmatpush1.xpose.msra.mxu0 0.0
    %447 = vmatprep.subr.mxu0 0.0
    %448 = vmatpush1.xpose.msra.mxu0 %v415
    %449 = vmatprep.subr.mxu0 0.0
    %450 = vmatpush2.xpose.msra.mxu0 0.0
    %451 = vmatprep.subr.mxu0 0.0
    %452 = vmatpush2.xpose.msra.mxu0 0.0
    %453 = vmatprep.subr.mxu0 0.0
    %454 = vmatpush2.xpose.msra.mxu0 0.0
    %455 = vmatprep.subr.mxu0 0.0
    %456 = vmatpush2.xpose.msra.mxu0 0.0
    %457 = vmatprep.subr.mxu0 0.0
    %458 = vmatpush2.xpose.msra.mxu0 0.0
    %459 = vmatprep.subr.mxu0 0.0
    %460 = vmatpush2.xpose.msra.mxu0 0.0
    %461 = vmatprep.subr.mxu0 0.0
    %462 = vmatpush2.xpose.msra.mxu0 0.0
    %463 = vmatprep.subr.mxu0 0.0
    %464 = vmatpush2.xpose.msra.mxu0 0.0
    %465 = vmatprep.subr.mxu0 0.0
    %466 = vmatpush2.xpose.msra.mxu0 0.0
    %467 = vmatprep.subr.mxu0 0.0
    %468 = vmatpush2.xpose.msra.mxu0 0.0
    %469 = vmatprep.subr.mxu0 0.0
    %470 = vmatpush2.xpose.msra.mxu0 0.0
    %471 = vmatprep.subr.mxu0 0.0
    %472 = vmatpush2.xpose.msra.mxu0 0.0
    %473 = vmatprep.subr.mxu0 0.0
    %474 = vmatpush2.xpose.msra.mxu0 0.0
    %475 = vmatprep.subr.mxu0 0.0
    %476 = vmatpush2.xpose.msra.mxu0 0.0
    %477 = vmatprep.subr.mxu0 0.0
    %478 = vmatpush2.xpose.msra.mxu0 0.0
    %479 = vmatprep.subr.mxu0 0.0
    %480 = vmatpush2.xpose.msra.mxu0 0.0
    %481 = vmatprep.mubr.f32.mxu0 0.0
    %482 = vmatmul.mubr.f32.gmra.mxu0 %v413
    %v483 = vpop.f32.mrf.mxu0
    %v484 = vadd.f32 0.0, %v483
    %v485 = vpop.f32.mrf.mxu0
    %486 = vdwg.mxu0
    %487 = vrot.lane.b32.xlu0 %v323, 96
    %v488 = vpop.permute.xlu0 %487
    %v489 = vsel %vm336, %v323, 0
    %v491 = vsel %vm336, %v488, 0
    %493 = vmatprep.subr.mxu0 0.0
    %494 = vmatpush1.xpose.msra.mxu0 0.0
    %495 = vmatprep.subr.mxu0 0.0
    %496 = vmatpush1.xpose.msra.mxu0 0.0
    %497 = vmatprep.subr.mxu0 0.0
    %498 = vmatpush1.xpose.msra.mxu0 0.0
    %499 = vmatprep.subr.mxu0 0.0
    %500 = vmatpush1.xpose.msra.mxu0 0.0
    %501 = vmatprep.subr.mxu0 0.0
    %502 = vmatpush1.xpose.msra.mxu0 0.0
    %503 = vmatprep.subr.mxu0 0.0
    %504 = vmatpush1.xpose.msra.mxu0 0.0
    %505 = vmatprep.subr.mxu0 0.0
    %506 = vmatpush1.xpose.msra.mxu0 0.0
    %507 = vmatprep.subr.mxu0 0.0
    %508 = vmatpush1.xpose.msra.mxu0 0.0
    %509 = vmatprep.subr.mxu0 0.0
    %510 = vmatpush1.xpose.msra.mxu0 0.0
    %511 = vmatprep.subr.mxu0 0.0
    %512 = vmatpush1.xpose.msra.mxu0 0.0
    %513 = vmatprep.subr.mxu0 0.0
    %514 = vmatpush1.xpose.msra.mxu0 0.0
    %515 = vmatprep.subr.mxu0 0.0
    %516 = vmatpush1.xpose.msra.mxu0 0.0
    %517 = vmatprep.subr.mxu0 0.0
    %518 = vmatpush1.xpose.msra.mxu0 0.0
    %519 = vmatprep.subr.mxu0 0.0
    %520 = vmatpush1.xpose.msra.mxu0 0.0
    %521 = vmatprep.subr.mxu0 0.0
    %522 = vmatpush1.xpose.msra.mxu0 0.0
    %523 = vmatprep.subr.mxu0 0.0
    %524 = vmatpush1.xpose.msra.mxu0 %v491
    %525 = vmatprep.subr.mxu0 0.0
    %526 = vmatpush2.xpose.msra.mxu0 0.0
    %527 = vmatprep.subr.mxu0 0.0
    %528 = vmatpush2.xpose.msra.mxu0 0.0
    %529 = vmatprep.subr.mxu0 0.0
    %530 = vmatpush2.xpose.msra.mxu0 0.0
    %531 = vmatprep.subr.mxu0 0.0
    %532 = vmatpush2.xpose.msra.mxu0 0.0
    %533 = vmatprep.subr.mxu0 0.0
    %534 = vmatpush2.xpose.msra.mxu0 0.0
    %535 = vmatprep.subr.mxu0 0.0
    %536 = vmatpush2.xpose.msra.mxu0 0.0
    %537 = vmatprep.subr.mxu0 0.0
    %538 = vmatpush2.xpose.msra.mxu0 0.0
    %539 = vmatprep.subr.mxu0 0.0
    %540 = vmatpush2.xpose.msra.mxu0 0.0
    %541 = vmatprep.subr.mxu0 0.0
    %542 = vmatpush2.xpose.msra.mxu0 0.0
    %543 = vmatprep.subr.mxu0 0.0
    %544 = vmatpush2.xpose.msra.mxu0 0.0
    %545 = vmatprep.subr.mxu0 0.0
    %546 = vmatpush2.xpose.msra.mxu0 0.0
    %547 = vmatprep.subr.mxu0 0.0
    %548 = vmatpush2.xpose.msra.mxu0 0.0
    %549 = vmatprep.subr.mxu0 0.0
    %550 = vmatpush2.xpose.msra.mxu0 0.0
    %551 = vmatprep.subr.mxu0 0.0
    %552 = vmatpush2.xpose.msra.mxu0 0.0
    %553 = vmatprep.subr.mxu0 0.0
    %554 = vmatpush2.xpose.msra.mxu0 0.0
    %555 = vmatprep.subr.mxu0 0.0
    %556 = vmatpush2.xpose.msra.mxu0 0.0
    %557 = vmatprep.mubr.f32.mxu0 0.0
    %558 = vmatmul.mubr.f32.gmra.mxu0 %v489
    %v559 = vpop.f32.mrf.mxu0
    %v560 = vadd.f32 0.0, %v559
    %v561 = vpop.f32.mrf.mxu0
    %562 = vdwg.mxu0
    %563 = vrot.lane.b32.xlu0 %v325, 96
    %v564 = vpop.permute.xlu0 %563
    %v565 = vsel %vm336, %v325, 0
    %v567 = vsel %vm336, %v564, 0
    %569 = vmatprep.subr.mxu0 0.0
    %570 = vmatpush1.xpose.msra.mxu0 0.0
    %571 = vmatprep.subr.mxu0 0.0
    %572 = vmatpush1.xpose.msra.mxu0 0.0
    %573 = vmatprep.subr.mxu0 0.0
    %574 = vmatpush1.xpose.msra.mxu0 0.0
    %575 = vmatprep.subr.mxu0 0.0
    %576 = vmatpush1.xpose.msra.mxu0 0.0
    %577 = vmatprep.subr.mxu0 0.0
    %578 = vmatpush1.xpose.msra.mxu0 0.0
    %579 = vmatprep.subr.mxu0 0.0
    %580 = vmatpush1.xpose.msra.mxu0 0.0
    %581 = vmatprep.subr.mxu0 0.0
    %582 = vmatpush1.xpose.msra.mxu0 0.0
    %583 = vmatprep.subr.mxu0 0.0
    %584 = vmatpush1.xpose.msra.mxu0 0.0
    %585 = vmatprep.subr.mxu0 0.0
    %586 = vmatpush1.xpose.msra.mxu0 0.0
    %587 = vmatprep.subr.mxu0 0.0
    %588 = vmatpush1.xpose.msra.mxu0 0.0
    %589 = vmatprep.subr.mxu0 0.0
    %590 = vmatpush1.xpose.msra.mxu0 0.0
    %591 = vmatprep.subr.mxu0 0.0
    %592 = vmatpush1.xpose.msra.mxu0 0.0
    %593 = vmatprep.subr.mxu0 0.0
    %594 = vmatpush1.xpose.msra.mxu0 0.0
    %595 = vmatprep.subr.mxu0 0.0
    %596 = vmatpush1.xpose.msra.mxu0 0.0
    %597 = vmatprep.subr.mxu0 0.0
    %598 = vmatpush1.xpose.msra.mxu0 0.0
    %599 = vmatprep.subr.mxu0 0.0
    %600 = vmatpush1.xpose.msra.mxu0 %v567
    %601 = vmatprep.subr.mxu0 0.0
    %602 = vmatpush2.xpose.msra.mxu0 0.0
    %603 = vmatprep.subr.mxu0 0.0
    %604 = vmatpush2.xpose.msra.mxu0 0.0
    %605 = vmatprep.subr.mxu0 0.0
    %606 = vmatpush2.xpose.msra.mxu0 0.0
    %607 = vmatprep.subr.mxu0 0.0
    %608 = vmatpush2.xpose.msra.mxu0 0.0
    %609 = vmatprep.subr.mxu0 0.0
    %610 = vmatpush2.xpose.msra.mxu0 0.0
    %611 = vmatprep.subr.mxu0 0.0
    %612 = vmatpush2.xpose.msra.mxu0 0.0
    %613 = vmatprep.subr.mxu0 0.0
    %614 = vmatpush2.xpose.msra.mxu0 0.0
    %615 = vmatprep.subr.mxu0 0.0
    %616 = vmatpush2.xpose.msra.mxu0 0.0
    %617 = vmatprep.subr.mxu0 0.0
    %618 = vmatpush2.xpose.msra.mxu0 0.0
    %619 = vmatprep.subr.mxu0 0.0
    %620 = vmatpush2.xpose.msra.mxu0 0.0
    %621 = vmatprep.subr.mxu0 0.0
    %622 = vmatpush2.xpose.msra.mxu0 0.0
    %623 = vmatprep.subr.mxu0 0.0
    %624 = vmatpush2.xpose.msra.mxu0 0.0
    %625 = vmatprep.subr.mxu0 0.0
    %626 = vmatpush2.xpose.msra.mxu0 0.0
    %627 = vmatprep.subr.mxu0 0.0
    %628 = vmatpush2.xpose.msra.mxu0 0.0
    %629 = vmatprep.subr.mxu0 0.0
    %630 = vmatpush2.xpose.msra.mxu0 0.0
    %631 = vmatprep.subr.mxu0 0.0
    %632 = vmatpush2.xpose.msra.mxu0 0.0
    %633 = vmatprep.mubr.f32.mxu0 0.0
    %634 = vmatmul.mubr.f32.gmra.mxu0 %v565
    %v635 = vpop.f32.mrf.mxu0
    %v636 = vadd.f32 0.0, %v635
    %v637 = vpop.f32.mrf.mxu0
    %638 = vdwg.mxu0
    %639 = vrot.lane.b32.xlu0 %v327, 96
    %v640 = vpop.permute.xlu0 %639
    %v641 = vsel %vm336, %v327, 0
    %v643 = vsel %vm336, %v640, 0
    %645 = vmatprep.subr.mxu0 0.0
    %646 = vmatpush1.xpose.msra.mxu0 0.0
    %647 = vmatprep.subr.mxu0 0.0
    %648 = vmatpush1.xpose.msra.mxu0 0.0
    %649 = vmatprep.subr.mxu0 0.0
    %650 = vmatpush1.xpose.msra.mxu0 0.0
    %651 = vmatprep.subr.mxu0 0.0
    %652 = vmatpush1.xpose.msra.mxu0 0.0
    %653 = vmatprep.subr.mxu0 0.0
    %654 = vmatpush1.xpose.msra.mxu0 0.0
    %655 = vmatprep.subr.mxu0 0.0
    %656 = vmatpush1.xpose.msra.mxu0 0.0
    %657 = vmatprep.subr.mxu0 0.0
    %658 = vmatpush1.xpose.msra.mxu0 0.0
    %659 = vmatprep.subr.mxu0 0.0
    %660 = vmatpush1.xpose.msra.mxu0 0.0
    %661 = vmatprep.subr.mxu0 0.0
    %662 = vmatpush1.xpose.msra.mxu0 0.0
    %663 = vmatprep.subr.mxu0 0.0
    %664 = vmatpush1.xpose.msra.mxu0 0.0
    %665 = vmatprep.subr.mxu0 0.0
    %666 = vmatpush1.xpose.msra.mxu0 0.0
    %667 = vmatprep.subr.mxu0 0.0
    %668 = vmatpush1.xpose.msra.mxu0 0.0
    %669 = vmatprep.subr.mxu0 0.0
    %670 = vmatpush1.xpose.msra.mxu0 0.0
    %671 = vmatprep.subr.mxu0 0.0
    %672 = vmatpush1.xpose.msra.mxu0 0.0
    %673 = vmatprep.subr.mxu0 0.0
    %674 = vmatpush1.xpose.msra.mxu0 0.0
    %675 = vmatprep.subr.mxu0 0.0
    %676 = vmatpush1.xpose.msra.mxu0 %v643
    %677 = vmatprep.subr.mxu0 0.0
    %678 = vmatpush2.xpose.msra.mxu0 0.0
    %679 = vmatprep.subr.mxu0 0.0
    %680 = vmatpush2.xpose.msra.mxu0 0.0
    %681 = vmatprep.subr.mxu0 0.0
    %682 = vmatpush2.xpose.msra.mxu0 0.0
    %683 = vmatprep.subr.mxu0 0.0
    %684 = vmatpush2.xpose.msra.mxu0 0.0
    %685 = vmatprep.subr.mxu0 0.0
    %686 = vmatpush2.xpose.msra.mxu0 0.0
    %687 = vmatprep.subr.mxu0 0.0
    %688 = vmatpush2.xpose.msra.mxu0 0.0
    %689 = vmatprep.subr.mxu0 0.0
    %690 = vmatpush2.xpose.msra.mxu0 0.0
    %691 = vmatprep.subr.mxu0 0.0
    %692 = vmatpush2.xpose.msra.mxu0 0.0
    %693 = vmatprep.subr.mxu0 0.0
    %694 = vmatpush2.xpose.msra.mxu0 0.0
    %695 = vmatprep.subr.mxu0 0.0
    %696 = vmatpush2.xpose.msra.mxu0 0.0
    %697 = vmatprep.subr.mxu0 0.0
    %698 = vmatpush2.xpose.msra.mxu0 0.0
    %699 = vmatprep.subr.mxu0 0.0
    %700 = vmatpush2.xpose.msra.mxu0 0.0
    %701 = vmatprep.subr.mxu0 0.0
    %702 = vmatpush2.xpose.msra.mxu0 0.0
    %703 = vmatprep.subr.mxu0 0.0
    %704 = vmatpush2.xpose.msra.mxu0 0.0
    %705 = vmatprep.subr.mxu0 0.0
    %706 = vmatpush2.xpose.msra.mxu0 0.0
    %707 = vmatprep.subr.mxu0 0.0
    %708 = vmatpush2.xpose.msra.mxu0 0.0
    %709 = vmatprep.mubr.f32.mxu0 0.0
    %710 = vmatmul.mubr.f32.gmra.mxu0 %v641
    %v711 = vpop.f32.mrf.mxu0
    %v712 = vadd.f32 0.0, %v711
    %v713 = vpop.f32.mrf.mxu0
    %714 = vdwg.mxu0
    %715 = vrot.lane.b32.xlu0 %v329, 96
    %v716 = vpop.permute.xlu0 %715
    %v717 = vsel %vm336, %v329, 0
    %v719 = vsel %vm336, %v716, 0
    %721 = vmatprep.subr.mxu0 0.0
    %722 = vmatpush1.xpose.msra.mxu0 0.0
    %723 = vmatprep.subr.mxu0 0.0
    %724 = vmatpush1.xpose.msra.mxu0 0.0
    %725 = vmatprep.subr.mxu0 0.0
    %726 = vmatpush1.xpose.msra.mxu0 0.0
    %727 = vmatprep.subr.mxu0 0.0
    %728 = vmatpush1.xpose.msra.mxu0 0.0
    %729 = vmatprep.subr.mxu0 0.0
    %730 = vmatpush1.xpose.msra.mxu0 0.0
    %731 = vmatprep.subr.mxu0 0.0
    %732 = vmatpush1.xpose.msra.mxu0 0.0
    %733 = vmatprep.subr.mxu0 0.0
    %734 = vmatpush1.xpose.msra.mxu0 0.0
    %735 = vmatprep.subr.mxu0 0.0
    %736 = vmatpush1.xpose.msra.mxu0 0.0
    %737 = vmatprep.subr.mxu0 0.0
    %738 = vmatpush1.xpose.msra.mxu0 0.0
    %739 = vmatprep.subr.mxu0 0.0
    %740 = vmatpush1.xpose.msra.mxu0 0.0
    %741 = vmatprep.subr.mxu0 0.0
    %742 = vmatpush1.xpose.msra.mxu0 0.0
    %743 = vmatprep.subr.mxu0 0.0
    %744 = vmatpush1.xpose.msra.mxu0 0.0
    %745 = vmatprep.subr.mxu0 0.0
    %746 = vmatpush1.xpose.msra.mxu0 0.0
    %747 = vmatprep.subr.mxu0 0.0
    %748 = vmatpush1.xpose.msra.mxu0 0.0
    %749 = vmatprep.subr.mxu0 0.0
    %750 = vmatpush1.xpose.msra.mxu0 0.0
    %751 = vmatprep.subr.mxu0 0.0
    %752 = vmatpush1.xpose.msra.mxu0 %v719
    %753 = vmatprep.subr.mxu0 0.0
    %754 = vmatpush2.xpose.msra.mxu0 0.0
    %755 = vmatprep.subr.mxu0 0.0
    %756 = vmatpush2.xpose.msra.mxu0 0.0
    %757 = vmatprep.subr.mxu0 0.0
    %758 = vmatpush2.xpose.msra.mxu0 0.0
    %759 = vmatprep.subr.mxu0 0.0
    %760 = vmatpush2.xpose.msra.mxu0 0.0
    %761 = vmatprep.subr.mxu0 0.0
    %762 = vmatpush2.xpose.msra.mxu0 0.0
    %763 = vmatprep.subr.mxu0 0.0
    %764 = vmatpush2.xpose.msra.mxu0 0.0
    %765 = vmatprep.subr.mxu0 0.0
    %766 = vmatpush2.xpose.msra.mxu0 0.0
    %767 = vmatprep.subr.mxu0 0.0
    %768 = vmatpush2.xpose.msra.mxu0 0.0
    %769 = vmatprep.subr.mxu0 0.0
    %770 = vmatpush2.xpose.msra.mxu0 0.0
    %771 = vmatprep.subr.mxu0 0.0
    %772 = vmatpush2.xpose.msra.mxu0 0.0
    %773 = vmatprep.subr.mxu0 0.0
    %774 = vmatpush2.xpose.msra.mxu0 0.0
    %775 = vmatprep.subr.mxu0 0.0
    %776 = vmatpush2.xpose.msra.mxu0 0.0
    %777 = vmatprep.subr.mxu0 0.0
    %778 = vmatpush2.xpose.msra.mxu0 0.0
    %779 = vmatprep.subr.mxu0 0.0
    %780 = vmatpush2.xpose.msra.mxu0 0.0
    %781 = vmatprep.subr.mxu0 0.0
    %782 = vmatpush2.xpose.msra.mxu0 0.0
    %783 = vmatprep.subr.mxu0 0.0
    %784 = vmatpush2.xpose.msra.mxu0 0.0
    %785 = vmatprep.mubr.f32.mxu0 0.0
    %786 = vmatmul.mubr.f32.gmra.mxu0 %v717
    %v787 = vpop.f32.mrf.mxu0
    %v788 = vadd.f32 0.0, %v787
    %v789 = vpop.f32.mrf.mxu0
    %790 = vdwg.mxu0
    %791 = vrot.lane.b32.xlu0 %v331, 96
    %v792 = vpop.permute.xlu0 %791
    %v793 = vsel %vm336, %v331, 0
    %v795 = vsel %vm336, %v792, 0
    %797 = vmatprep.subr.mxu0 0.0
    %798 = vmatpush1.xpose.msra.mxu0 0.0
    %799 = vmatprep.subr.mxu0 0.0
    %800 = vmatpush1.xpose.msra.mxu0 0.0
    %801 = vmatprep.subr.mxu0 0.0
    %802 = vmatpush1.xpose.msra.mxu0 0.0
    %803 = vmatprep.subr.mxu0 0.0
    %804 = vmatpush1.xpose.msra.mxu0 0.0
    %805 = vmatprep.subr.mxu0 0.0
    %806 = vmatpush1.xpose.msra.mxu0 0.0
    %807 = vmatprep.subr.mxu0 0.0
    %808 = vmatpush1.xpose.msra.mxu0 0.0
    %809 = vmatprep.subr.mxu0 0.0
    %810 = vmatpush1.xpose.msra.mxu0 0.0
    %811 = vmatprep.subr.mxu0 0.0
    %812 = vmatpush1.xpose.msra.mxu0 0.0
    %813 = vmatprep.subr.mxu0 0.0
    %814 = vmatpush1.xpose.msra.mxu0 0.0
    %815 = vmatprep.subr.mxu0 0.0
    %816 = vmatpush1.xpose.msra.mxu0 0.0
    %817 = vmatprep.subr.mxu0 0.0
    %818 = vmatpush1.xpose.msra.mxu0 0.0
    %819 = vmatprep.subr.mxu0 0.0
    %820 = vmatpush1.xpose.msra.mxu0 0.0
    %821 = vmatprep.subr.mxu0 0.0
    %822 = vmatpush1.xpose.msra.mxu0 0.0
    %823 = vmatprep.subr.mxu0 0.0
    %824 = vmatpush1.xpose.msra.mxu0 0.0
    %825 = vmatprep.subr.mxu0 0.0
    %826 = vmatpush1.xpose.msra.mxu0 0.0
    %827 = vmatprep.subr.mxu0 0.0
    %828 = vmatpush1.xpose.msra.mxu0 %v795
    %829 = vmatprep.subr.mxu0 0.0
    %830 = vmatpush2.xpose.msra.mxu0 0.0
    %831 = vmatprep.subr.mxu0 0.0
    %832 = vmatpush2.xpose.msra.mxu0 0.0
    %833 = vmatprep.subr.mxu0 0.0
    %834 = vmatpush2.xpose.msra.mxu0 0.0
    %835 = vmatprep.subr.mxu0 0.0
    %836 = vmatpush2.xpose.msra.mxu0 0.0
    %837 = vmatprep.subr.mxu0 0.0
    %838 = vmatpush2.xpose.msra.mxu0 0.0
    %839 = vmatprep.subr.mxu0 0.0
    %840 = vmatpush2.xpose.msra.mxu0 0.0
    %841 = vmatprep.subr.mxu0 0.0
    %842 = vmatpush2.xpose.msra.mxu0 0.0
    %843 = vmatprep.subr.mxu0 0.0
    %844 = vmatpush2.xpose.msra.mxu0 0.0
    %845 = vmatprep.subr.mxu0 0.0
    %846 = vmatpush2.xpose.msra.mxu0 0.0
    %847 = vmatprep.subr.mxu0 0.0
    %848 = vmatpush2.xpose.msra.mxu0 0.0
    %849 = vmatprep.subr.mxu0 0.0
    %850 = vmatpush2.xpose.msra.mxu0 0.0
    %851 = vmatprep.subr.mxu0 0.0
    %852 = vmatpush2.xpose.msra.mxu0 0.0
    %853 = vmatprep.subr.mxu0 0.0
    %854 = vmatpush2.xpose.msra.mxu0 0.0
    %855 = vmatprep.subr.mxu0 0.0
    %856 = vmatpush2.xpose.msra.mxu0 0.0
    %857 = vmatprep.subr.mxu0 0.0
    %858 = vmatpush2.xpose.msra.mxu0 0.0
    %859 = vmatprep.subr.mxu0 0.0
    %860 = vmatpush2.xpose.msra.mxu0 0.0
    %861 = vmatprep.mubr.f32.mxu0 0.0
    %862 = vmatmul.mubr.f32.gmra.mxu0 %v793
    %v863 = vpop.f32.mrf.mxu0
    %v864 = vadd.f32 0.0, %v863
    %v865 = vpop.f32.mrf.mxu0
    %866 = vdwg.mxu0
    %867 = vrot.lane.b32.xlu0 %v333, 96
    %v868 = vpop.permute.xlu0 %867
    %v869 = vsel %vm336, %v333, 0
    %v871 = vsel %vm336, %v868, 0
    %873 = vmatprep.subr.mxu0 0.0
    %874 = vmatpush1.xpose.msra.mxu0 0.0
    %875 = vmatprep.subr.mxu0 0.0
    %876 = vmatpush1.xpose.msra.mxu0 0.0
    %877 = vmatprep.subr.mxu0 0.0
    %878 = vmatpush1.xpose.msra.mxu0 0.0
    %879 = vmatprep.subr.mxu0 0.0
    %880 = vmatpush1.xpose.msra.mxu0 0.0
    %881 = vmatprep.subr.mxu0 0.0
    %882 = vmatpush1.xpose.msra.mxu0 0.0
    %883 = vmatprep.subr.mxu0 0.0
    %884 = vmatpush1.xpose.msra.mxu0 0.0
    %885 = vmatprep.subr.mxu0 0.0
    %886 = vmatpush1.xpose.msra.mxu0 0.0
    %887 = vmatprep.subr.mxu0 0.0
    %888 = vmatpush1.xpose.msra.mxu0 0.0
    %889 = vmatprep.subr.mxu0 0.0
    %890 = vmatpush1.xpose.msra.mxu0 0.0
    %891 = vmatprep.subr.mxu0 0.0
    %892 = vmatpush1.xpose.msra.mxu0 0.0
    %893 = vmatprep.subr.mxu0 0.0
    %894 = vmatpush1.xpose.msra.mxu0 0.0
    %895 = vmatprep.subr.mxu0 0.0
    %896 = vmatpush1.xpose.msra.mxu0 0.0
    %897 = vmatprep.subr.mxu0 0.0
    %898 = vmatpush1.xpose.msra.mxu0 0.0
    %899 = vmatprep.subr.mxu0 0.0
    %900 = vmatpush1.xpose.msra.mxu0 0.0
    %901 = vmatprep.subr.mxu0 0.0
    %902 = vmatpush1.xpose.msra.mxu0 0.0
    %903 = vmatprep.subr.mxu0 0.0
    %904 = vmatpush1.xpose.msra.mxu0 %v871
    %905 = vmatprep.subr.mxu0 0.0
    %906 = vmatpush2.xpose.msra.mxu0 0.0
    %907 = vmatprep.subr.mxu0 0.0
    %908 = vmatpush2.xpose.msra.mxu0 0.0
    %909 = vmatprep.subr.mxu0 0.0
    %910 = vmatpush2.xpose.msra.mxu0 0.0
    %911 = vmatprep.subr.mxu0 0.0
    %912 = vmatpush2.xpose.msra.mxu0 0.0
    %913 = vmatprep.subr.mxu0 0.0
    %914 = vmatpush2.xpose.msra.mxu0 0.0
    %915 = vmatprep.subr.mxu0 0.0
    %916 = vmatpush2.xpose.msra.mxu0 0.0
    %917 = vmatprep.subr.mxu0 0.0
    %918 = vmatpush2.xpose.msra.mxu0 0.0
    %919 = vmatprep.subr.mxu0 0.0
    %920 = vmatpush2.xpose.msra.mxu0 0.0
    %921 = vmatprep.subr.mxu0 0.0
    %922 = vmatpush2.xpose.msra.mxu0 0.0
    %923 = vmatprep.subr.mxu0 0.0
    %924 = vmatpush2.xpose.msra.mxu0 0.0
    %925 = vmatprep.subr.mxu0 0.0
    %926 = vmatpush2.xpose.msra.mxu0 0.0
    %927 = vmatprep.subr.mxu0 0.0
    %928 = vmatpush2.xpose.msra.mxu0 0.0
    %929 = vmatprep.subr.mxu0 0.0
    %930 = vmatpush2.xpose.msra.mxu0 0.0
    %931 = vmatprep.subr.mxu0 0.0
    %932 = vmatpush2.xpose.msra.mxu0 0.0
    %933 = vmatprep.subr.mxu0 0.0
    %934 = vmatpush2.xpose.msra.mxu0 0.0
    %935 = vmatprep.subr.mxu0 0.0
    %936 = vmatpush2.xpose.msra.mxu0 0.0
    %937 = vmatprep.mubr.f32.mxu0 0.0
    %938 = vmatmul.mubr.f32.gmra.mxu0 %v869
    %v939 = vpop.f32.mrf.mxu0
    %v940 = vadd.f32 0.0, %v939
    %v941 = vpop.f32.mrf.mxu0
    %942 = vdwg.mxu0
    %v943 = vmul.f32 %v408, 0.35355338
    %v944 = vmul.f32 %v484, 0.35355338
    %v945 = vmul.f32 %v560, 0.35355338
    %v946 = vmul.f32 %v636, 0.35355338
    %v947 = vmul.f32 %v712, 0.35355338
    %v948 = vmul.f32 %v788, 0.35355338
    %v949 = vmul.f32 %v864, 0.35355338
    %v950 = vmul.f32 %v940, 0.35355338
    %v951 = vsel %vm336, %v943, -inf
    %952 = vmax.xlane.f32.xlu0 %v951
    %v953 = vpop.xlane.xlu0 %952
    %v954 = vsel %vm336, %v944, -inf
    %955 = vmax.xlane.f32.xlu0 %v954
    %v956 = vpop.xlane.xlu0 %955
    %v957 = vsel %vm336, %v945, -inf
    %958 = vmax.xlane.f32.xlu0 %v957
    %v959 = vpop.xlane.xlu0 %958
    %v960 = vsel %vm336, %v946, -inf
    %961 = vmax.xlane.f32.xlu0 %v960
    %v962 = vpop.xlane.xlu0 %961
    %v963 = vsel %vm336, %v947, -inf
    %964 = vmax.xlane.f32.xlu0 %v963
    %v965 = vpop.xlane.xlu0 %964
    %v966 = vsel %vm336, %v948, -inf
    %967 = vmax.xlane.f32.xlu0 %v966
    %v968 = vpop.xlane.xlu0 %967
    %v969 = vsel %vm336, %v949, -inf
    %970 = vmax.xlane.f32.xlu0 %v969
    %v971 = vpop.xlane.xlu0 %970
    %v972 = vsel %vm336, %v950, -inf
    %973 = vmax.xlane.f32.xlu0 %v972
    %v974 = vpop.xlane.xlu0 %973
    %v975 = vsub.f32 %v943, %v953
    %v976 = vsub.f32 %v944, %v956
    %v977 = vsub.f32 %v945, %v959
    %v978 = vsub.f32 %v946, %v962
    %v979 = vsub.f32 %v947, %v965
    %v980 = vsub.f32 %v948, %v968
    %v981 = vsub.f32 %v949, %v971
    %v982 = vsub.f32 %v950, %v974
    %v983 = vmul.f32 %v975, 1.442695
    %v984 = vpow.pop %v983
    %v985 = vmul.f32 %v976, 1.442695
    %v986 = vpow.pop %v985
    %v987 = vmul.f32 %v977, 1.442695
    %v988 = vpow.pop %v987
    %v989 = vmul.f32 %v978, 1.442695
    %v990 = vpow.pop %v989
    %v991 = vmul.f32 %v979, 1.442695
    %v992 = vpow.pop %v991
    %v993 = vmul.f32 %v980, 1.442695
    %v994 = vpow.pop %v993
    %v995 = vmul.f32 %v981, 1.442695
    %v996 = vpow.pop %v995
    %v997 = vmul.f32 %v982, 1.442695
    %v998 = vpow.pop %v997
    %v999 = vsel %vm336, %v984, 0.0
    %1000 = vadd.xlane.f32.xlu0 %v999
    %v1001 = vpop.xlane.xlu0 %1000
    %v1002 = vsel %vm336, %v986, 0.0
    %1003 = vadd.xlane.f32.xlu0 %v1002
    %v1004 = vpop.xlane.xlu0 %1003
    %v1005 = vsel %vm336, %v988, 0.0
    %1006 = vadd.xlane.f32.xlu0 %v1005
    %v1007 = vpop.xlane.xlu0 %1006
    %v1008 = vsel %vm336, %v990, 0.0
    %1009 = vadd.xlane.f32.xlu0 %v1008
    %v1010 = vpop.xlane.xlu0 %1009
    %v1011 = vsel %vm336, %v992, 0.0
    %1012 = vadd.xlane.f32.xlu0 %v1011
    %v1013 = vpop.xlane.xlu0 %1012
    %v1014 = vsel %vm336, %v994, 0.0
    %1015 = vadd.xlane.f32.xlu0 %v1014
    %v1016 = vpop.xlane.xlu0 %1015
    %v1017 = vsel %vm336, %v996, 0.0
    %1018 = vadd.xlane.f32.xlu0 %v1017
    %v1019 = vpop.xlane.xlu0 %1018
    %v1020 = vsel %vm336, %v998, 0.0
    %1021 = vadd.xlane.f32.xlu0 %v1020
    %v1022 = vpop.xlane.xlu0 %1021
    %v1023 = vrcp.pop %v1001
    %v1024 = vrcp.pop %v1004
    %v1025 = vrcp.pop %v1007
    %v1026 = vrcp.pop %v1010
    %v1027 = vrcp.pop %v1013
    %v1028 = vrcp.pop %v1016
    %v1029 = vrcp.pop %v1019
    %v1030 = vrcp.pop %v1022
    %v1031 = vmul.f32 %v984, %v1023
    %v1032 = vmul.f32 %v986, %v1024
    %v1033 = vmul.f32 %v988, %v1025
    %v1034 = vmul.f32 %v990, %v1026
    %v1035 = vmul.f32 %v992, %v1027
    %v1036 = vmul.f32 %v994, %v1028
    %v1037 = vmul.f32 %v996, %v1029
    %v1038 = vmul.f32 %v998, %v1030
    %1039 = vrot.lane.b32.xlu0 %v312, 64
    %v1040 = vpop.permute.xlu0 %1039
    %v1043 = vsel %vm336, %v1031, 0
    %1045 = vmatprep.subr.mxu0 0.0
    %1046 = vmatpush1.msra.mxu0 0.0
    %1047 = vmatprep.subr.mxu0 0.0
    %1048 = vmatpush1.msra.mxu0 0.0
    %1049 = vmatprep.subr.mxu0 0.0
    %1050 = vmatpush1.msra.mxu0 0.0
    %1051 = vmatprep.subr.mxu0 0.0
    %1052 = vmatpush1.msra.mxu0 0.0
    %1053 = vmatprep.subr.mxu0 0.0
    %1054 = vmatpush1.msra.mxu0 0.0
    %1055 = vmatprep.subr.mxu0 0.0
    %1056 = vmatpush1.msra.mxu0 0.0
    %1057 = vmatprep.subr.mxu0 0.0
    %1058 = vmatpush1.msra.mxu0 0.0
    %1059 = vmatprep.subr.mxu0 0.0
    %1060 = vmatpush1.msra.mxu0 0.0
    %1061 = vmatprep.subr.mxu0 0.0
    %1062 = vmatpush1.msra.mxu0 0.0
    %1063 = vmatprep.subr.mxu0 0.0
    %1064 = vmatpush1.msra.mxu0 0.0
    %1065 = vmatprep.subr.mxu0 0.0
    %1066 = vmatpush1.msra.mxu0 0.0
    %1067 = vmatprep.subr.mxu0 0.0
    %1068 = vmatpush1.msra.mxu0 0.0
    %1069 = vmatprep.subr.mxu0 0.0
    %1070 = vmatpush1.msra.mxu0 0.0
    %1071 = vmatprep.subr.mxu0 0.0
    %1072 = vmatpush1.msra.mxu0 0.0
    %1073 = vmatprep.subr.mxu0 0.0
    %1074 = vmatpush1.msra.mxu0 0.0
    %1075 = vmatprep.subr.mxu0 0.0
    %1076 = vmatpush1.msra.mxu0 %v1040
    %1077 = vmatprep.subr.mxu0 0.0
    %1078 = vmatpush2.msra.mxu0 0.0
    %1079 = vmatprep.subr.mxu0 0.0
    %1080 = vmatpush2.msra.mxu0 0.0
    %1081 = vmatprep.subr.mxu0 0.0
    %1082 = vmatpush2.msra.mxu0 0.0
    %1083 = vmatprep.subr.mxu0 0.0
    %1084 = vmatpush2.msra.mxu0 0.0
    %1085 = vmatprep.subr.mxu0 0.0
    %1086 = vmatpush2.msra.mxu0 0.0
    %1087 = vmatprep.subr.mxu0 0.0
    %1088 = vmatpush2.msra.mxu0 0.0
    %1089 = vmatprep.subr.mxu0 0.0
    %1090 = vmatpush2.msra.mxu0 0.0
    %1091 = vmatprep.subr.mxu0 0.0
    %1092 = vmatpush2.msra.mxu0 0.0
    %1093 = vmatprep.subr.mxu0 0.0
    %1094 = vmatpush2.msra.mxu0 0.0
    %1095 = vmatprep.subr.mxu0 0.0
    %1096 = vmatpush2.msra.mxu0 0.0
    %1097 = vmatprep.subr.mxu0 0.0
    %1098 = vmatpush2.msra.mxu0 0.0
    %1099 = vmatprep.subr.mxu0 0.0
    %1100 = vmatpush2.msra.mxu0 0.0
    %1101 = vmatprep.subr.mxu0 0.0
    %1102 = vmatpush2.msra.mxu0 0.0
    %1103 = vmatprep.subr.mxu0 0.0
    %1104 = vmatpush2.msra.mxu0 0.0
    %1105 = vmatprep.subr.mxu0 0.0
    %1106 = vmatpush2.msra.mxu0 0.0
    %1107 = vmatprep.subr.mxu0 0.0
    %1108 = vmatpush2.msra.mxu0 0.0
    %1109 = vmatprep.mubr.f32.mxu0 0.0
    %1110 = vmatmul.mubr.f32.gmra.mxu0 %v1043
    %v1111 = vpop.f32.mrf.mxu0
    %v1112 = vadd.f32 0.0, %v1111
    %v1113 = vpop.f32.mrf.mxu0
    %1114 = vdwg.mxu0
    %1115 = vrot.lane.b32.xlu0 %v317, 64
    %v1116 = vpop.permute.xlu0 %1115
    %v1119 = vsel %vm336, %v1032, 0
    %1121 = vmatprep.subr.mxu0 0.0
    %1122 = vmatpush1.msra.mxu0 0.0
    %1123 = vmatprep.subr.mxu0 0.0
    %1124 = vmatpush1.msra.mxu0 0.0
    %1125 = vmatprep.subr.mxu0 0.0
    %1126 = vmatpush1.msra.mxu0 0.0
    %1127 = vmatprep.subr.mxu0 0.0
    %1128 = vmatpush1.msra.mxu0 0.0
    %1129 = vmatprep.subr.mxu0 0.0
    %1130 = vmatpush1.msra.mxu0 0.0
    %1131 = vmatprep.subr.mxu0 0.0
    %1132 = vmatpush1.msra.mxu0 0.0
    %1133 = vmatprep.subr.mxu0 0.0
    %1134 = vmatpush1.msra.mxu0 0.0
    %1135 = vmatprep.subr.mxu0 0.0
    %1136 = vmatpush1.msra.mxu0 0.0
    %1137 = vmatprep.subr.mxu0 0.0
    %1138 = vmatpush1.msra.mxu0 0.0
    %1139 = vmatprep.subr.mxu0 0.0
    %1140 = vmatpush1.msra.mxu0 0.0
    %1141 = vmatprep.subr.mxu0 0.0
    %1142 = vmatpush1.msra.mxu0 0.0
    %1143 = vmatprep.subr.mxu0 0.0
    %1144 = vmatpush1.msra.mxu0 0.0
    %1145 = vmatprep.subr.mxu0 0.0
    %1146 = vmatpush1.msra.mxu0 0.0
    %1147 = vmatprep.subr.mxu0 0.0
    %1148 = vmatpush1.msra.mxu0 0.0
    %1149 = vmatprep.subr.mxu0 0.0
    %1150 = vmatpush1.msra.mxu0 0.0
    %1151 = vmatprep.subr.mxu0 0.0
    %1152 = vmatpush1.msra.mxu0 %v1116
    %1153 = vmatprep.subr.mxu0 0.0
    %1154 = vmatpush2.msra.mxu0 0.0
    %1155 = vmatprep.subr.mxu0 0.0
    %1156 = vmatpush2.msra.mxu0 0.0
    %1157 = vmatprep.subr.mxu0 0.0
    %1158 = vmatpush2.msra.mxu0 0.0
    %1159 = vmatprep.subr.mxu0 0.0
    %1160 = vmatpush2.msra.mxu0 0.0
    %1161 = vmatprep.subr.mxu0 0.0
    %1162 = vmatpush2.msra.mxu0 0.0
    %1163 = vmatprep.subr.mxu0 0.0
    %1164 = vmatpush2.msra.mxu0 0.0
    %1165 = vmatprep.subr.mxu0 0.0
    %1166 = vmatpush2.msra.mxu0 0.0
    %1167 = vmatprep.subr.mxu0 0.0
    %1168 = vmatpush2.msra.mxu0 0.0
    %1169 = vmatprep.subr.mxu0 0.0
    %1170 = vmatpush2.msra.mxu0 0.0
    %1171 = vmatprep.subr.mxu0 0.0
    %1172 = vmatpush2.msra.mxu0 0.0
    %1173 = vmatprep.subr.mxu0 0.0
    %1174 = vmatpush2.msra.mxu0 0.0
    %1175 = vmatprep.subr.mxu0 0.0
    %1176 = vmatpush2.msra.mxu0 0.0
    %1177 = vmatprep.subr.mxu0 0.0
    %1178 = vmatpush2.msra.mxu0 0.0
    %1179 = vmatprep.subr.mxu0 0.0
    %1180 = vmatpush2.msra.mxu0 0.0
    %1181 = vmatprep.subr.mxu0 0.0
    %1182 = vmatpush2.msra.mxu0 0.0
    %1183 = vmatprep.subr.mxu0 0.0
    %1184 = vmatpush2.msra.mxu0 0.0
    %1185 = vmatprep.mubr.f32.mxu0 0.0
    %1186 = vmatmul.mubr.f32.gmra.mxu0 %v1119
    %v1187 = vpop.f32.mrf.mxu0
    %v1188 = vadd.f32 0.0, %v1187
    %v1189 = vpop.f32.mrf.mxu0
    %1190 = vdwg.mxu0
    %1191 = vrot.lane.b32.xlu0 %v323, 64
    %v1192 = vpop.permute.xlu0 %1191
    %v1195 = vsel %vm336, %v1033, 0
    %1197 = vmatprep.subr.mxu0 0.0
    %1198 = vmatpush1.msra.mxu0 0.0
    %1199 = vmatprep.subr.mxu0 0.0
    %1200 = vmatpush1.msra.mxu0 0.0
    %1201 = vmatprep.subr.mxu0 0.0
    %1202 = vmatpush1.msra.mxu0 0.0
    %1203 = vmatprep.subr.mxu0 0.0
    %1204 = vmatpush1.msra.mxu0 0.0
    %1205 = vmatprep.subr.mxu0 0.0
    %1206 = vmatpush1.msra.mxu0 0.0
    %1207 = vmatprep.subr.mxu0 0.0
    %1208 = vmatpush1.msra.mxu0 0.0
    %1209 = vmatprep.subr.mxu0 0.0
    %1210 = vmatpush1.msra.mxu0 0.0
    %1211 = vmatprep.subr.mxu0 0.0
    %1212 = vmatpush1.msra.mxu0 0.0
    %1213 = vmatprep.subr.mxu0 0.0
    %1214 = vmatpush1.msra.mxu0 0.0
    %1215 = vmatprep.subr.mxu0 0.0
    %1216 = vmatpush1.msra.mxu0 0.0
    %1217 = vmatprep.subr.mxu0 0.0
    %1218 = vmatpush1.msra.mxu0 0.0
    %1219 = vmatprep.subr.mxu0 0.0
    %1220 = vmatpush1.msra.mxu0 0.0
    %1221 = vmatprep.subr.mxu0 0.0
    %1222 = vmatpush1.msra.mxu0 0.0
    %1223 = vmatprep.subr.mxu0 0.0
    %1224 = vmatpush1.msra.mxu0 0.0
    %1225 = vmatprep.subr.mxu0 0.0
    %1226 = vmatpush1.msra.mxu0 0.0
    %1227 = vmatprep.subr.mxu0 0.0
    %1228 = vmatpush1.msra.mxu0 %v1192
    %1229 = vmatprep.subr.mxu0 0.0
    %1230 = vmatpush2.msra.mxu0 0.0
    %1231 = vmatprep.subr.mxu0 0.0
    %1232 = vmatpush2.msra.mxu0 0.0
    %1233 = vmatprep.subr.mxu0 0.0
    %1234 = vmatpush2.msra.mxu0 0.0
    %1235 = vmatprep.subr.mxu0 0.0
    %1236 = vmatpush2.msra.mxu0 0.0
    %1237 = vmatprep.subr.mxu0 0.0
    %1238 = vmatpush2.msra.mxu0 0.0
    %1239 = vmatprep.subr.mxu0 0.0
    %1240 = vmatpush2.msra.mxu0 0.0
    %1241 = vmatprep.subr.mxu0 0.0
    %1242 = vmatpush2.msra.mxu0 0.0
    %1243 = vmatprep.subr.mxu0 0.0
    %1244 = vmatpush2.msra.mxu0 0.0
    %1245 = vmatprep.subr.mxu0 0.0
    %1246 = vmatpush2.msra.mxu0 0.0
    %1247 = vmatprep.subr.mxu0 0.0
    %1248 = vmatpush2.msra.mxu0 0.0
    %1249 = vmatprep.subr.mxu0 0.0
    %1250 = vmatpush2.msra.mxu0 0.0
    %1251 = vmatprep.subr.mxu0 0.0
    %1252 = vmatpush2.msra.mxu0 0.0
    %1253 = vmatprep.subr.mxu0 0.0
    %1254 = vmatpush2.msra.mxu0 0.0
    %1255 = vmatprep.subr.mxu0 0.0
    %1256 = vmatpush2.msra.mxu0 0.0
    %1257 = vmatprep.subr.mxu0 0.0
    %1258 = vmatpush2.msra.mxu0 0.0
    %1259 = vmatprep.subr.mxu0 0.0
    %1260 = vmatpush2.msra.mxu0 0.0
    %1261 = vmatprep.mubr.f32.mxu0 0.0
    %1262 = vmatmul.mubr.f32.gmra.mxu0 %v1195
    %v1263 = vpop.f32.mrf.mxu0
    %v1264 = vadd.f32 0.0, %v1263
    %v1265 = vpop.f32.mrf.mxu0
    %1266 = vdwg.mxu0
    %1267 = vrot.lane.b32.xlu0 %v325, 64
    %v1268 = vpop.permute.xlu0 %1267
    %v1271 = vsel %vm336, %v1034, 0
    %1273 = vmatprep.subr.mxu0 0.0
    %1274 = vmatpush1.msra.mxu0 0.0
    %1275 = vmatprep.subr.mxu0 0.0
    %1276 = vmatpush1.msra.mxu0 0.0
    %1277 = vmatprep.subr.mxu0 0.0
    %1278 = vmatpush1.msra.mxu0 0.0
    %1279 = vmatprep.subr.mxu0 0.0
    %1280 = vmatpush1.msra.mxu0 0.0
    %1281 = vmatprep.subr.mxu0 0.0
    %1282 = vmatpush1.msra.mxu0 0.0
    %1283 = vmatprep.subr.mxu0 0.0
    %1284 = vmatpush1.msra.mxu0 0.0
    %1285 = vmatprep.subr.mxu0 0.0
    %1286 = vmatpush1.msra.mxu0 0.0
    %1287 = vmatprep.subr.mxu0 0.0
    %1288 = vmatpush1.msra.mxu0 0.0
    %1289 = vmatprep.subr.mxu0 0.0
    %1290 = vmatpush1.msra.mxu0 0.0
    %1291 = vmatprep.subr.mxu0 0.0
    %1292 = vmatpush1.msra.mxu0 0.0
    %1293 = vmatprep.subr.mxu0 0.0
    %1294 = vmatpush1.msra.mxu0 0.0
    %1295 = vmatprep.subr.mxu0 0.0
    %1296 = vmatpush1.msra.mxu0 0.0
    %1297 = vmatprep.subr.mxu0 0.0
    %1298 = vmatpush1.msra.mxu0 0.0
    %1299 = vmatprep.subr.mxu0 0.0
    %1300 = vmatpush1.msra.mxu0 0.0
    %1301 = vmatprep.subr.mxu0 0.0
    %1302 = vmatpush1.msra.mxu0 0.0
    %1303 = vmatprep.subr.mxu0 0.0
    %1304 = vmatpush1.msra.mxu0 %v1268
    %1305 = vmatprep.subr.mxu0 0.0
    %1306 = vmatpush2.msra.mxu0 0.0
    %1307 = vmatprep.subr.mxu0 0.0
    %1308 = vmatpush2.msra.mxu0 0.0
    %1309 = vmatprep.subr.mxu0 0.0
    %1310 = vmatpush2.msra.mxu0 0.0
    %1311 = vmatprep.subr.mxu0 0.0
    %1312 = vmatpush2.msra.mxu0 0.0
    %1313 = vmatprep.subr.mxu0 0.0
    %1314 = vmatpush2.msra.mxu0 0.0
    %1315 = vmatprep.subr.mxu0 0.0
    %1316 = vmatpush2.msra.mxu0 0.0
    %1317 = vmatprep.subr.mxu0 0.0
    %1318 = vmatpush2.msra.mxu0 0.0
    %1319 = vmatprep.subr.mxu0 0.0
    %1320 = vmatpush2.msra.mxu0 0.0
    %1321 = vmatprep.subr.mxu0 0.0
    %1322 = vmatpush2.msra.mxu0 0.0
    %1323 = vmatprep.subr.mxu0 0.0
    %1324 = vmatpush2.msra.mxu0 0.0
    %1325 = vmatprep.subr.mxu0 0.0
    %1326 = vmatpush2.msra.mxu0 0.0
    %1327 = vmatprep.subr.mxu0 0.0
    %1328 = vmatpush2.msra.mxu0 0.0
    %1329 = vmatprep.subr.mxu0 0.0
    %1330 = vmatpush2.msra.mxu0 0.0
    %1331 = vmatprep.subr.mxu0 0.0
    %1332 = vmatpush2.msra.mxu0 0.0
    %1333 = vmatprep.subr.mxu0 0.0
    %1334 = vmatpush2.msra.mxu0 0.0
    %1335 = vmatprep.subr.mxu0 0.0
    %1336 = vmatpush2.msra.mxu0 0.0
    %1337 = vmatprep.mubr.f32.mxu0 0.0
    %1338 = vmatmul.mubr.f32.gmra.mxu0 %v1271
    %v1339 = vpop.f32.mrf.mxu0
    %v1340 = vadd.f32 0.0, %v1339
    %v1341 = vpop.f32.mrf.mxu0
    %1342 = vdwg.mxu0
    %1343 = vrot.lane.b32.xlu0 %v327, 64
    %v1344 = vpop.permute.xlu0 %1343
    %v1347 = vsel %vm336, %v1035, 0
    %1349 = vmatprep.subr.mxu0 0.0
    %1350 = vmatpush1.msra.mxu0 0.0
    %1351 = vmatprep.subr.mxu0 0.0
    %1352 = vmatpush1.msra.mxu0 0.0
    %1353 = vmatprep.subr.mxu0 0.0
    %1354 = vmatpush1.msra.mxu0 0.0
    %1355 = vmatprep.subr.mxu0 0.0
    %1356 = vmatpush1.msra.mxu0 0.0
    %1357 = vmatprep.subr.mxu0 0.0
    %1358 = vmatpush1.msra.mxu0 0.0
    %1359 = vmatprep.subr.mxu0 0.0
    %1360 = vmatpush1.msra.mxu0 0.0
    %1361 = vmatprep.subr.mxu0 0.0
    %1362 = vmatpush1.msra.mxu0 0.0
    %1363 = vmatprep.subr.mxu0 0.0
    %1364 = vmatpush1.msra.mxu0 0.0
    %1365 = vmatprep.subr.mxu0 0.0
    %1366 = vmatpush1.msra.mxu0 0.0
    %1367 = vmatprep.subr.mxu0 0.0
    %1368 = vmatpush1.msra.mxu0 0.0
    %1369 = vmatprep.subr.mxu0 0.0
    %1370 = vmatpush1.msra.mxu0 0.0
    %1371 = vmatprep.subr.mxu0 0.0
    %1372 = vmatpush1.msra.mxu0 0.0
    %1373 = vmatprep.subr.mxu0 0.0
    %1374 = vmatpush1.msra.mxu0 0.0
    %1375 = vmatprep.subr.mxu0 0.0
    %1376 = vmatpush1.msra.mxu0 0.0
    %1377 = vmatprep.subr.mxu0 0.0
    %1378 = vmatpush1.msra.mxu0 0.0
    %1379 = vmatprep.subr.mxu0 0.0
    %1380 = vmatpush1.msra.mxu0 %v1344
    %1381 = vmatprep.subr.mxu0 0.0
    %1382 = vmatpush2.msra.mxu0 0.0
    %1383 = vmatprep.subr.mxu0 0.0
    %1384 = vmatpush2.msra.mxu0 0.0
    %1385 = vmatprep.subr.mxu0 0.0
    %1386 = vmatpush2.msra.mxu0 0.0
    %1387 = vmatprep.subr.mxu0 0.0
    %1388 = vmatpush2.msra.mxu0 0.0
    %1389 = vmatprep.subr.mxu0 0.0
    %1390 = vmatpush2.msra.mxu0 0.0
    %1391 = vmatprep.subr.mxu0 0.0
    %1392 = vmatpush2.msra.mxu0 0.0
    %1393 = vmatprep.subr.mxu0 0.0
    %1394 = vmatpush2.msra.mxu0 0.0
    %1395 = vmatprep.subr.mxu0 0.0
    %1396 = vmatpush2.msra.mxu0 0.0
    %1397 = vmatprep.subr.mxu0 0.0
    %1398 = vmatpush2.msra.mxu0 0.0
    %1399 = vmatprep.subr.mxu0 0.0
    %1400 = vmatpush2.msra.mxu0 0.0
    %1401 = vmatprep.subr.mxu0 0.0
    %1402 = vmatpush2.msra.mxu0 0.0
    %1403 = vmatprep.subr.mxu0 0.0
    %1404 = vmatpush2.msra.mxu0 0.0
    %1405 = vmatprep.subr.mxu0 0.0
    %1406 = vmatpush2.msra.mxu0 0.0
    %1407 = vmatprep.subr.mxu0 0.0
    %1408 = vmatpush2.msra.mxu0 0.0
    %1409 = vmatprep.subr.mxu0 0.0
    %1410 = vmatpush2.msra.mxu0 0.0
    %1411 = vmatprep.subr.mxu0 0.0
    %1412 = vmatpush2.msra.mxu0 0.0
    %1413 = vmatprep.mubr.f32.mxu0 0.0
    %1414 = vmatmul.mubr.f32.gmra.mxu0 %v1347
    %v1415 = vpop.f32.mrf.mxu0
    %v1416 = vadd.f32 0.0, %v1415
    %v1417 = vpop.f32.mrf.mxu0
    %1418 = vdwg.mxu0
    %1419 = vrot.lane.b32.xlu0 %v329, 64
    %v1420 = vpop.permute.xlu0 %1419
    %v1423 = vsel %vm336, %v1036, 0
    %1425 = vmatprep.subr.mxu0 0.0
    %1426 = vmatpush1.msra.mxu0 0.0
    %1427 = vmatprep.subr.mxu0 0.0
    %1428 = vmatpush1.msra.mxu0 0.0
    %1429 = vmatprep.subr.mxu0 0.0
    %1430 = vmatpush1.msra.mxu0 0.0
    %1431 = vmatprep.subr.mxu0 0.0
    %1432 = vmatpush1.msra.mxu0 0.0
    %1433 = vmatprep.subr.mxu0 0.0
    %1434 = vmatpush1.msra.mxu0 0.0
    %1435 = vmatprep.subr.mxu0 0.0
    %1436 = vmatpush1.msra.mxu0 0.0
    %1437 = vmatprep.subr.mxu0 0.0
    %1438 = vmatpush1.msra.mxu0 0.0
    %1439 = vmatprep.subr.mxu0 0.0
    %1440 = vmatpush1.msra.mxu0 0.0
    %1441 = vmatprep.subr.mxu0 0.0
    %1442 = vmatpush1.msra.mxu0 0.0
    %1443 = vmatprep.subr.mxu0 0.0
    %1444 = vmatpush1.msra.mxu0 0.0
    %1445 = vmatprep.subr.mxu0 0.0
    %1446 = vmatpush1.msra.mxu0 0.0
    %1447 = vmatprep.subr.mxu0 0.0
    %1448 = vmatpush1.msra.mxu0 0.0
    %1449 = vmatprep.subr.mxu0 0.0
    %1450 = vmatpush1.msra.mxu0 0.0
    %1451 = vmatprep.subr.mxu0 0.0
    %1452 = vmatpush1.msra.mxu0 0.0
    %1453 = vmatprep.subr.mxu0 0.0
    %1454 = vmatpush1.msra.mxu0 0.0
    %1455 = vmatprep.subr.mxu0 0.0
    %1456 = vmatpush1.msra.mxu0 %v1420
    %1457 = vmatprep.subr.mxu0 0.0
    %1458 = vmatpush2.msra.mxu0 0.0
    %1459 = vmatprep.subr.mxu0 0.0
    %1460 = vmatpush2.msra.mxu0 0.0
    %1461 = vmatprep.subr.mxu0 0.0
    %1462 = vmatpush2.msra.mxu0 0.0
    %1463 = vmatprep.subr.mxu0 0.0
    %1464 = vmatpush2.msra.mxu0 0.0
    %1465 = vmatprep.subr.mxu0 0.0
    %1466 = vmatpush2.msra.mxu0 0.0
    %1467 = vmatprep.subr.mxu0 0.0
    %1468 = vmatpush2.msra.mxu0 0.0
    %1469 = vmatprep.subr.mxu0 0.0
    %1470 = vmatpush2.msra.mxu0 0.0
    %1471 = vmatprep.subr.mxu0 0.0
    %1472 = vmatpush2.msra.mxu0 0.0
    %1473 = vmatprep.subr.mxu0 0.0
    %1474 = vmatpush2.msra.mxu0 0.0
    %1475 = vmatprep.subr.mxu0 0.0
    %1476 = vmatpush2.msra.mxu0 0.0
    %1477 = vmatprep.subr.mxu0 0.0
    %1478 = vmatpush2.msra.mxu0 0.0
    %1479 = vmatprep.subr.mxu0 0.0
    %1480 = vmatpush2.msra.mxu0 0.0
    %1481 = vmatprep.subr.mxu0 0.0
    %1482 = vmatpush2.msra.mxu0 0.0
    %1483 = vmatprep.subr.mxu0 0.0
    %1484 = vmatpush2.msra.mxu0 0.0
    %1485 = vmatprep.subr.mxu0 0.0
    %1486 = vmatpush2.msra.mxu0 0.0
    %1487 = vmatprep.subr.mxu0 0.0
    %1488 = vmatpush2.msra.mxu0 0.0
    %1489 = vmatprep.mubr.f32.mxu0 0.0
    %1490 = vmatmul.mubr.f32.gmra.mxu0 %v1423
    %v1491 = vpop.f32.mrf.mxu0
    %v1492 = vadd.f32 0.0, %v1491
    %v1493 = vpop.f32.mrf.mxu0
    %1494 = vdwg.mxu0
    %1495 = vrot.lane.b32.xlu0 %v331, 64
    %v1496 = vpop.permute.xlu0 %1495
    %v1499 = vsel %vm336, %v1037, 0
    %1501 = vmatprep.subr.mxu0 0.0
    %1502 = vmatpush1.msra.mxu0 0.0
    %1503 = vmatprep.subr.mxu0 0.0
    %1504 = vmatpush1.msra.mxu0 0.0
    %1505 = vmatprep.subr.mxu0 0.0
    %1506 = vmatpush1.msra.mxu0 0.0
    %1507 = vmatprep.subr.mxu0 0.0
    %1508 = vmatpush1.msra.mxu0 0.0
    %1509 = vmatprep.subr.mxu0 0.0
    %1510 = vmatpush1.msra.mxu0 0.0
    %1511 = vmatprep.subr.mxu0 0.0
    %1512 = vmatpush1.msra.mxu0 0.0
    %1513 = vmatprep.subr.mxu0 0.0
    %1514 = vmatpush1.msra.mxu0 0.0
    %1515 = vmatprep.subr.mxu0 0.0
    %1516 = vmatpush1.msra.mxu0 0.0
    %1517 = vmatprep.subr.mxu0 0.0
    %1518 = vmatpush1.msra.mxu0 0.0
    %1519 = vmatprep.subr.mxu0 0.0
    %1520 = vmatpush1.msra.mxu0 0.0
    %1521 = vmatprep.subr.mxu0 0.0
    %1522 = vmatpush1.msra.mxu0 0.0
    %1523 = vmatprep.subr.mxu0 0.0
    %1524 = vmatpush1.msra.mxu0 0.0
    %1525 = vmatprep.subr.mxu0 0.0
    %1526 = vmatpush1.msra.mxu0 0.0
    %1527 = vmatprep.subr.mxu0 0.0
    %1528 = vmatpush1.msra.mxu0 0.0
    %1529 = vmatprep.subr.mxu0 0.0
    %1530 = vmatpush1.msra.mxu0 0.0
    %1531 = vmatprep.subr.mxu0 0.0
    %1532 = vmatpush1.msra.mxu0 %v1496
    %1533 = vmatprep.subr.mxu0 0.0
    %1534 = vmatpush2.msra.mxu0 0.0
    %1535 = vmatprep.subr.mxu0 0.0
    %1536 = vmatpush2.msra.mxu0 0.0
    %1537 = vmatprep.subr.mxu0 0.0
    %1538 = vmatpush2.msra.mxu0 0.0
    %1539 = vmatprep.subr.mxu0 0.0
    %1540 = vmatpush2.msra.mxu0 0.0
    %1541 = vmatprep.subr.mxu0 0.0
    %1542 = vmatpush2.msra.mxu0 0.0
    %1543 = vmatprep.subr.mxu0 0.0
    %1544 = vmatpush2.msra.mxu0 0.0
    %1545 = vmatprep.subr.mxu0 0.0
    %1546 = vmatpush2.msra.mxu0 0.0
    %1547 = vmatprep.subr.mxu0 0.0
    %1548 = vmatpush2.msra.mxu0 0.0
    %1549 = vmatprep.subr.mxu0 0.0
    %1550 = vmatpush2.msra.mxu0 0.0
    %1551 = vmatprep.subr.mxu0 0.0
    %1552 = vmatpush2.msra.mxu0 0.0
    %1553 = vmatprep.subr.mxu0 0.0
    %1554 = vmatpush2.msra.mxu0 0.0
    %1555 = vmatprep.subr.mxu0 0.0
    %1556 = vmatpush2.msra.mxu0 0.0
    %1557 = vmatprep.subr.mxu0 0.0
    %1558 = vmatpush2.msra.mxu0 0.0
    %1559 = vmatprep.subr.mxu0 0.0
    %1560 = vmatpush2.msra.mxu0 0.0
    %1561 = vmatprep.subr.mxu0 0.0
    %1562 = vmatpush2.msra.mxu0 0.0
    %1563 = vmatprep.subr.mxu0 0.0
    %1564 = vmatpush2.msra.mxu0 0.0
    %1565 = vmatprep.mubr.f32.mxu0 0.0
    %1566 = vmatmul.mubr.f32.gmra.mxu0 %v1499
    %v1567 = vpop.f32.mrf.mxu0
    %v1568 = vadd.f32 0.0, %v1567
    %v1569 = vpop.f32.mrf.mxu0
    %1570 = vdwg.mxu0
    %1571 = vrot.lane.b32.xlu0 %v333, 64
    %v1572 = vpop.permute.xlu0 %1571
    %v1575 = vsel %vm336, %v1038, 0
    %1577 = vmatprep.subr.mxu0 0.0
    %1578 = vmatpush1.msra.mxu0 0.0
    %1579 = vmatprep.subr.mxu0 0.0
    %1580 = vmatpush1.msra.mxu0 0.0
    %1581 = vmatprep.subr.mxu0 0.0
    %1582 = vmatpush1.msra.mxu0 0.0
    %1583 = vmatprep.subr.mxu0 0.0
    %1584 = vmatpush1.msra.mxu0 0.0
    %1585 = vmatprep.subr.mxu0 0.0
    %1586 = vmatpush1.msra.mxu0 0.0
    %1587 = vmatprep.subr.mxu0 0.0
    %1588 = vmatpush1.msra.mxu0 0.0
    %1589 = vmatprep.subr.mxu0 0.0
    %1590 = vmatpush1.msra.mxu0 0.0
    %1591 = vmatprep.subr.mxu0 0.0
    %1592 = vmatpush1.msra.mxu0 0.0
    %1593 = vmatprep.subr.mxu0 0.0
    %1594 = vmatpush1.msra.mxu0 0.0
    %1595 = vmatprep.subr.mxu0 0.0
    %1596 = vmatpush1.msra.mxu0 0.0
    %1597 = vmatprep.subr.mxu0 0.0
    %1598 = vmatpush1.msra.mxu0 0.0
    %1599 = vmatprep.subr.mxu0 0.0
    %1600 = vmatpush1.msra.mxu0 0.0
    %1601 = vmatprep.subr.mxu0 0.0
    %1602 = vmatpush1.msra.mxu0 0.0
    %1603 = vmatprep.subr.mxu0 0.0
    %1604 = vmatpush1.msra.mxu0 0.0
    %1605 = vmatprep.subr.mxu0 0.0
    %1606 = vmatpush1.msra.mxu0 0.0
    %1607 = vmatprep.subr.mxu0 0.0
    %1608 = vmatpush1.msra.mxu0 %v1572
    %1609 = vmatprep.subr.mxu0 0.0
    %1610 = vmatpush2.msra.mxu0 0.0
    %1611 = vmatprep.subr.mxu0 0.0
    %1612 = vmatpush2.msra.mxu0 0.0
    %1613 = vmatprep.subr.mxu0 0.0
    %1614 = vmatpush2.msra.mxu0 0.0
    %1615 = vmatprep.subr.mxu0 0.0
    %1616 = vmatpush2.msra.mxu0 0.0
    %1617 = vmatprep.subr.mxu0 0.0
    %1618 = vmatpush2.msra.mxu0 0.0
    %1619 = vmatprep.subr.mxu0 0.0
    %1620 = vmatpush2.msra.mxu0 0.0
    %1621 = vmatprep.subr.mxu0 0.0
    %1622 = vmatpush2.msra.mxu0 0.0
    %1623 = vmatprep.subr.mxu0 0.0
    %1624 = vmatpush2.msra.mxu0 0.0
    %1625 = vmatprep.subr.mxu0 0.0
    %1626 = vmatpush2.msra.mxu0 0.0
    %1627 = vmatprep.subr.mxu0 0.0
    %1628 = vmatpush2.msra.mxu0 0.0
    %1629 = vmatprep.subr.mxu0 0.0
    %1630 = vmatpush2.msra.mxu0 0.0
    %1631 = vmatprep.subr.mxu0 0.0
    %1632 = vmatpush2.msra.mxu0 0.0
    %1633 = vmatprep.subr.mxu0 0.0
    %1634 = vmatpush2.msra.mxu0 0.0
    %1635 = vmatprep.subr.mxu0 0.0
    %1636 = vmatpush2.msra.mxu0 0.0
    %1637 = vmatprep.subr.mxu0 0.0
    %1638 = vmatpush2.msra.mxu0 0.0
    %1639 = vmatprep.subr.mxu0 0.0
    %1640 = vmatpush2.msra.mxu0 0.0
    %1641 = vmatprep.mubr.f32.mxu0 0.0
    %1642 = vmatmul.mubr.f32.gmra.mxu0 %v1575
    %v1643 = vpop.f32.mrf.mxu0
    %v1644 = vadd.f32 0.0, %v1643
    %v1645 = vpop.f32.mrf.mxu0
    %1646 = vdwg.mxu0
    %1649 = vrot.lane.b32.xlu0 %v1264, 8
    %v1650 = vpop.permute.xlu0 %1649
    %1651 = vrot.lane.b32.xlu0 %v1340, 8
    %v1652 = vpop.permute.xlu0 %1651
    %1657 = vrot.lane.b32.xlu0 %v1416, 16
    %v1658 = vpop.permute.xlu0 %1657
    %1659 = vrot.lane.b32.xlu0 %v1492, 16
    %v1660 = vpop.permute.xlu0 %1659
    %1665 = vrot.lane.b32.xlu0 %v1568, 24
    %v1666 = vpop.permute.xlu0 %1665
    %1667 = vrot.lane.b32.xlu0 %v1644, 24
    %v1668 = vpop.permute.xlu0 %1667
    %v1671 = vsel %vm336, %v1112, %v1650
    %v1672 = vsel %vm336, %v1188, %v1652
    %vm1673 = vcmask 130048
    %v1674 = vsel %vm1673, %v1671, %v1658
    %v1675 = vsel %vm1673, %v1672, %v1660
    %vm1676 = vcmask 195584
    %v1677 = vsel %vm1676, %v1674, %v1666
    %v1678 = vsel %vm1676, %v1675, %v1668
    %v1680 = vlaneseq
    %v1681 = vshrl.u32 %v1680, 7
    %v1682 = vsub.s32 0, %v1681
    %v1683 = vrot.slane %v213, %v1682
    %v1686 = vsel %vm238, %v1677, 0
    %v1689 = vsel %vm238, %v1678, 0
    %1691 = vmatprep.subr.mxu0 0.0
    %1692 = vmatpush1.msra.mxu0 0.0
    %1693 = vmatprep.subr.mxu0 0.0
    %1694 = vmatpush1.msra.mxu0 0.0
    %1695 = vmatprep.subr.mxu0 0.0
    %1696 = vmatpush1.msra.mxu0 0.0
    %1697 = vmatprep.subr.mxu0 0.0
    %1698 = vmatpush1.msra.mxu0 0.0
    %1699 = vmatprep.subr.mxu0 0.0
    %1700 = vmatpush1.msra.mxu0 0.0
    %1701 = vmatprep.subr.mxu0 0.0
    %1702 = vmatpush1.msra.mxu0 0.0
    %1703 = vmatprep.subr.mxu0 0.0
    %1704 = vmatpush1.msra.mxu0 0.0
    %1705 = vmatprep.subr.mxu0 0.0
    %1706 = vmatpush1.msra.mxu0 0.0
    %1707 = vmatprep.subr.mxu0 0.0
    %1708 = vmatpush1.msra.mxu0 0.0
    %1709 = vmatprep.subr.mxu0 0.0
    %1710 = vmatpush1.msra.mxu0 0.0
    %1711 = vmatprep.subr.mxu0 0.0
    %1712 = vmatpush1.msra.mxu0 0.0
    %1713 = vmatprep.subr.mxu0 0.0
    %1714 = vmatpush1.msra.mxu0 0.0
    %1715 = vmatprep.subr.mxu0 0.0
    %1716 = vmatpush1.msra.mxu0 %v212
    %1717 = vmatprep.subr.mxu0 0.0
    %1718 = vmatpush1.msra.mxu0 %v211
    %1719 = vmatprep.subr.mxu0 0.0
    %1720 = vmatpush1.msra.mxu0 %v210
    %1721 = vmatprep.subr.mxu0 0.0
    %1722 = vmatpush1.msra.mxu0 %v209
    %1723 = vmatprep.subr.mxu0 0.0
    %1724 = vmatpush2.msra.mxu0 0.0
    %1725 = vmatprep.subr.mxu0 0.0
    %1726 = vmatpush2.msra.mxu0 0.0
    %1727 = vmatprep.subr.mxu0 0.0
    %1728 = vmatpush2.msra.mxu0 0.0
    %1729 = vmatprep.subr.mxu0 0.0
    %1730 = vmatpush2.msra.mxu0 0.0
    %1731 = vmatprep.subr.mxu0 0.0
    %1732 = vmatpush2.msra.mxu0 0.0
    %1733 = vmatprep.subr.mxu0 0.0
    %1734 = vmatpush2.msra.mxu0 0.0
    %1735 = vmatprep.subr.mxu0 0.0
    %1736 = vmatpush2.msra.mxu0 0.0
    %1737 = vmatprep.subr.mxu0 0.0
    %1738 = vmatpush2.msra.mxu0 0.0
    %1739 = vmatprep.subr.mxu0 0.0
    %1740 = vmatpush2.msra.mxu0 0.0
    %1741 = vmatprep.subr.mxu0 0.0
    %1742 = vmatpush2.msra.mxu0 0.0
    %1743 = vmatprep.subr.mxu0 0.0
    %1744 = vmatpush2.msra.mxu0 0.0
    %1745 = vmatprep.subr.mxu0 0.0
    %1746 = vmatpush2.msra.mxu0 0.0
    %1747 = vmatprep.subr.mxu0 0.0
    %1748 = vmatpush2.msra.mxu0 0.0
    %1749 = vmatprep.subr.mxu0 0.0
    %1750 = vmatpush2.msra.mxu0 0.0
    %1751 = vmatprep.subr.mxu0 0.0
    %1752 = vmatpush2.msra.mxu0 0.0
    %1753 = vmatprep.subr.mxu0 0.0
    %1754 = vmatpush2.msra.mxu0 0.0
    %1755 = vmatprep.mubr.f32.mxu0 0.0
    %1756 = vmatmul.mubr.f32.gmra.mxu0 %v1686
    %v1757 = vpop.f32.mrf.mxu0
    %v1758 = vadd.f32 %v1683, %v1757
    %v1759 = vpop.f32.mrf.mxu0
    %1760 = vmatprep.mubr.f32.mxu0 0.0
    %1761 = vmatmul.mubr.f32.gmra.mxu0 %v1689
    %v1762 = vpop.f32.mrf.mxu0
    %v1763 = vadd.f32 %v1683, %v1762
    %v1764 = vpop.f32.mrf.mxu0
    %1765 = vdwg.mxu0
    %v1766 = vadd.f32 %v196, %v1758
    %v1767 = vadd.f32 %v201, %v1763
    %v1768 = vsel %vm238, %v1766, 0.0
    %1769 = vadd.xlane.f32.xlu0 %v1768
    %v1770 = vpop.xlane.xlu0 %1769
    %v1771 = vsel %vm238, %v1767, 0.0
    %1772 = vadd.xlane.f32.xlu0 %v1771
    %v1773 = vpop.xlane.xlu0 %1772
    %v1774 = vrcp.pop 32.0
    %v1775 = vmul.f32 %v1770, %v1774
    %v1776 = vmul.f32 %v1773, %v1774
    %v1777 = vsub.f32 %v1766, %v1775
    %v1778 = vsub.f32 %v1767, %v1776
    %v1779 = vmul.f32 %v1777, %v1777
    %v1780 = vmul.f32 %v1778, %v1778
    %v1781 = vsel %vm238, %v1779, 0.0
    %1782 = vadd.xlane.f32.xlu0 %v1781
    %v1783 = vpop.xlane.xlu0 %1782
    %v1784 = vsel %vm238, %v1780, 0.0
    %1785 = vadd.xlane.f32.xlu0 %v1784
    %v1786 = vpop.xlane.xlu0 %1785
    %v1787 = vmul.f32 %v1783, %v1774
    %v1788 = vmul.f32 %v1786, %v1774
    %v1789 = vadd.f32 %v1787, 1e-05
    %v1790 = vadd.f32 %v1788, 1e-05
    %v1791 = vrsqrt.pop %v1789
    %v1792 = vrsqrt.pop %v1790
    %v1793 = vmul.f32 %v1777, %v1791
    %v1794 = vmul.f32 %v1778, %v1792
    %v1796 = vlaneseq
    %v1797 = vshrl.u32 %v1796, 7
    %v1798 = vsub.s32 0, %v1797
    %v1799 = vrot.slane %v214, %v1798
    %v1801 = vmul.f32 %v1793, %v1799
    %v1802 = vmul.f32 %v1794, %v1799
    %v1804 = vlaneseq
    %v1805 = vshrl.u32 %v1804, 7
    %v1806 = vsub.s32 0, %v1805
    %v1807 = vrot.slane %v215, %v1806
    %v1809 = vadd.f32 %v1801, %v1807
    %v1810 = vadd.f32 %v1802, %v1807
    %v1812 = vlaneseq
    %v1813 = vshrl.u32 %v1812, 7
    %v1814 = vsub.s32 0, %v1813
    %v1815 = vrot.slane %v220, %v1814
    %v1818 = vsel %vm238, %v1809, 0
    %v1821 = vsel %vm238, %v1810, 0
    %1823 = vmatprep.subr.mxu0 0.0
    %1824 = vmatpush1.msra.mxu0 0.0
    %1825 = vmatprep.subr.mxu0 0.0
    %1826 = vmatpush1.msra.mxu0 0.0
    %1827 = vmatprep.subr.mxu0 0.0
    %1828 = vmatpush1.msra.mxu0 0.0
    %1829 = vmatprep.subr.mxu0 0.0
    %1830 = vmatpush1.msra.mxu0 0.0
    %1831 = vmatprep.subr.mxu0 0.0
    %1832 = vmatpush1.msra.mxu0 0.0
    %1833 = vmatprep.subr.mxu0 0.0
    %1834 = vmatpush1.msra.mxu0 0.0
    %1835 = vmatprep.subr.mxu0 0.0
    %1836 = vmatpush1.msra.mxu0 0.0
    %1837 = vmatprep.subr.mxu0 0.0
    %1838 = vmatpush1.msra.mxu0 0.0
    %1839 = vmatprep.subr.mxu0 0.0
    %1840 = vmatpush1.msra.mxu0 0.0
    %1841 = vmatprep.subr.mxu0 0.0
    %1842 = vmatpush1.msra.mxu0 0.0
    %1843 = vmatprep.subr.mxu0 0.0
    %1844 = vmatpush1.msra.mxu0 0.0
    %1845 = vmatprep.subr.mxu0 0.0
    %1846 = vmatpush1.msra.mxu0 0.0
    %1847 = vmatprep.subr.mxu0 0.0
    %1848 = vmatpush1.msra.mxu0 %v219
    %1849 = vmatprep.subr.mxu0 0.0
    %1850 = vmatpush1.msra.mxu0 %v218
    %1851 = vmatprep.subr.mxu0 0.0
    %1852 = vmatpush1.msra.mxu0 %v217
    %1853 = vmatprep.subr.mxu0 0.0
    %1854 = vmatpush1.msra.mxu0 %v216
    %1855 = vmatprep.subr.mxu0 0.0
    %1856 = vmatpush2.msra.mxu0 0.0
    %1857 = vmatprep.subr.mxu0 0.0
    %1858 = vmatpush2.msra.mxu0 0.0
    %1859 = vmatprep.subr.mxu0 0.0
    %1860 = vmatpush2.msra.mxu0 0.0
    %1861 = vmatprep.subr.mxu0 0.0
    %1862 = vmatpush2.msra.mxu0 0.0
    %1863 = vmatprep.subr.mxu0 0.0
    %1864 = vmatpush2.msra.mxu0 0.0
    %1865 = vmatprep.subr.mxu0 0.0
    %1866 = vmatpush2.msra.mxu0 0.0
    %1867 = vmatprep.subr.mxu0 0.0
    %1868 = vmatpush2.msra.mxu0 0.0
    %1869 = vmatprep.subr.mxu0 0.0
    %1870 = vmatpush2.msra.mxu0 0.0
    %1871 = vmatprep.subr.mxu0 0.0
    %1872 = vmatpush2.msra.mxu0 0.0
    %1873 = vmatprep.subr.mxu0 0.0
    %1874 = vmatpush2.msra.mxu0 0.0
    %1875 = vmatprep.subr.mxu0 0.0
    %1876 = vmatpush2.msra.mxu0 0.0
    %1877 = vmatprep.subr.mxu0 0.0
    %1878 = vmatpush2.msra.mxu0 0.0
    %1879 = vmatprep.subr.mxu0 0.0
    %1880 = vmatpush2.msra.mxu0 0.0
    %1881 = vmatprep.subr.mxu0 0.0
    %1882 = vmatpush2.msra.mxu0 0.0
    %1883 = vmatprep.subr.mxu0 0.0
    %1884 = vmatpush2.msra.mxu0 0.0
    %1885 = vmatprep.subr.mxu0 0.0
    %1886 = vmatpush2.msra.mxu0 0.0
    %1887 = vmatprep.mubr.f32.mxu0 0.0
    %1888 = vmatmul.mubr.f32.gmra.mxu0 %v1818
    %v1889 = vpop.f32.mrf.mxu0
    %v1890 = vadd.f32 %v1815, %v1889
    %v1891 = vpop.f32.mrf.mxu0
    %1892 = vmatprep.mubr.f32.mxu0 0.0
    %1893 = vmatmul.mubr.f32.gmra.mxu0 %v1821
    %v1894 = vpop.f32.mrf.mxu0
    %v1895 = vadd.f32 %v1815, %v1894
    %v1896 = vpop.f32.mrf.mxu0
    %1897 = vdwg.mxu0
    %v1898 = vmax.f32 %v1890, 0.0
    %v1899 = vmax.f32 %v1895, 0.0
    %v1901 = vlaneseq
    %v1902 = vshrl.u32 %v1901, 7
    %v1903 = vsub.s32 0, %v1902
    %v1904 = vrot.slane %v229, %v1903
    %vm1906 = vcmask 523264
    %v1908 = vsel %vm1906, %v1898, 0
    %v1911 = vsel %vm1906, %v1899, 0
    %1913 = vmatprep.subr.mxu0 0.0
    %1914 = vmatpush1.msra.mxu0 0.0
    %1915 = vmatprep.subr.mxu0 0.0
    %1916 = vmatpush1.msra.mxu0 0.0
    %1917 = vmatprep.subr.mxu0 0.0
    %1918 = vmatpush1.msra.mxu0 0.0
    %1919 = vmatprep.subr.mxu0 0.0
    %1920 = vmatpush1.msra.mxu0 0.0
    %1921 = vmatprep.subr.mxu0 0.0
    %1922 = vmatpush1.msra.mxu0 0.0
    %1923 = vmatprep.subr.mxu0 0.0
    %1924 = vmatpush1.msra.mxu0 0.0
    %1925 = vmatprep.subr.mxu0 0.0
    %1926 = vmatpush1.msra.mxu0 0.0
    %1927 = vmatprep.subr.mxu0 0.0
    %1928 = vmatpush1.msra.mxu0 0.0
    %1929 = vmatprep.subr.mxu0 0.0
    %1930 = vmatpush1.msra.mxu0 %v228
    %1931 = vmatprep.subr.mxu0 0.0
    %1932 = vmatpush1.msra.mxu0 %v227
    %1933 = vmatprep.subr.mxu0 0.0
    %1934 = vmatpush1.msra.mxu0 %v226
    %1935 = vmatprep.subr.mxu0 0.0
    %1936 = vmatpush1.msra.mxu0 %v225
    %1937 = vmatprep.subr.mxu0 0.0
    %1938 = vmatpush1.msra.mxu0 %v224
    %1939 = vmatprep.subr.mxu0 0.0
    %1940 = vmatpush1.msra.mxu0 %v223
    %1941 = vmatprep.subr.mxu0 0.0
    %1942 = vmatpush1.msra.mxu0 %v222
    %1943 = vmatprep.subr.mxu0 0.0
    %1944 = vmatpush1.msra.mxu0 %v221
    %1945 = vmatprep.subr.mxu0 0.0
    %1946 = vmatpush2.msra.mxu0 0.0
    %1947 = vmatprep.subr.mxu0 0.0
    %1948 = vmatpush2.msra.mxu0 0.0
    %1949 = vmatprep.subr.mxu0 0.0
    %1950 = vmatpush2.msra.mxu0 0.0
    %1951 = vmatprep.subr.mxu0 0.0
    %1952 = vmatpush2.msra.mxu0 0.0
    %1953 = vmatprep.subr.mxu0 0.0
    %1954 = vmatpush2.msra.mxu0 0.0
    %1955 = vmatprep.subr.mxu0 0.0
    %1956 = vmatpush2.msra.mxu0 0.0
    %1957 = vmatprep.subr.mxu0 0.0
    %1958 = vmatpush2.msra.mxu0 0.0
    %1959 = vmatprep.subr.mxu0 0.0
    %1960 = vmatpush2.msra.mxu0 0.0
    %1961 = vmatprep.subr.mxu0 0.0
    %1962 = vmatpush2.msra.mxu0 0.0
    %1963 = vmatprep.subr.mxu0 0.0
    %1964 = vmatpush2.msra.mxu0 0.0
    %1965 = vmatprep.subr.mxu0 0.0
    %1966 = vmatpush2.msra.mxu0 0.0
    %1967 = vmatprep.subr.mxu0 0.0
    %1968 = vmatpush2.msra.mxu0 0.0
    %1969 = vmatprep.subr.mxu0 0.0
    %1970 = vmatpush2.msra.mxu0 0.0
    %1971 = vmatprep.subr.mxu0 0.0
    %1972 = vmatpush2.msra.mxu0 0.0
    %1973 = vmatprep.subr.mxu0 0.0
    %1974 = vmatpush2.msra.mxu0 0.0
    %1975 = vmatprep.subr.mxu0 0.0
    %1976 = vmatpush2.msra.mxu0 0.0
    %1977 = vmatprep.mubr.f32.mxu0 0.0
    %1978 = vmatmul.mubr.f32.gmra.mxu0 %v1908
    %v1979 = vpop.f32.mrf.mxu0
    %v1980 = vadd.f32 %v1904, %v1979
    %v1981 = vpop.f32.mrf.mxu0
    %1982 = vmatprep.mubr.f32.mxu0 0.0
    %1983 = vmatmul.mubr.f32.gmra.mxu0 %v1911
    %v1984 = vpop.f32.mrf.mxu0
    %v1985 = vadd.f32 %v1904, %v1984
    %v1986 = vpop.f32.mrf.mxu0
    %1987 = vdwg.mxu0
    %v1988 = vadd.f32 %v1809, %v1980
    %v1989 = vadd.f32 %v1810, %v1985
    %v1990 = vsel %vm238, %v1988, 0.0
    %1991 = vadd.xlane.f32.xlu0 %v1990
    %v1992 = vpop.xlane.xlu0 %1991
    %v1993 = vsel %vm238, %v1989, 0.0
    %1994 = vadd.xlane.f32.xlu0 %v1993
    %v1995 = vpop.xlane.xlu0 %1994
    %v1996 = vmul.f32 %v1992, %v1774
    %v1997 = vmul.f32 %v1995, %v1774
    %v1998 = vsub.f32 %v1988, %v1996
    %v1999 = vsub.f32 %v1989, %v1997
    %v2000 = vmul.f32 %v1998, %v1998
    %v2001 = vmul.f32 %v1999, %v1999
    %v2002 = vsel %vm238, %v2000, 0.0
    %2003 = vadd.xlane.f32.xlu0 %v2002
    %v2004 = vpop.xlane.xlu0 %2003
    %v2005 = vsel %vm238, %v2001, 0.0
    %2006 = vadd.xlane.f32.xlu0 %v2005
    %v2007 = vpop.xlane.xlu0 %2006
    %v2008 = vmul.f32 %v2004, %v1774
    %v2009 = vmul.f32 %v2007, %v1774
    %v2010 = vadd.f32 %v2008, 1e-05
    %v2011 = vadd.f32 %v2009, 1e-05
    %v2012 = vrsqrt.pop %v2010
    %v2013 = vrsqrt.pop %v2011
    %v2014 = vmul.f32 %v1998, %v2012
    %v2015 = vmul.f32 %v1999, %v2013
    %v2017 = vlaneseq
    %v2018 = vshrl.u32 %v2017, 7
    %v2019 = vsub.s32 0, %v2018
    %v2020 = vrot.slane %v230, %v2019
    %v2022 = vmul.f32 %v2014, %v2020
    %v2023 = vmul.f32 %v2015, %v2020
    %v2025 = vlaneseq
    %v2026 = vshrl.u32 %v2025, 7
    %v2027 = vsub.s32 0, %v2026
    %v2028 = vrot.slane %v231, %v2027
    %v2030 = vadd.f32 %v2022, %v2028
    %v2031 = vadd.f32 %v2023, %v2028
    %s2032 = scalar_lea.vmem %s3, 32
    %v2033 = vld [vmem:[%s2032] sm:$0xff]
    %v2034 = vld [vmem:[%s2032 + $0x8] sm:$0xff]
    %v2035 = vld [vmem:[%s2032 + $0x10] sm:$0xff]
    %v2036 = vld [vmem:[%s2032 + $0x18] sm:$0xff]
    %s2037 = scalar_lea.vmem %s4, 1
    %v2038 = vld [vmem:[%s2037] sm:$0x1]
    %s2039 = scalar_lea.vmem %s5, 32
    %v2040 = vld [vmem:[%s2039] sm:$0xff]
    %v2041 = vld [vmem:[%s2039 + $0x8] sm:$0xff]
    %v2042 = vld [vmem:[%s2039 + $0x10] sm:$0xff]
    %v2043 = vld [vmem:[%s2039 + $0x18] sm:$0xff]
    %s2044 = scalar_lea.vmem [#allocation7], 1
    %v2045 = vld [vmem:[%s2044] sm:$0x1]
    %s2046 = scalar_lea.vmem [#allocation8], 1
    %v2047 = vld [vmem:[%s2046] sm:$0x1]
    %s2048 = scalar_lea.vmem %s8, 1
    %v2049 = vld [vmem:[%s2048] sm:$0x1]
    %s2050 = scalar_lea.vmem %s9, 32
    %v2051 = vld [vmem:[%s2050] sm:$0xff]
    %v2052 = vld [vmem:[%s2050 + $0x8] sm:$0xff]
    %v2053 = vld [vmem:[%s2050 + $0x10] sm:$0xff]
    %v2054 = vld [vmem:[%s2050 + $0x18] sm:$0xff]
    %s2055 = scalar_lea.vmem %s10, 1
    %v2056 = vld [vmem:[%s2055] sm:$0x1]
    %s2057 = scalar_lea.vmem %s11, 64
    %v2058 = vld [vmem:[%s2057] sm:$0xff]
    %v2059 = vld [vmem:[%s2057 + $0x8] sm:$0xff]
    %v2060 = vld [vmem:[%s2057 + $0x10] sm:$0xff]
    %v2061 = vld [vmem:[%s2057 + $0x18] sm:$0xff]
    %v2062 = vld [vmem:[%s2057 + $0x20] sm:$0xff]
    %v2063 = vld [vmem:[%s2057 + $0x28] sm:$0xff]
    %v2064 = vld [vmem:[%s2057 + $0x30] sm:$0xff]
    %v2065 = vld [vmem:[%s2057 + $0x38] sm:$0xff]
    %s2066 = scalar_lea.vmem %s12, 1
    %v2067 = vld [vmem:[%s2066] sm:$0x1]
    %s2068 = scalar_lea.vmem %s13, 1
    %v2069 = vld [vmem:[%s2068] sm:$0x1]
    %s2070 = scalar_lea.vmem %s14, 1
    %v2071 = vld [vmem:[%s2070] sm:$0x1]
    %v2073 = vlaneseq
    %v2074 = vshrl.u32 %v2073, 7
    %v2075 = vsub.s32 0, %v2074
    %v2076 = vrot.slane %v2038, %v2075
    %v2079 = vsel %vm238, %v2030, 0
    %v2082 = vsel %vm238, %v2031, 0
    %2084 = vmatprep.subr.mxu0 0.0
    %2085 = vmatpush1.msra.mxu0 0.0
    %2086 = vmatprep.subr.mxu0 0.0
    %2087 = vmatpush1.msra.mxu0 0.0
    %2088 = vmatprep.subr.mxu0 0.0
    %2089 = vmatpush1.msra.mxu0 0.0
    %2090 = vmatprep.subr.mxu0 0.0
    %2091 = vmatpush1.msra.mxu0 0.0
    %2092 = vmatprep.subr.mxu0 0.0
    %2093 = vmatpush1.msra.mxu0 0.0
    %2094 = vmatprep.subr.mxu0 0.0
    %2095 = vmatpush1.msra.mxu0 0.0
    %2096 = vmatprep.subr.mxu0 0.0
    %2097 = vmatpush1.msra.mxu0 0.0
    %2098 = vmatprep.subr.mxu0 0.0
    %2099 = vmatpush1.msra.mxu0 0.0
    %2100 = vmatprep.subr.mxu0 0.0
    %2101 = vmatpush1.msra.mxu0 0.0
    %2102 = vmatprep.subr.mxu0 0.0
    %2103 = vmatpush1.msra.mxu0 0.0
    %2104 = vmatprep.subr.mxu0 0.0
    %2105 = vmatpush1.msra.mxu0 0.0
    %2106 = vmatprep.subr.mxu0 0.0
    %2107 = vmatpush1.msra.mxu0 0.0
    %2108 = vmatprep.subr.mxu0 0.0
    %2109 = vmatpush1.msra.mxu0 %v2036
    %2110 = vmatprep.subr.mxu0 0.0
    %2111 = vmatpush1.msra.mxu0 %v2035
    %2112 = vmatprep.subr.mxu0 0.0
    %2113 = vmatpush1.msra.mxu0 %v2034
    %2114 = vmatprep.subr.mxu0 0.0
    %2115 = vmatpush1.msra.mxu0 %v2033
    %2116 = vmatprep.subr.mxu0 0.0
    %2117 = vmatpush2.msra.mxu0 0.0
    %2118 = vmatprep.subr.mxu0 0.0
    %2119 = vmatpush2.msra.mxu0 0.0
    %2120 = vmatprep.subr.mxu0 0.0
    %2121 = vmatpush2.msra.mxu0 0.0
    %2122 = vmatprep.subr.mxu0 0.0
    %2123 = vmatpush2.msra.mxu0 0.0
    %2124 = vmatprep.subr.mxu0 0.0
    %2125 = vmatpush2.msra.mxu0 0.0
    %2126 = vmatprep.subr.mxu0 0.0
    %2127 = vmatpush2.msra.mxu0 0.0
    %2128 = vmatprep.subr.mxu0 0.0
    %2129 = vmatpush2.msra.mxu0 0.0
    %2130 = vmatprep.subr.mxu0 0.0
    %2131 = vmatpush2.msra.mxu0 0.0
    %2132 = vmatprep.subr.mxu0 0.0
    %2133 = vmatpush2.msra.mxu0 0.0
    %2134 = vmatprep.subr.mxu0 0.0
    %2135 = vmatpush2.msra.mxu0 0.0
    %2136 = vmatprep.subr.mxu0 0.0
    %2137 = vmatpush2.msra.mxu0 0.0
    %2138 = vmatprep.subr.mxu0 0.0
    %2139 = vmatpush2.msra.mxu0 0.0
    %2140 = vmatprep.subr.mxu0 0.0
    %2141 = vmatpush2.msra.mxu0 0.0
    %2142 = vmatprep.subr.mxu0 0.0
    %2143 = vmatpush2.msra.mxu0 0.0
    %2144 = vmatprep.subr.mxu0 0.0
    %2145 = vmatpush2.msra.mxu0 0.0
    %2146 = vmatprep.subr.mxu0 0.0
    %2147 = vmatpush2.msra.mxu0 0.0
    %2148 = vmatprep.mubr.f32.mxu0 0.0
    %2149 = vmatmul.mubr.f32.gmra.mxu0 %v2079
    %v2150 = vpop.f32.mrf.mxu0
    %v2151 = vadd.f32 %v2076, %v2150
    %v2152 = vpop.f32.mrf.mxu0
    %2153 = vmatprep.mubr.f32.mxu0 0.0
    %2154 = vmatmul.mubr.f32.gmra.mxu0 %v2082
    %v2155 = vpop.f32.mrf.mxu0
    %v2156 = vadd.f32 %v2076, %v2155
    %v2157 = vpop.f32.mrf.mxu0
    %2158 = vdwg.mxu0
    %2161 = vrot.lane.b32.xlu0 %v2151, 120
    %v2162 = vpop.permute.xlu0 %2161
    %2163 = vrot.lane.b32.xlu0 %v2156, 120
    %v2164 = vpop.permute.xlu0 %2163
    %2165 = vrot.lane.b32.xlu0 %v2151, 112
    %v2166 = vpop.permute.xlu0 %2165
    %2167 = vrot.lane.b32.xlu0 %v2156, 112
    %v2168 = vpop.permute.xlu0 %2167
    %2169 = vrot.lane.b32.xlu0 %v2151, 104
    %v2170 = vpop.permute.xlu0 %2169
    %2171 = vrot.lane.b32.xlu0 %v2156, 104
    %v2172 = vpop.permute.xlu0 %2171
    %2173 = vrot.lane.b32.xlu0 %v2151, 96
    %v2174 = vpop.permute.xlu0 %2173
    %v2175 = vsel %vm336, %v2151, 0
    %v2177 = vsel %vm336, %v2174, 0
    %2179 = vmatprep.subr.mxu0 0.0
    %2180 = vmatpush1.xpose.msra.mxu0 0.0
    %2181 = vmatprep.subr.mxu0 0.0
    %2182 = vmatpush1.xpose.msra.mxu0 0.0
    %2183 = vmatprep.subr.mxu0 0.0
    %2184 = vmatpush1.xpose.msra.mxu0 0.0
    %2185 = vmatprep.subr.mxu0 0.0
    %2186 = vmatpush1.xpose.msra.mxu0 0.0
    %2187 = vmatprep.subr.mxu0 0.0
    %2188 = vmatpush1.xpose.msra.mxu0 0.0
    %2189 = vmatprep.subr.mxu0 0.0
    %2190 = vmatpush1.xpose.msra.mxu0 0.0
    %2191 = vmatprep.subr.mxu0 0.0
    %2192 = vmatpush1.xpose.msra.mxu0 0.0
    %2193 = vmatprep.subr.mxu0 0.0
    %2194 = vmatpush1.xpose.msra.mxu0 0.0
    %2195 = vmatprep.subr.mxu0 0.0
    %2196 = vmatpush1.xpose.msra.mxu0 0.0
    %2197 = vmatprep.subr.mxu0 0.0
    %2198 = vmatpush1.xpose.msra.mxu0 0.0
    %2199 = vmatprep.subr.mxu0 0.0
    %2200 = vmatpush1.xpose.msra.mxu0 0.0
    %2201 = vmatprep.subr.mxu0 0.0
    %2202 = vmatpush1.xpose.msra.mxu0 0.0
    %2203 = vmatprep.subr.mxu0 0.0
    %2204 = vmatpush1.xpose.msra.mxu0 0.0
    %2205 = vmatprep.subr.mxu0 0.0
    %2206 = vmatpush1.xpose.msra.mxu0 0.0
    %2207 = vmatprep.subr.mxu0 0.0
    %2208 = vmatpush1.xpose.msra.mxu0 0.0
    %2209 = vmatprep.subr.mxu0 0.0
    %2210 = vmatpush1.xpose.msra.mxu0 %v2177
    %2211 = vmatprep.subr.mxu0 0.0
    %2212 = vmatpush2.xpose.msra.mxu0 0.0
    %2213 = vmatprep.subr.mxu0 0.0
    %2214 = vmatpush2.xpose.msra.mxu0 0.0
    %2215 = vmatprep.subr.mxu0 0.0
    %2216 = vmatpush2.xpose.msra.mxu0 0.0
    %2217 = vmatprep.subr.mxu0 0.0
    %2218 = vmatpush2.xpose.msra.mxu0 0.0
    %2219 = vmatprep.subr.mxu0 0.0
    %2220 = vmatpush2.xpose.msra.mxu0 0.0
    %2221 = vmatprep.subr.mxu0 0.0
    %2222 = vmatpush2.xpose.msra.mxu0 0.0
    %2223 = vmatprep.subr.mxu0 0.0
    %2224 = vmatpush2.xpose.msra.mxu0 0.0
    %2225 = vmatprep.subr.mxu0 0.0
    %2226 = vmatpush2.xpose.msra.mxu0 0.0
    %2227 = vmatprep.subr.mxu0 0.0
    %2228 = vmatpush2.xpose.msra.mxu0 0.0
    %2229 = vmatprep.subr.mxu0 0.0
    %2230 = vmatpush2.xpose.msra.mxu0 0.0
    %2231 = vmatprep.subr.mxu0 0.0
    %2232 = vmatpush2.xpose.msra.mxu0 0.0
    %2233 = vmatprep.subr.mxu0 0.0
    %2234 = vmatpush2.xpose.msra.mxu0 0.0
    %2235 = vmatprep.subr.mxu0 0.0
    %2236 = vmatpush2.xpose.msra.mxu0 0.0
    %2237 = vmatprep.subr.mxu0 0.0
    %2238 = vmatpush2.xpose.msra.mxu0 0.0
    %2239 = vmatprep.subr.mxu0 0.0
    %2240 = vmatpush2.xpose.msra.mxu0 0.0
    %2241 = vmatprep.subr.mxu0 0.0
    %2242 = vmatpush2.xpose.msra.mxu0 0.0
    %2243 = vmatprep.mubr.f32.mxu0 0.0
    %2244 = vmatmul.mubr.f32.gmra.mxu0 %v2175
    %v2245 = vpop.f32.mrf.mxu0
    %v2246 = vadd.f32 0.0, %v2245
    %v2247 = vpop.f32.mrf.mxu0
    %2248 = vdwg.mxu0
    %2249 = vrot.lane.b32.xlu0 %v2156, 96
    %v2250 = vpop.permute.xlu0 %2249
    %v2251 = vsel %vm336, %v2156, 0
    %v2253 = vsel %vm336, %v2250, 0
    %2255 = vmatprep.subr.mxu0 0.0
    %2256 = vmatpush1.xpose.msra.mxu0 0.0
    %2257 = vmatprep.subr.mxu0 0.0
    %2258 = vmatpush1.xpose.msra.mxu0 0.0
    %2259 = vmatprep.subr.mxu0 0.0
    %2260 = vmatpush1.xpose.msra.mxu0 0.0
    %2261 = vmatprep.subr.mxu0 0.0
    %2262 = vmatpush1.xpose.msra.mxu0 0.0
    %2263 = vmatprep.subr.mxu0 0.0
    %2264 = vmatpush1.xpose.msra.mxu0 0.0
    %2265 = vmatprep.subr.mxu0 0.0
    %2266 = vmatpush1.xpose.msra.mxu0 0.0
    %2267 = vmatprep.subr.mxu0 0.0
    %2268 = vmatpush1.xpose.msra.mxu0 0.0
    %2269 = vmatprep.subr.mxu0 0.0
    %2270 = vmatpush1.xpose.msra.mxu0 0.0
    %2271 = vmatprep.subr.mxu0 0.0
    %2272 = vmatpush1.xpose.msra.mxu0 0.0
    %2273 = vmatprep.subr.mxu0 0.0
    %2274 = vmatpush1.xpose.msra.mxu0 0.0
    %2275 = vmatprep.subr.mxu0 0.0
    %2276 = vmatpush1.xpose.msra.mxu0 0.0
    %2277 = vmatprep.subr.mxu0 0.0
    %2278 = vmatpush1.xpose.msra.mxu0 0.0
    %2279 = vmatprep.subr.mxu0 0.0
    %2280 = vmatpush1.xpose.msra.mxu0 0.0
    %2281 = vmatprep.subr.mxu0 0.0
    %2282 = vmatpush1.xpose.msra.mxu0 0.0
    %2283 = vmatprep.subr.mxu0 0.0
    %2284 = vmatpush1.xpose.msra.mxu0 0.0
    %2285 = vmatprep.subr.mxu0 0.0
    %2286 = vmatpush1.xpose.msra.mxu0 %v2253
    %2287 = vmatprep.subr.mxu0 0.0
    %2288 = vmatpush2.xpose.msra.mxu0 0.0
    %2289 = vmatprep.subr.mxu0 0.0
    %2290 = vmatpush2.xpose.msra.mxu0 0.0
    %2291 = vmatprep.subr.mxu0 0.0
    %2292 = vmatpush2.xpose.msra.mxu0 0.0
    %2293 = vmatprep.subr.mxu0 0.0
    %2294 = vmatpush2.xpose.msra.mxu0 0.0
    %2295 = vmatprep.subr.mxu0 0.0
    %2296 = vmatpush2.xpose.msra.mxu0 0.0
    %2297 = vmatprep.subr.mxu0 0.0
    %2298 = vmatpush2.xpose.msra.mxu0 0.0
    %2299 = vmatprep.subr.mxu0 0.0
    %2300 = vmatpush2.xpose.msra.mxu0 0.0
    %2301 = vmatprep.subr.mxu0 0.0
    %2302 = vmatpush2.xpose.msra.mxu0 0.0
    %2303 = vmatprep.subr.mxu0 0.0
    %2304 = vmatpush2.xpose.msra.mxu0 0.0
    %2305 = vmatprep.subr.mxu0 0.0
    %2306 = vmatpush2.xpose.msra.mxu0 0.0
    %2307 = vmatprep.subr.mxu0 0.0
    %2308 = vmatpush2.xpose.msra.mxu0 0.0
    %2309 = vmatprep.subr.mxu0 0.0
    %2310 = vmatpush2.xpose.msra.mxu0 0.0
    %2311 = vmatprep.subr.mxu0 0.0
    %2312 = vmatpush2.xpose.msra.mxu0 0.0
    %2313 = vmatprep.subr.mxu0 0.0
    %2314 = vmatpush2.xpose.msra.mxu0 0.0
    %2315 = vmatprep.subr.mxu0 0.0
    %2316 = vmatpush2.xpose.msra.mxu0 0.0
    %2317 = vmatprep.subr.mxu0 0.0
    %2318 = vmatpush2.xpose.msra.mxu0 0.0
    %2319 = vmatprep.mubr.f32.mxu0 0.0
    %2320 = vmatmul.mubr.f32.gmra.mxu0 %v2251
    %v2321 = vpop.f32.mrf.mxu0
    %v2322 = vadd.f32 0.0, %v2321
    %v2323 = vpop.f32.mrf.mxu0
    %2324 = vdwg.mxu0
    %2325 = vrot.lane.b32.xlu0 %v2162, 96
    %v2326 = vpop.permute.xlu0 %2325
    %v2327 = vsel %vm336, %v2162, 0
    %v2329 = vsel %vm336, %v2326, 0
    %2331 = vmatprep.subr.mxu0 0.0
    %2332 = vmatpush1.xpose.msra.mxu0 0.0
    %2333 = vmatprep.subr.mxu0 0.0
    %2334 = vmatpush1.xpose.msra.mxu0 0.0
    %2335 = vmatprep.subr.mxu0 0.0
    %2336 = vmatpush1.xpose.msra.mxu0 0.0
    %2337 = vmatprep.subr.mxu0 0.0
    %2338 = vmatpush1.xpose.msra.mxu0 0.0
    %2339 = vmatprep.subr.mxu0 0.0
    %2340 = vmatpush1.xpose.msra.mxu0 0.0
    %2341 = vmatprep.subr.mxu0 0.0
    %2342 = vmatpush1.xpose.msra.mxu0 0.0
    %2343 = vmatprep.subr.mxu0 0.0
    %2344 = vmatpush1.xpose.msra.mxu0 0.0
    %2345 = vmatprep.subr.mxu0 0.0
    %2346 = vmatpush1.xpose.msra.mxu0 0.0
    %2347 = vmatprep.subr.mxu0 0.0
    %2348 = vmatpush1.xpose.msra.mxu0 0.0
    %2349 = vmatprep.subr.mxu0 0.0
    %2350 = vmatpush1.xpose.msra.mxu0 0.0
    %2351 = vmatprep.subr.mxu0 0.0
    %2352 = vmatpush1.xpose.msra.mxu0 0.0
    %2353 = vmatprep.subr.mxu0 0.0
    %2354 = vmatpush1.xpose.msra.mxu0 0.0
    %2355 = vmatprep.subr.mxu0 0.0
    %2356 = vmatpush1.xpose.msra.mxu0 0.0
    %2357 = vmatprep.subr.mxu0 0.0
    %2358 = vmatpush1.xpose.msra.mxu0 0.0
    %2359 = vmatprep.subr.mxu0 0.0
    %2360 = vmatpush1.xpose.msra.mxu0 0.0
    %2361 = vmatprep.subr.mxu0 0.0
    %2362 = vmatpush1.xpose.msra.mxu0 %v2329
    %2363 = vmatprep.subr.mxu0 0.0
    %2364 = vmatpush2.xpose.msra.mxu0 0.0
    %2365 = vmatprep.subr.mxu0 0.0
    %2366 = vmatpush2.xpose.msra.mxu0 0.0
    %2367 = vmatprep.subr.mxu0 0.0
    %2368 = vmatpush2.xpose.msra.mxu0 0.0
    %2369 = vmatprep.subr.mxu0 0.0
    %2370 = vmatpush2.xpose.msra.mxu0 0.0
    %2371 = vmatprep.subr.mxu0 0.0
    %2372 = vmatpush2.xpose.msra.mxu0 0.0
    %2373 = vmatprep.subr.mxu0 0.0
    %2374 = vmatpush2.xpose.msra.mxu0 0.0
    %2375 = vmatprep.subr.mxu0 0.0
    %2376 = vmatpush2.xpose.msra.mxu0 0.0
    %2377 = vmatprep.subr.mxu0 0.0
    %2378 = vmatpush2.xpose.msra.mxu0 0.0
    %2379 = vmatprep.subr.mxu0 0.0
    %2380 = vmatpush2.xpose.msra.mxu0 0.0
    %2381 = vmatprep.subr.mxu0 0.0
    %2382 = vmatpush2.xpose.msra.mxu0 0.0
    %2383 = vmatprep.subr.mxu0 0.0
    %2384 = vmatpush2.xpose.msra.mxu0 0.0
    %2385 = vmatprep.subr.mxu0 0.0
    %2386 = vmatpush2.xpose.msra.mxu0 0.0
    %2387 = vmatprep.subr.mxu0 0.0
    %2388 = vmatpush2.xpose.msra.mxu0 0.0
    %2389 = vmatprep.subr.mxu0 0.0
    %2390 = vmatpush2.xpose.msra.mxu0 0.0
    %2391 = vmatprep.subr.mxu0 0.0
    %2392 = vmatpush2.xpose.msra.mxu0 0.0
    %2393 = vmatprep.subr.mxu0 0.0
    %2394 = vmatpush2.xpose.msra.mxu0 0.0
    %2395 = vmatprep.mubr.f32.mxu0 0.0
    %2396 = vmatmul.mubr.f32.gmra.mxu0 %v2327
    %v2397 = vpop.f32.mrf.mxu0
    %v2398 = vadd.f32 0.0, %v2397
    %v2399 = vpop.f32.mrf.mxu0
    %2400 = vdwg.mxu0
    %2401 = vrot.lane.b32.xlu0 %v2164, 96
    %v2402 = vpop.permute.xlu0 %2401
    %v2403 = vsel %vm336, %v2164, 0
    %v2405 = vsel %vm336, %v2402, 0
    %2407 = vmatprep.subr.mxu0 0.0
    %2408 = vmatpush1.xpose.msra.mxu0 0.0
    %2409 = vmatprep.subr.mxu0 0.0
    %2410 = vmatpush1.xpose.msra.mxu0 0.0
    %2411 = vmatprep.subr.mxu0 0.0
    %2412 = vmatpush1.xpose.msra.mxu0 0.0
    %2413 = vmatprep.subr.mxu0 0.0
    %2414 = vmatpush1.xpose.msra.mxu0 0.0
    %2415 = vmatprep.subr.mxu0 0.0
    %2416 = vmatpush1.xpose.msra.mxu0 0.0
    %2417 = vmatprep.subr.mxu0 0.0
    %2418 = vmatpush1.xpose.msra.mxu0 0.0
    %2419 = vmatprep.subr.mxu0 0.0
    %2420 = vmatpush1.xpose.msra.mxu0 0.0
    %2421 = vmatprep.subr.mxu0 0.0
    %2422 = vmatpush1.xpose.msra.mxu0 0.0
    %2423 = vmatprep.subr.mxu0 0.0
    %2424 = vmatpush1.xpose.msra.mxu0 0.0
    %2425 = vmatprep.subr.mxu0 0.0
    %2426 = vmatpush1.xpose.msra.mxu0 0.0
    %2427 = vmatprep.subr.mxu0 0.0
    %2428 = vmatpush1.xpose.msra.mxu0 0.0
    %2429 = vmatprep.subr.mxu0 0.0
    %2430 = vmatpush1.xpose.msra.mxu0 0.0
    %2431 = vmatprep.subr.mxu0 0.0
    %2432 = vmatpush1.xpose.msra.mxu0 0.0
    %2433 = vmatprep.subr.mxu0 0.0
    %2434 = vmatpush1.xpose.msra.mxu0 0.0
    %2435 = vmatprep.subr.mxu0 0.0
    %2436 = vmatpush1.xpose.msra.mxu0 0.0
    %2437 = vmatprep.subr.mxu0 0.0
    %2438 = vmatpush1.xpose.msra.mxu0 %v2405
    %2439 = vmatprep.subr.mxu0 0.0
    %2440 = vmatpush2.xpose.msra.mxu0 0.0
    %2441 = vmatprep.subr.mxu0 0.0
    %2442 = vmatpush2.xpose.msra.mxu0 0.0
    %2443 = vmatprep.subr.mxu0 0.0
    %2444 = vmatpush2.xpose.msra.mxu0 0.0
    %2445 = vmatprep.subr.mxu0 0.0
    %2446 = vmatpush2.xpose.msra.mxu0 0.0
    %2447 = vmatprep.subr.mxu0 0.0
    %2448 = vmatpush2.xpose.msra.mxu0 0.0
    %2449 = vmatprep.subr.mxu0 0.0
    %2450 = vmatpush2.xpose.msra.mxu0 0.0
    %2451 = vmatprep.subr.mxu0 0.0
    %2452 = vmatpush2.xpose.msra.mxu0 0.0
    %2453 = vmatprep.subr.mxu0 0.0
    %2454 = vmatpush2.xpose.msra.mxu0 0.0
    %2455 = vmatprep.subr.mxu0 0.0
    %2456 = vmatpush2.xpose.msra.mxu0 0.0
    %2457 = vmatprep.subr.mxu0 0.0
    %2458 = vmatpush2.xpose.msra.mxu0 0.0
    %2459 = vmatprep.subr.mxu0 0.0
    %2460 = vmatpush2.xpose.msra.mxu0 0.0
    %2461 = vmatprep.subr.mxu0 0.0
    %2462 = vmatpush2.xpose.msra.mxu0 0.0
    %2463 = vmatprep.subr.mxu0 0.0
    %2464 = vmatpush2.xpose.msra.mxu0 0.0
    %2465 = vmatprep.subr.mxu0 0.0
    %2466 = vmatpush2.xpose.msra.mxu0 0.0
    %2467 = vmatprep.subr.mxu0 0.0
    %2468 = vmatpush2.xpose.msra.mxu0 0.0
    %2469 = vmatprep.subr.mxu0 0.0
    %2470 = vmatpush2.xpose.msra.mxu0 0.0
    %2471 = vmatprep.mubr.f32.mxu0 0.0
    %2472 = vmatmul.mubr.f32.gmra.mxu0 %v2403
    %v2473 = vpop.f32.mrf.mxu0
    %v2474 = vadd.f32 0.0, %v2473
    %v2475 = vpop.f32.mrf.mxu0
    %2476 = vdwg.mxu0
    %2477 = vrot.lane.b32.xlu0 %v2166, 96
    %v2478 = vpop.permute.xlu0 %2477
    %v2479 = vsel %vm336, %v2166, 0
    %v2481 = vsel %vm336, %v2478, 0
    %2483 = vmatprep.subr.mxu0 0.0
    %2484 = vmatpush1.xpose.msra.mxu0 0.0
    %2485 = vmatprep.subr.mxu0 0.0
    %2486 = vmatpush1.xpose.msra.mxu0 0.0
    %2487 = vmatprep.subr.mxu0 0.0
    %2488 = vmatpush1.xpose.msra.mxu0 0.0
    %2489 = vmatprep.subr.mxu0 0.0
    %2490 = vmatpush1.xpose.msra.mxu0 0.0
    %2491 = vmatprep.subr.mxu0 0.0
    %2492 = vmatpush1.xpose.msra.mxu0 0.0
    %2493 = vmatprep.subr.mxu0 0.0
    %2494 = vmatpush1.xpose.msra.mxu0 0.0
    %2495 = vmatprep.subr.mxu0 0.0
    %2496 = vmatpush1.xpose.msra.mxu0 0.0
    %2497 = vmatprep.subr.mxu0 0.0
    %2498 = vmatpush1.xpose.msra.mxu0 0.0
    %2499 = vmatprep.subr.mxu0 0.0
    %2500 = vmatpush1.xpose.msra.mxu0 0.0
    %2501 = vmatprep.subr.mxu0 0.0
    %2502 = vmatpush1.xpose.msra.mxu0 0.0
    %2503 = vmatprep.subr.mxu0 0.0
    %2504 = vmatpush1.xpose.msra.mxu0 0.0
    %2505 = vmatprep.subr.mxu0 0.0
    %2506 = vmatpush1.xpose.msra.mxu0 0.0
    %2507 = vmatprep.subr.mxu0 0.0
    %2508 = vmatpush1.xpose.msra.mxu0 0.0
    %2509 = vmatprep.subr.mxu0 0.0
    %2510 = vmatpush1.xpose.msra.mxu0 0.0
    %2511 = vmatprep.subr.mxu0 0.0
    %2512 = vmatpush1.xpose.msra.mxu0 0.0
    %2513 = vmatprep.subr.mxu0 0.0
    %2514 = vmatpush1.xpose.msra.mxu0 %v2481
    %2515 = vmatprep.subr.mxu0 0.0
    %2516 = vmatpush2.xpose.msra.mxu0 0.0
    %2517 = vmatprep.subr.mxu0 0.0
    %2518 = vmatpush2.xpose.msra.mxu0 0.0
    %2519 = vmatprep.subr.mxu0 0.0
    %2520 = vmatpush2.xpose.msra.mxu0 0.0
    %2521 = vmatprep.subr.mxu0 0.0
    %2522 = vmatpush2.xpose.msra.mxu0 0.0
    %2523 = vmatprep.subr.mxu0 0.0
    %2524 = vmatpush2.xpose.msra.mxu0 0.0
    %2525 = vmatprep.subr.mxu0 0.0
    %2526 = vmatpush2.xpose.msra.mxu0 0.0
    %2527 = vmatprep.subr.mxu0 0.0
    %2528 = vmatpush2.xpose.msra.mxu0 0.0
    %2529 = vmatprep.subr.mxu0 0.0
    %2530 = vmatpush2.xpose.msra.mxu0 0.0
    %2531 = vmatprep.subr.mxu0 0.0
    %2532 = vmatpush2.xpose.msra.mxu0 0.0
    %2533 = vmatprep.subr.mxu0 0.0
    %2534 = vmatpush2.xpose.msra.mxu0 0.0
    %2535 = vmatprep.subr.mxu0 0.0
    %2536 = vmatpush2.xpose.msra.mxu0 0.0
    %2537 = vmatprep.subr.mxu0 0.0
    %2538 = vmatpush2.xpose.msra.mxu0 0.0
    %2539 = vmatprep.subr.mxu0 0.0
    %2540 = vmatpush2.xpose.msra.mxu0 0.0
    %2541 = vmatprep.subr.mxu0 0.0
    %2542 = vmatpush2.xpose.msra.mxu0 0.0
    %2543 = vmatprep.subr.mxu0 0.0
    %2544 = vmatpush2.xpose.msra.mxu0 0.0
    %2545 = vmatprep.subr.mxu0 0.0
    %2546 = vmatpush2.xpose.msra.mxu0 0.0
    %2547 = vmatprep.mubr.f32.mxu0 0.0
    %2548 = vmatmul.mubr.f32.gmra.mxu0 %v2479
    %v2549 = vpop.f32.mrf.mxu0
    %v2550 = vadd.f32 0.0, %v2549
    %v2551 = vpop.f32.mrf.mxu0
    %2552 = vdwg.mxu0
    %2553 = vrot.lane.b32.xlu0 %v2168, 96
    %v2554 = vpop.permute.xlu0 %2553
    %v2555 = vsel %vm336, %v2168, 0
    %v2557 = vsel %vm336, %v2554, 0
    %2559 = vmatprep.subr.mxu0 0.0
    %2560 = vmatpush1.xpose.msra.mxu0 0.0
    %2561 = vmatprep.subr.mxu0 0.0
    %2562 = vmatpush1.xpose.msra.mxu0 0.0
    %2563 = vmatprep.subr.mxu0 0.0
    %2564 = vmatpush1.xpose.msra.mxu0 0.0
    %2565 = vmatprep.subr.mxu0 0.0
    %2566 = vmatpush1.xpose.msra.mxu0 0.0
    %2567 = vmatprep.subr.mxu0 0.0
    %2568 = vmatpush1.xpose.msra.mxu0 0.0
    %2569 = vmatprep.subr.mxu0 0.0
    %2570 = vmatpush1.xpose.msra.mxu0 0.0
    %2571 = vmatprep.subr.mxu0 0.0
    %2572 = vmatpush1.xpose.msra.mxu0 0.0
    %2573 = vmatprep.subr.mxu0 0.0
    %2574 = vmatpush1.xpose.msra.mxu0 0.0
    %2575 = vmatprep.subr.mxu0 0.0
    %2576 = vmatpush1.xpose.msra.mxu0 0.0
    %2577 = vmatprep.subr.mxu0 0.0
    %2578 = vmatpush1.xpose.msra.mxu0 0.0
    %2579 = vmatprep.subr.mxu0 0.0
    %2580 = vmatpush1.xpose.msra.mxu0 0.0
    %2581 = vmatprep.subr.mxu0 0.0
    %2582 = vmatpush1.xpose.msra.mxu0 0.0
    %2583 = vmatprep.subr.mxu0 0.0
    %2584 = vmatpush1.xpose.msra.mxu0 0.0
    %2585 = vmatprep.subr.mxu0 0.0
    %2586 = vmatpush1.xpose.msra.mxu0 0.0
    %2587 = vmatprep.subr.mxu0 0.0
    %2588 = vmatpush1.xpose.msra.mxu0 0.0
    %2589 = vmatprep.subr.mxu0 0.0
    %2590 = vmatpush1.xpose.msra.mxu0 %v2557
    %2591 = vmatprep.subr.mxu0 0.0
    %2592 = vmatpush2.xpose.msra.mxu0 0.0
    %2593 = vmatprep.subr.mxu0 0.0
    %2594 = vmatpush2.xpose.msra.mxu0 0.0
    %2595 = vmatprep.subr.mxu0 0.0
    %2596 = vmatpush2.xpose.msra.mxu0 0.0
    %2597 = vmatprep.subr.mxu0 0.0
    %2598 = vmatpush2.xpose.msra.mxu0 0.0
    %2599 = vmatprep.subr.mxu0 0.0
    %2600 = vmatpush2.xpose.msra.mxu0 0.0
    %2601 = vmatprep.subr.mxu0 0.0
    %2602 = vmatpush2.xpose.msra.mxu0 0.0
    %2603 = vmatprep.subr.mxu0 0.0
    %2604 = vmatpush2.xpose.msra.mxu0 0.0
    %2605 = vmatprep.subr.mxu0 0.0
    %2606 = vmatpush2.xpose.msra.mxu0 0.0
    %2607 = vmatprep.subr.mxu0 0.0
    %2608 = vmatpush2.xpose.msra.mxu0 0.0
    %2609 = vmatprep.subr.mxu0 0.0
    %2610 = vmatpush2.xpose.msra.mxu0 0.0
    %2611 = vmatprep.subr.mxu0 0.0
    %2612 = vmatpush2.xpose.msra.mxu0 0.0
    %2613 = vmatprep.subr.mxu0 0.0
    %2614 = vmatpush2.xpose.msra.mxu0 0.0
    %2615 = vmatprep.subr.mxu0 0.0
    %2616 = vmatpush2.xpose.msra.mxu0 0.0
    %2617 = vmatprep.subr.mxu0 0.0
    %2618 = vmatpush2.xpose.msra.mxu0 0.0
    %2619 = vmatprep.subr.mxu0 0.0
    %2620 = vmatpush2.xpose.msra.mxu0 0.0
    %2621 = vmatprep.subr.mxu0 0.0
    %2622 = vmatpush2.xpose.msra.mxu0 0.0
    %2623 = vmatprep.mubr.f32.mxu0 0.0
    %2624 = vmatmul.mubr.f32.gmra.mxu0 %v2555
    %v2625 = vpop.f32.mrf.mxu0
    %v2626 = vadd.f32 0.0, %v2625
    %v2627 = vpop.f32.mrf.mxu0
    %2628 = vdwg.mxu0
    %2629 = vrot.lane.b32.xlu0 %v2170, 96
    %v2630 = vpop.permute.xlu0 %2629
    %v2631 = vsel %vm336, %v2170, 0
    %v2633 = vsel %vm336, %v2630, 0
    %2635 = vmatprep.subr.mxu0 0.0
    %2636 = vmatpush1.xpose.msra.mxu0 0.0
    %2637 = vmatprep.subr.mxu0 0.0
    %2638 = vmatpush1.xpose.msra.mxu0 0.0
    %2639 = vmatprep.subr.mxu0 0.0
    %2640 = vmatpush1.xpose.msra.mxu0 0.0
    %2641 = vmatprep.subr.mxu0 0.0
    %2642 = vmatpush1.xpose.msra.mxu0 0.0
    %2643 = vmatprep.subr.mxu0 0.0
    %2644 = vmatpush1.xpose.msra.mxu0 0.0
    %2645 = vmatprep.subr.mxu0 0.0
    %2646 = vmatpush1.xpose.msra.mxu0 0.0
    %2647 = vmatprep.subr.mxu0 0.0
    %2648 = vmatpush1.xpose.msra.mxu0 0.0
    %2649 = vmatprep.subr.mxu0 0.0
    %2650 = vmatpush1.xpose.msra.mxu0 0.0
    %2651 = vmatprep.subr.mxu0 0.0
    %2652 = vmatpush1.xpose.msra.mxu0 0.0
    %2653 = vmatprep.subr.mxu0 0.0
    %2654 = vmatpush1.xpose.msra.mxu0 0.0
    %2655 = vmatprep.subr.mxu0 0.0
    %2656 = vmatpush1.xpose.msra.mxu0 0.0
    %2657 = vmatprep.subr.mxu0 0.0
    %2658 = vmatpush1.xpose.msra.mxu0 0.0
    %2659 = vmatprep.subr.mxu0 0.0
    %2660 = vmatpush1.xpose.msra.mxu0 0.0
    %2661 = vmatprep.subr.mxu0 0.0
    %2662 = vmatpush1.xpose.msra.mxu0 0.0
    %2663 = vmatprep.subr.mxu0 0.0
    %2664 = vmatpush1.xpose.msra.mxu0 0.0
    %2665 = vmatprep.subr.mxu0 0.0
    %2666 = vmatpush1.xpose.msra.mxu0 %v2633
    %2667 = vmatprep.subr.mxu0 0.0
    %2668 = vmatpush2.xpose.msra.mxu0 0.0
    %2669 = vmatprep.subr.mxu0 0.0
    %2670 = vmatpush2.xpose.msra.mxu0 0.0
    %2671 = vmatprep.subr.mxu0 0.0
    %2672 = vmatpush2.xpose.msra.mxu0 0.0
    %2673 = vmatprep.subr.mxu0 0.0
    %2674 = vmatpush2.xpose.msra.mxu0 0.0
    %2675 = vmatprep.subr.mxu0 0.0
    %2676 = vmatpush2.xpose.msra.mxu0 0.0
    %2677 = vmatprep.subr.mxu0 0.0
    %2678 = vmatpush2.xpose.msra.mxu0 0.0
    %2679 = vmatprep.subr.mxu0 0.0
    %2680 = vmatpush2.xpose.msra.mxu0 0.0
    %2681 = vmatprep.subr.mxu0 0.0
    %2682 = vmatpush2.xpose.msra.mxu0 0.0
    %2683 = vmatprep.subr.mxu0 0.0
    %2684 = vmatpush2.xpose.msra.mxu0 0.0
    %2685 = vmatprep.subr.mxu0 0.0
    %2686 = vmatpush2.xpose.msra.mxu0 0.0
    %2687 = vmatprep.subr.mxu0 0.0
    %2688 = vmatpush2.xpose.msra.mxu0 0.0
    %2689 = vmatprep.subr.mxu0 0.0
    %2690 = vmatpush2.xpose.msra.mxu0 0.0
    %2691 = vmatprep.subr.mxu0 0.0
    %2692 = vmatpush2.xpose.msra.mxu0 0.0
    %2693 = vmatprep.subr.mxu0 0.0
    %2694 = vmatpush2.xpose.msra.mxu0 0.0
    %2695 = vmatprep.subr.mxu0 0.0
    %2696 = vmatpush2.xpose.msra.mxu0 0.0
    %2697 = vmatprep.subr.mxu0 0.0
    %2698 = vmatpush2.xpose.msra.mxu0 0.0
    %2699 = vmatprep.mubr.f32.mxu0 0.0
    %2700 = vmatmul.mubr.f32.gmra.mxu0 %v2631
    %v2701 = vpop.f32.mrf.mxu0
    %v2702 = vadd.f32 0.0, %v2701
    %v2703 = vpop.f32.mrf.mxu0
    %2704 = vdwg.mxu0
    %2705 = vrot.lane.b32.xlu0 %v2172, 96
    %v2706 = vpop.permute.xlu0 %2705
    %v2707 = vsel %vm336, %v2172, 0
    %v2709 = vsel %vm336, %v2706, 0
    %2711 = vmatprep.subr.mxu0 0.0
    %2712 = vmatpush1.xpose.msra.mxu0 0.0
    %2713 = vmatprep.subr.mxu0 0.0
    %2714 = vmatpush1.xpose.msra.mxu0 0.0
    %2715 = vmatprep.subr.mxu0 0.0
    %2716 = vmatpush1.xpose.msra.mxu0 0.0
    %2717 = vmatprep.subr.mxu0 0.0
    %2718 = vmatpush1.xpose.msra.mxu0 0.0
    %2719 = vmatprep.subr.mxu0 0.0
    %2720 = vmatpush1.xpose.msra.mxu0 0.0
    %2721 = vmatprep.subr.mxu0 0.0
    %2722 = vmatpush1.xpose.msra.mxu0 0.0
    %2723 = vmatprep.subr.mxu0 0.0
    %2724 = vmatpush1.xpose.msra.mxu0 0.0
    %2725 = vmatprep.subr.mxu0 0.0
    %2726 = vmatpush1.xpose.msra.mxu0 0.0
    %2727 = vmatprep.subr.mxu0 0.0
    %2728 = vmatpush1.xpose.msra.mxu0 0.0
    %2729 = vmatprep.subr.mxu0 0.0
    %2730 = vmatpush1.xpose.msra.mxu0 0.0
    %2731 = vmatprep.subr.mxu0 0.0
    %2732 = vmatpush1.xpose.msra.mxu0 0.0
    %2733 = vmatprep.subr.mxu0 0.0
    %2734 = vmatpush1.xpose.msra.mxu0 0.0
    %2735 = vmatprep.subr.mxu0 0.0
    %2736 = vmatpush1.xpose.msra.mxu0 0.0
    %2737 = vmatprep.subr.mxu0 0.0
    %2738 = vmatpush1.xpose.msra.mxu0 0.0
    %2739 = vmatprep.subr.mxu0 0.0
    %2740 = vmatpush1.xpose.msra.mxu0 0.0
    %2741 = vmatprep.subr.mxu0 0.0
    %2742 = vmatpush1.xpose.msra.mxu0 %v2709
    %2743 = vmatprep.subr.mxu0 0.0
    %2744 = vmatpush2.xpose.msra.mxu0 0.0
    %2745 = vmatprep.subr.mxu0 0.0
    %2746 = vmatpush2.xpose.msra.mxu0 0.0
    %2747 = vmatprep.subr.mxu0 0.0
    %2748 = vmatpush2.xpose.msra.mxu0 0.0
    %2749 = vmatprep.subr.mxu0 0.0
    %2750 = vmatpush2.xpose.msra.mxu0 0.0
    %2751 = vmatprep.subr.mxu0 0.0
    %2752 = vmatpush2.xpose.msra.mxu0 0.0
    %2753 = vmatprep.subr.mxu0 0.0
    %2754 = vmatpush2.xpose.msra.mxu0 0.0
    %2755 = vmatprep.subr.mxu0 0.0
    %2756 = vmatpush2.xpose.msra.mxu0 0.0
    %2757 = vmatprep.subr.mxu0 0.0
    %2758 = vmatpush2.xpose.msra.mxu0 0.0
    %2759 = vmatprep.subr.mxu0 0.0
    %2760 = vmatpush2.xpose.msra.mxu0 0.0
    %2761 = vmatprep.subr.mxu0 0.0
    %2762 = vmatpush2.xpose.msra.mxu0 0.0
    %2763 = vmatprep.subr.mxu0 0.0
    %2764 = vmatpush2.xpose.msra.mxu0 0.0
    %2765 = vmatprep.subr.mxu0 0.0
    %2766 = vmatpush2.xpose.msra.mxu0 0.0
    %2767 = vmatprep.subr.mxu0 0.0
    %2768 = vmatpush2.xpose.msra.mxu0 0.0
    %2769 = vmatprep.subr.mxu0 0.0
    %2770 = vmatpush2.xpose.msra.mxu0 0.0
    %2771 = vmatprep.subr.mxu0 0.0
    %2772 = vmatpush2.xpose.msra.mxu0 0.0
    %2773 = vmatprep.subr.mxu0 0.0
    %2774 = vmatpush2.xpose.msra.mxu0 0.0
    %2775 = vmatprep.mubr.f32.mxu0 0.0
    %2776 = vmatmul.mubr.f32.gmra.mxu0 %v2707
    %v2777 = vpop.f32.mrf.mxu0
    %v2778 = vadd.f32 0.0, %v2777
    %v2779 = vpop.f32.mrf.mxu0
    %2780 = vdwg.mxu0
    %v2781 = vmul.f32 %v2246, 0.35355338
    %v2782 = vmul.f32 %v2322, 0.35355338
    %v2783 = vmul.f32 %v2398, 0.35355338
    %v2784 = vmul.f32 %v2474, 0.35355338
    %v2785 = vmul.f32 %v2550, 0.35355338
    %v2786 = vmul.f32 %v2626, 0.35355338
    %v2787 = vmul.f32 %v2702, 0.35355338
    %v2788 = vmul.f32 %v2778, 0.35355338
    %v2789 = vsel %vm336, %v2781, -inf
    %2790 = vmax.xlane.f32.xlu0 %v2789
    %v2791 = vpop.xlane.xlu0 %2790
    %v2792 = vsel %vm336, %v2782, -inf
    %2793 = vmax.xlane.f32.xlu0 %v2792
    %v2794 = vpop.xlane.xlu0 %2793
    %v2795 = vsel %vm336, %v2783, -inf
    %2796 = vmax.xlane.f32.xlu0 %v2795
    %v2797 = vpop.xlane.xlu0 %2796
    %v2798 = vsel %vm336, %v2784, -inf
    %2799 = vmax.xlane.f32.xlu0 %v2798
    %v2800 = vpop.xlane.xlu0 %2799
    %v2801 = vsel %vm336, %v2785, -inf
    %2802 = vmax.xlane.f32.xlu0 %v2801
    %v2803 = vpop.xlane.xlu0 %2802
    %v2804 = vsel %vm336, %v2786, -inf
    %2805 = vmax.xlane.f32.xlu0 %v2804
    %v2806 = vpop.xlane.xlu0 %2805
    %v2807 = vsel %vm336, %v2787, -inf
    %2808 = vmax.xlane.f32.xlu0 %v2807
    %v2809 = vpop.xlane.xlu0 %2808
    %v2810 = vsel %vm336, %v2788, -inf
    %2811 = vmax.xlane.f32.xlu0 %v2810
    %v2812 = vpop.xlane.xlu0 %2811
    %v2813 = vsub.f32 %v2781, %v2791
    %v2814 = vsub.f32 %v2782, %v2794
    %v2815 = vsub.f32 %v2783, %v2797
    %v2816 = vsub.f32 %v2784, %v2800
    %v2817 = vsub.f32 %v2785, %v2803
    %v2818 = vsub.f32 %v2786, %v2806
    %v2819 = vsub.f32 %v2787, %v2809
    %v2820 = vsub.f32 %v2788, %v2812
    %v2821 = vmul.f32 %v2813, 1.442695
    %v2822 = vpow.pop %v2821
    %v2823 = vmul.f32 %v2814, 1.442695
    %v2824 = vpow.pop %v2823
    %v2825 = vmul.f32 %v2815, 1.442695
    %v2826 = vpow.pop %v2825
    %v2827 = vmul.f32 %v2816, 1.442695
    %v2828 = vpow.pop %v2827
    %v2829 = vmul.f32 %v2817, 1.442695
    %v2830 = vpow.pop %v2829
    %v2831 = vmul.f32 %v2818, 1.442695
    %v2832 = vpow.pop %v2831
    %v2833 = vmul.f32 %v2819, 1.442695
    %v2834 = vpow.pop %v2833
    %v2835 = vmul.f32 %v2820, 1.442695
    %v2836 = vpow.pop %v2835
    %v2837 = vsel %vm336, %v2822, 0.0
    %2838 = vadd.xlane.f32.xlu0 %v2837
    %v2839 = vpop.xlane.xlu0 %2838
    %v2840 = vsel %vm336, %v2824, 0.0
    %2841 = vadd.xlane.f32.xlu0 %v2840
    %v2842 = vpop.xlane.xlu0 %2841
    %v2843 = vsel %vm336, %v2826, 0.0
    %2844 = vadd.xlane.f32.xlu0 %v2843
    %v2845 = vpop.xlane.xlu0 %2844
    %v2846 = vsel %vm336, %v2828, 0.0
    %2847 = vadd.xlane.f32.xlu0 %v2846
    %v2848 = vpop.xlane.xlu0 %2847
    %v2849 = vsel %vm336, %v2830, 0.0
    %2850 = vadd.xlane.f32.xlu0 %v2849
    %v2851 = vpop.xlane.xlu0 %2850
    %v2852 = vsel %vm336, %v2832, 0.0
    %2853 = vadd.xlane.f32.xlu0 %v2852
    %v2854 = vpop.xlane.xlu0 %2853
    %v2855 = vsel %vm336, %v2834, 0.0
    %2856 = vadd.xlane.f32.xlu0 %v2855
    %v2857 = vpop.xlane.xlu0 %2856
    %v2858 = vsel %vm336, %v2836, 0.0
    %2859 = vadd.xlane.f32.xlu0 %v2858
    %v2860 = vpop.xlane.xlu0 %2859
    %v2861 = vrcp.pop %v2839
    %v2862 = vrcp.pop %v2842
    %v2863 = vrcp.pop %v2845
    %v2864 = vrcp.pop %v2848
    %v2865 = vrcp.pop %v2851
    %v2866 = vrcp.pop %v2854
    %v2867 = vrcp.pop %v2857
    %v2868 = vrcp.pop %v2860
    %v2869 = vmul.f32 %v2822, %v2861
    %v2870 = vmul.f32 %v2824, %v2862
    %v2871 = vmul.f32 %v2826, %v2863
    %v2872 = vmul.f32 %v2828, %v2864
    %v2873 = vmul.f32 %v2830, %v2865
    %v2874 = vmul.f32 %v2832, %v2866
    %v2875 = vmul.f32 %v2834, %v2867
    %v2876 = vmul.f32 %v2836, %v2868
    %2877 = vrot.lane.b32.xlu0 %v2151, 64
    %v2878 = vpop.permute.xlu0 %2877
    %v2881 = vsel %vm336, %v2869, 0
    %2883 = vmatprep.subr.mxu0 0.0
    %2884 = vmatpush1.msra.mxu0 0.0
    %2885 = vmatprep.subr.mxu0 0.0
    %2886 = vmatpush1.msra.mxu0 0.0
    %2887 = vmatprep.subr.mxu0 0.0
    %2888 = vmatpush1.msra.mxu0 0.0
    %2889 = vmatprep.subr.mxu0 0.0
    %2890 = vmatpush1.msra.mxu0 0.0
    %2891 = vmatprep.subr.mxu0 0.0
    %2892 = vmatpush1.msra.mxu0 0.0
    %2893 = vmatprep.subr.mxu0 0.0
    %2894 = vmatpush1.msra.mxu0 0.0
    %2895 = vmatprep.subr.mxu0 0.0
    %2896 = vmatpush1.msra.mxu0 0.0
    %2897 = vmatprep.subr.mxu0 0.0
    %2898 = vmatpush1.msra.mxu0 0.0
    %2899 = vmatprep.subr.mxu0 0.0
    %2900 = vmatpush1.msra.mxu0 0.0
    %2901 = vmatprep.subr.mxu0 0.0
    %2902 = vmatpush1.msra.mxu0 0.0
    %2903 = vmatprep.subr.mxu0 0.0
    %2904 = vmatpush1.msra.mxu0 0.0
    %2905 = vmatprep.subr.mxu0 0.0
    %2906 = vmatpush1.msra.mxu0 0.0
    %2907 = vmatprep.subr.mxu0 0.0
    %2908 = vmatpush1.msra.mxu0 0.0
    %2909 = vmatprep.subr.mxu0 0.0
    %2910 = vmatpush1.msra.mxu0 0.0
    %2911 = vmatprep.subr.mxu0 0.0
    %2912 = vmatpush1.msra.mxu0 0.0
    %2913 = vmatprep.subr.mxu0 0.0
    %2914 = vmatpush1.msra.mxu0 %v2878
    %2915 = vmatprep.subr.mxu0 0.0
    %2916 = vmatpush2.msra.mxu0 0.0
    %2917 = vmatprep.subr.mxu0 0.0
    %2918 = vmatpush2.msra.mxu0 0.0
    %2919 = vmatprep.subr.mxu0 0.0
    %2920 = vmatpush2.msra.mxu0 0.0
    %2921 = vmatprep.subr.mxu0 0.0
    %2922 = vmatpush2.msra.mxu0 0.0
    %2923 = vmatprep.subr.mxu0 0.0
    %2924 = vmatpush2.msra.mxu0 0.0
    %2925 = vmatprep.subr.mxu0 0.0
    %2926 = vmatpush2.msra.mxu0 0.0
    %2927 = vmatprep.subr.mxu0 0.0
    %2928 = vmatpush2.msra.mxu0 0.0
    %2929 = vmatprep.subr.mxu0 0.0
    %2930 = vmatpush2.msra.mxu0 0.0
    %2931 = vmatprep.subr.mxu0 0.0
    %2932 = vmatpush2.msra.mxu0 0.0
    %2933 = vmatprep.subr.mxu0 0.0
    %2934 = vmatpush2.msra.mxu0 0.0
    %2935 = vmatprep.subr.mxu0 0.0
    %2936 = vmatpush2.msra.mxu0 0.0
    %2937 = vmatprep.subr.mxu0 0.0
    %2938 = vmatpush2.msra.mxu0 0.0
    %2939 = vmatprep.subr.mxu0 0.0
    %2940 = vmatpush2.msra.mxu0 0.0
    %2941 = vmatprep.subr.mxu0 0.0
    %2942 = vmatpush2.msra.mxu0 0.0
    %2943 = vmatprep.subr.mxu0 0.0
    %2944 = vmatpush2.msra.mxu0 0.0
    %2945 = vmatprep.subr.mxu0 0.0
    %2946 = vmatpush2.msra.mxu0 0.0
    %2947 = vmatprep.mubr.f32.mxu0 0.0
    %2948 = vmatmul.mubr.f32.gmra.mxu0 %v2881
    %v2949 = vpop.f32.mrf.mxu0
    %v2950 = vadd.f32 0.0, %v2949
    %v2951 = vpop.f32.mrf.mxu0
    %2952 = vdwg.mxu0
    %2953 = vrot.lane.b32.xlu0 %v2156, 64
    %v2954 = vpop.permute.xlu0 %2953
    %v2957 = vsel %vm336, %v2870, 0
    %2959 = vmatprep.subr.mxu0 0.0
    %2960 = vmatpush1.msra.mxu0 0.0
    %2961 = vmatprep.subr.mxu0 0.0
    %2962 = vmatpush1.msra.mxu0 0.0
    %2963 = vmatprep.subr.mxu0 0.0
    %2964 = vmatpush1.msra.mxu0 0.0
    %2965 = vmatprep.subr.mxu0 0.0
    %2966 = vmatpush1.msra.mxu0 0.0
    %2967 = vmatprep.subr.mxu0 0.0
    %2968 = vmatpush1.msra.mxu0 0.0
    %2969 = vmatprep.subr.mxu0 0.0
    %2970 = vmatpush1.msra.mxu0 0.0
    %2971 = vmatprep.subr.mxu0 0.0
    %2972 = vmatpush1.msra.mxu0 0.0
    %2973 = vmatprep.subr.mxu0 0.0
    %2974 = vmatpush1.msra.mxu0 0.0
    %2975 = vmatprep.subr.mxu0 0.0
    %2976 = vmatpush1.msra.mxu0 0.0
    %2977 = vmatprep.subr.mxu0 0.0
    %2978 = vmatpush1.msra.mxu0 0.0
    %2979 = vmatprep.subr.mxu0 0.0
    %2980 = vmatpush1.msra.mxu0 0.0
    %2981 = vmatprep.subr.mxu0 0.0
    %2982 = vmatpush1.msra.mxu0 0.0
    %2983 = vmatprep.subr.mxu0 0.0
    %2984 = vmatpush1.msra.mxu0 0.0
    %2985 = vmatprep.subr.mxu0 0.0
    %2986 = vmatpush1.msra.mxu0 0.0
    %2987 = vmatprep.subr.mxu0 0.0
    %2988 = vmatpush1.msra.mxu0 0.0
    %2989 = vmatprep.subr.mxu0 0.0
    %2990 = vmatpush1.msra.mxu0 %v2954
    %2991 = vmatprep.subr.mxu0 0.0
    %2992 = vmatpush2.msra.mxu0 0.0
    %2993 = vmatprep.subr.mxu0 0.0
    %2994 = vmatpush2.msra.mxu0 0.0
    %2995 = vmatprep.subr.mxu0 0.0
    %2996 = vmatpush2.msra.mxu0 0.0
    %2997 = vmatprep.subr.mxu0 0.0
    %2998 = vmatpush2.msra.mxu0 0.0
    %2999 = vmatprep.subr.mxu0 0.0
    %3000 = vmatpush2.msra.mxu0 0.0
    %3001 = vmatprep.subr.mxu0 0.0
    %3002 = vmatpush2.msra.mxu0 0.0
    %3003 = vmatprep.subr.mxu0 0.0
    %3004 = vmatpush2.msra.mxu0 0.0
    %3005 = vmatprep.subr.mxu0 0.0
    %3006 = vmatpush2.msra.mxu0 0.0
    %3007 = vmatprep.subr.mxu0 0.0
    %3008 = vmatpush2.msra.mxu0 0.0
    %3009 = vmatprep.subr.mxu0 0.0
    %3010 = vmatpush2.msra.mxu0 0.0
    %3011 = vmatprep.subr.mxu0 0.0
    %3012 = vmatpush2.msra.mxu0 0.0
    %3013 = vmatprep.subr.mxu0 0.0
    %3014 = vmatpush2.msra.mxu0 0.0
    %3015 = vmatprep.subr.mxu0 0.0
    %3016 = vmatpush2.msra.mxu0 0.0
    %3017 = vmatprep.subr.mxu0 0.0
    %3018 = vmatpush2.msra.mxu0 0.0
    %3019 = vmatprep.subr.mxu0 0.0
    %3020 = vmatpush2.msra.mxu0 0.0
    %3021 = vmatprep.subr.mxu0 0.0
    %3022 = vmatpush2.msra.mxu0 0.0
    %3023 = vmatprep.mubr.f32.mxu0 0.0
    %3024 = vmatmul.mubr.f32.gmra.mxu0 %v2957
    %v3025 = vpop.f32.mrf.mxu0
    %v3026 = vadd.f32 0.0, %v3025
    %v3027 = vpop.f32.mrf.mxu0
    %3028 = vdwg.mxu0
    %3029 = vrot.lane.b32.xlu0 %v2162, 64
    %v3030 = vpop.permute.xlu0 %3029
    %v3033 = vsel %vm336, %v2871, 0
    %3035 = vmatprep.subr.mxu0 0.0
    %3036 = vmatpush1.msra.mxu0 0.0
    %3037 = vmatprep.subr.mxu0 0.0
    %3038 = vmatpush1.msra.mxu0 0.0
    %3039 = vmatprep.subr.mxu0 0.0
    %3040 = vmatpush1.msra.mxu0 0.0
    %3041 = vmatprep.subr.mxu0 0.0
    %3042 = vmatpush1.msra.mxu0 0.0
    %3043 = vmatprep.subr.mxu0 0.0
    %3044 = vmatpush1.msra.mxu0 0.0
    %3045 = vmatprep.subr.mxu0 0.0
    %3046 = vmatpush1.msra.mxu0 0.0
    %3047 = vmatprep.subr.mxu0 0.0
    %3048 = vmatpush1.msra.mxu0 0.0
    %3049 = vmatprep.subr.mxu0 0.0
    %3050 = vmatpush1.msra.mxu0 0.0
    %3051 = vmatprep.subr.mxu0 0.0
    %3052 = vmatpush1.msra.mxu0 0.0
    %3053 = vmatprep.subr.mxu0 0.0
    %3054 = vmatpush1.msra.mxu0 0.0
    %3055 = vmatprep.subr.mxu0 0.0
    %3056 = vmatpush1.msra.mxu0 0.0
    %3057 = vmatprep.subr.mxu0 0.0
    %3058 = vmatpush1.msra.mxu0 0.0
    %3059 = vmatprep.subr.mxu0 0.0
    %3060 = vmatpush1.msra.mxu0 0.0
    %3061 = vmatprep.subr.mxu0 0.0
    %3062 = vmatpush1.msra.mxu0 0.0
    %3063 = vmatprep.subr.mxu0 0.0
    %3064 = vmatpush1.msra.mxu0 0.0
    %3065 = vmatprep.subr.mxu0 0.0
    %3066 = vmatpush1.msra.mxu0 %v3030
    %3067 = vmatprep.subr.mxu0 0.0
    %3068 = vmatpush2.msra.mxu0 0.0
    %3069 = vmatprep.subr.mxu0 0.0
    %3070 = vmatpush2.msra.mxu0 0.0
    %3071 = vmatprep.subr.mxu0 0.0
    %3072 = vmatpush2.msra.mxu0 0.0
    %3073 = vmatprep.subr.mxu0 0.0
    %3074 = vmatpush2.msra.mxu0 0.0
    %3075 = vmatprep.subr.mxu0 0.0
    %3076 = vmatpush2.msra.mxu0 0.0
    %3077 = vmatprep.subr.mxu0 0.0
    %3078 = vmatpush2.msra.mxu0 0.0
    %3079 = vmatprep.subr.mxu0 0.0
    %3080 = vmatpush2.msra.mxu0 0.0
    %3081 = vmatprep.subr.mxu0 0.0
    %3082 = vmatpush2.msra.mxu0 0.0
    %3083 = vmatprep.subr.mxu0 0.0
    %3084 = vmatpush2.msra.mxu0 0.0
    %3085 = vmatprep.subr.mxu0 0.0
    %3086 = vmatpush2.msra.mxu0 0.0
    %3087 = vmatprep.subr.mxu0 0.0
    %3088 = vmatpush2.msra.mxu0 0.0
    %3089 = vmatprep.subr.mxu0 0.0
    %3090 = vmatpush2.msra.mxu0 0.0
    %3091 = vmatprep.subr.mxu0 0.0
    %3092 = vmatpush2.msra.mxu0 0.0
    %3093 = vmatprep.subr.mxu0 0.0
    %3094 = vmatpush2.msra.mxu0 0.0
    %3095 = vmatprep.subr.mxu0 0.0
    %3096 = vmatpush2.msra.mxu0 0.0
    %3097 = vmatprep.subr.mxu0 0.0
    %3098 = vmatpush2.msra.mxu0 0.0
    %3099 = vmatprep.mubr.f32.mxu0 0.0
    %3100 = vmatmul.mubr.f32.gmra.mxu0 %v3033
    %v3101 = vpop.f32.mrf.mxu0
    %v3102 = vadd.f32 0.0, %v3101
    %v3103 = vpop.f32.mrf.mxu0
    %3104 = vdwg.mxu0
    %3105 = vrot.lane.b32.xlu0 %v2164, 64
    %v3106 = vpop.permute.xlu0 %3105
    %v3109 = vsel %vm336, %v2872, 0
    %3111 = vmatprep.subr.mxu0 0.0
    %3112 = vmatpush1.msra.mxu0 0.0
    %3113 = vmatprep.subr.mxu0 0.0
    %3114 = vmatpush1.msra.mxu0 0.0
    %3115 = vmatprep.subr.mxu0 0.0
    %3116 = vmatpush1.msra.mxu0 0.0
    %3117 = vmatprep.subr.mxu0 0.0
    %3118 = vmatpush1.msra.mxu0 0.0
    %3119 = vmatprep.subr.mxu0 0.0
    %3120 = vmatpush1.msra.mxu0 0.0
    %3121 = vmatprep.subr.mxu0 0.0
    %3122 = vmatpush1.msra.mxu0 0.0
    %3123 = vmatprep.subr.mxu0 0.0
    %3124 = vmatpush1.msra.mxu0 0.0
    %3125 = vmatprep.subr.mxu0 0.0
    %3126 = vmatpush1.msra.mxu0 0.0
    %3127 = vmatprep.subr.mxu0 0.0
    %3128 = vmatpush1.msra.mxu0 0.0
    %3129 = vmatprep.subr.mxu0 0.0
    %3130 = vmatpush1.msra.mxu0 0.0
    %3131 = vmatprep.subr.mxu0 0.0
    %3132 = vmatpush1.msra.mxu0 0.0
    %3133 = vmatprep.subr.mxu0 0.0
    %3134 = vmatpush1.msra.mxu0 0.0
    %3135 = vmatprep.subr.mxu0 0.0
    %3136 = vmatpush1.msra.mxu0 0.0
    %3137 = vmatprep.subr.mxu0 0.0
    %3138 = vmatpush1.msra.mxu0 0.0
    %3139 = vmatprep.subr.mxu0 0.0
    %3140 = vmatpush1.msra.mxu0 0.0
    %3141 = vmatprep.subr.mxu0 0.0
    %3142 = vmatpush1.msra.mxu0 %v3106
    %3143 = vmatprep.subr.mxu0 0.0
    %3144 = vmatpush2.msra.mxu0 0.0
    %3145 = vmatprep.subr.mxu0 0.0
    %3146 = vmatpush2.msra.mxu0 0.0
    %3147 = vmatprep.subr.mxu0 0.0
    %3148 = vmatpush2.msra.mxu0 0.0
    %3149 = vmatprep.subr.mxu0 0.0
    %3150 = vmatpush2.msra.mxu0 0.0
    %3151 = vmatprep.subr.mxu0 0.0
    %3152 = vmatpush2.msra.mxu0 0.0
    %3153 = vmatprep.subr.mxu0 0.0
    %3154 = vmatpush2.msra.mxu0 0.0
    %3155 = vmatprep.subr.mxu0 0.0
    %3156 = vmatpush2.msra.mxu0 0.0
    %3157 = vmatprep.subr.mxu0 0.0
    %3158 = vmatpush2.msra.mxu0 0.0
    %3159 = vmatprep.subr.mxu0 0.0
    %3160 = vmatpush2.msra.mxu0 0.0
    %3161 = vmatprep.subr.mxu0 0.0
    %3162 = vmatpush2.msra.mxu0 0.0
    %3163 = vmatprep.subr.mxu0 0.0
    %3164 = vmatpush2.msra.mxu0 0.0
    %3165 = vmatprep.subr.mxu0 0.0
    %3166 = vmatpush2.msra.mxu0 0.0
    %3167 = vmatprep.subr.mxu0 0.0
    %3168 = vmatpush2.msra.mxu0 0.0
    %3169 = vmatprep.subr.mxu0 0.0
    %3170 = vmatpush2.msra.mxu0 0.0
    %3171 = vmatprep.subr.mxu0 0.0
    %3172 = vmatpush2.msra.mxu0 0.0
    %3173 = vmatprep.subr.mxu0 0.0
    %3174 = vmatpush2.msra.mxu0 0.0
    %3175 = vmatprep.mubr.f32.mxu0 0.0
    %3176 = vmatmul.mubr.f32.gmra.mxu0 %v3109
    %v3177 = vpop.f32.mrf.mxu0
    %v3178 = vadd.f32 0.0, %v3177
    %v3179 = vpop.f32.mrf.mxu0
    %3180 = vdwg.mxu0
    %3181 = vrot.lane.b32.xlu0 %v2166, 64
    %v3182 = vpop.permute.xlu0 %3181
    %v3185 = vsel %vm336, %v2873, 0
    %3187 = vmatprep.subr.mxu0 0.0
    %3188 = vmatpush1.msra.mxu0 0.0
    %3189 = vmatprep.subr.mxu0 0.0
    %3190 = vmatpush1.msra.mxu0 0.0
    %3191 = vmatprep.subr.mxu0 0.0
    %3192 = vmatpush1.msra.mxu0 0.0
    %3193 = vmatprep.subr.mxu0 0.0
    %3194 = vmatpush1.msra.mxu0 0.0
    %3195 = vmatprep.subr.mxu0 0.0
    %3196 = vmatpush1.msra.mxu0 0.0
    %3197 = vmatprep.subr.mxu0 0.0
    %3198 = vmatpush1.msra.mxu0 0.0
    %3199 = vmatprep.subr.mxu0 0.0
    %3200 = vmatpush1.msra.mxu0 0.0
    %3201 = vmatprep.subr.mxu0 0.0
    %3202 = vmatpush1.msra.mxu0 0.0
    %3203 = vmatprep.subr.mxu0 0.0
    %3204 = vmatpush1.msra.mxu0 0.0
    %3205 = vmatprep.subr.mxu0 0.0
    %3206 = vmatpush1.msra.mxu0 0.0
    %3207 = vmatprep.subr.mxu0 0.0
    %3208 = vmatpush1.msra.mxu0 0.0
    %3209 = vmatprep.subr.mxu0 0.0
    %3210 = vmatpush1.msra.mxu0 0.0
    %3211 = vmatprep.subr.mxu0 0.0
    %3212 = vmatpush1.msra.mxu0 0.0
    %3213 = vmatprep.subr.mxu0 0.0
    %3214 = vmatpush1.msra.mxu0 0.0
    %3215 = vmatprep.subr.mxu0 0.0
    %3216 = vmatpush1.msra.mxu0 0.0
    %3217 = vmatprep.subr.mxu0 0.0
    %3218 = vmatpush1.msra.mxu0 %v3182
    %3219 = vmatprep.subr.mxu0 0.0
    %3220 = vmatpush2.msra.mxu0 0.0
    %3221 = vmatprep.subr.mxu0 0.0
    %3222 = vmatpush2.msra.mxu0 0.0
    %3223 = vmatprep.subr.mxu0 0.0
    %3224 = vmatpush2.msra.mxu0 0.0
    %3225 = vmatprep.subr.mxu0 0.0
    %3226 = vmatpush2.msra.mxu0 0.0
    %3227 = vmatprep.subr.mxu0 0.0
    %3228 = vmatpush2.msra.mxu0 0.0
    %3229 = vmatprep.subr.mxu0 0.0
    %3230 = vmatpush2.msra.mxu0 0.0
    %3231 = vmatprep.subr.mxu0 0.0
    %3232 = vmatpush2.msra.mxu0 0.0
    %3233 = vmatprep.subr.mxu0 0.0
    %3234 = vmatpush2.msra.mxu0 0.0
    %3235 = vmatprep.subr.mxu0 0.0
    %3236 = vmatpush2.msra.mxu0 0.0
    %3237 = vmatprep.subr.mxu0 0.0
    %3238 = vmatpush2.msra.mxu0 0.0
    %3239 = vmatprep.subr.mxu0 0.0
    %3240 = vmatpush2.msra.mxu0 0.0
    %3241 = vmatprep.subr.mxu0 0.0
    %3242 = vmatpush2.msra.mxu0 0.0
    %3243 = vmatprep.subr.mxu0 0.0
    %3244 = vmatpush2.msra.mxu0 0.0
    %3245 = vmatprep.subr.mxu0 0.0
    %3246 = vmatpush2.msra.mxu0 0.0
    %3247 = vmatprep.subr.mxu0 0.0
    %3248 = vmatpush2.msra.mxu0 0.0
    %3249 = vmatprep.subr.mxu0 0.0
    %3250 = vmatpush2.msra.mxu0 0.0
    %3251 = vmatprep.mubr.f32.mxu0 0.0
    %3252 = vmatmul.mubr.f32.gmra.mxu0 %v3185
    %v3253 = vpop.f32.mrf.mxu0
    %v3254 = vadd.f32 0.0, %v3253
    %v3255 = vpop.f32.mrf.mxu0
    %3256 = vdwg.mxu0
    %3257 = vrot.lane.b32.xlu0 %v2168, 64
    %v3258 = vpop.permute.xlu0 %3257
    %v3261 = vsel %vm336, %v2874, 0
    %3263 = vmatprep.subr.mxu0 0.0
    %3264 = vmatpush1.msra.mxu0 0.0
    %3265 = vmatprep.subr.mxu0 0.0
    %3266 = vmatpush1.msra.mxu0 0.0
    %3267 = vmatprep.subr.mxu0 0.0
    %3268 = vmatpush1.msra.mxu0 0.0
    %3269 = vmatprep.subr.mxu0 0.0
    %3270 = vmatpush1.msra.mxu0 0.0
    %3271 = vmatprep.subr.mxu0 0.0
    %3272 = vmatpush1.msra.mxu0 0.0
    %3273 = vmatprep.subr.mxu0 0.0
    %3274 = vmatpush1.msra.mxu0 0.0
    %3275 = vmatprep.subr.mxu0 0.0
    %3276 = vmatpush1.msra.mxu0 0.0
    %3277 = vmatprep.subr.mxu0 0.0
    %3278 = vmatpush1.msra.mxu0 0.0
    %3279 = vmatprep.subr.mxu0 0.0
    %3280 = vmatpush1.msra.mxu0 0.0
    %3281 = vmatprep.subr.mxu0 0.0
    %3282 = vmatpush1.msra.mxu0 0.0
    %3283 = vmatprep.subr.mxu0 0.0
    %3284 = vmatpush1.msra.mxu0 0.0
    %3285 = vmatprep.subr.mxu0 0.0
    %3286 = vmatpush1.msra.mxu0 0.0
    %3287 = vmatprep.subr.mxu0 0.0
    %3288 = vmatpush1.msra.mxu0 0.0
    %3289 = vmatprep.subr.mxu0 0.0
    %3290 = vmatpush1.msra.mxu0 0.0
    %3291 = vmatprep.subr.mxu0 0.0
    %3292 = vmatpush1.msra.mxu0 0.0
    %3293 = vmatprep.subr.mxu0 0.0
    %3294 = vmatpush1.msra.mxu0 %v3258
    %3295 = vmatprep.subr.mxu0 0.0
    %3296 = vmatpush2.msra.mxu0 0.0
    %3297 = vmatprep.subr.mxu0 0.0
    %3298 = vmatpush2.msra.mxu0 0.0
    %3299 = vmatprep.subr.mxu0 0.0
    %3300 = vmatpush2.msra.mxu0 0.0
    %3301 = vmatprep.subr.mxu0 0.0
    %3302 = vmatpush2.msra.mxu0 0.0
    %3303 = vmatprep.subr.mxu0 0.0
    %3304 = vmatpush2.msra.mxu0 0.0
    %3305 = vmatprep.subr.mxu0 0.0
    %3306 = vmatpush2.msra.mxu0 0.0
    %3307 = vmatprep.subr.mxu0 0.0
    %3308 = vmatpush2.msra.mxu0 0.0
    %3309 = vmatprep.subr.mxu0 0.0
    %3310 = vmatpush2.msra.mxu0 0.0
    %3311 = vmatprep.subr.mxu0 0.0
    %3312 = vmatpush2.msra.mxu0 0.0
    %3313 = vmatprep.subr.mxu0 0.0
    %3314 = vmatpush2.msra.mxu0 0.0
    %3315 = vmatprep.subr.mxu0 0.0
    %3316 = vmatpush2.msra.mxu0 0.0
    %3317 = vmatprep.subr.mxu0 0.0
    %3318 = vmatpush2.msra.mxu0 0.0
    %3319 = vmatprep.subr.mxu0 0.0
    %3320 = vmatpush2.msra.mxu0 0.0
    %3321 = vmatprep.subr.mxu0 0.0
    %3322 = vmatpush2.msra.mxu0 0.0
    %3323 = vmatprep.subr.mxu0 0.0
    %3324 = vmatpush2.msra.mxu0 0.0
    %3325 = vmatprep.subr.mxu0 0.0
    %3326 = vmatpush2.msra.mxu0 0.0
    %3327 = vmatprep.mubr.f32.mxu0 0.0
    %3328 = vmatmul.mubr.f32.gmra.mxu0 %v3261
    %v3329 = vpop.f32.mrf.mxu0
    %v3330 = vadd.f32 0.0, %v3329
    %v3331 = vpop.f32.mrf.mxu0
    %3332 = vdwg.mxu0
    %3333 = vrot.lane.b32.xlu0 %v2170, 64
    %v3334 = vpop.permute.xlu0 %3333
    %v3337 = vsel %vm336, %v2875, 0
    %3339 = vmatprep.subr.mxu0 0.0
    %3340 = vmatpush1.msra.mxu0 0.0
    %3341 = vmatprep.subr.mxu0 0.0
    %3342 = vmatpush1.msra.mxu0 0.0
    %3343 = vmatprep.subr.mxu0 0.0
    %3344 = vmatpush1.msra.mxu0 0.0
    %3345 = vmatprep.subr.mxu0 0.0
    %3346 = vmatpush1.msra.mxu0 0.0
    %3347 = vmatprep.subr.mxu0 0.0
    %3348 = vmatpush1.msra.mxu0 0.0
    %3349 = vmatprep.subr.mxu0 0.0
    %3350 = vmatpush1.msra.mxu0 0.0
    %3351 = vmatprep.subr.mxu0 0.0
    %3352 = vmatpush1.msra.mxu0 0.0
    %3353 = vmatprep.subr.mxu0 0.0
    %3354 = vmatpush1.msra.mxu0 0.0
    %3355 = vmatprep.subr.mxu0 0.0
    %3356 = vmatpush1.msra.mxu0 0.0
    %3357 = vmatprep.subr.mxu0 0.0
    %3358 = vmatpush1.msra.mxu0 0.0
    %3359 = vmatprep.subr.mxu0 0.0
    %3360 = vmatpush1.msra.mxu0 0.0
    %3361 = vmatprep.subr.mxu0 0.0
    %3362 = vmatpush1.msra.mxu0 0.0
    %3363 = vmatprep.subr.mxu0 0.0
    %3364 = vmatpush1.msra.mxu0 0.0
    %3365 = vmatprep.subr.mxu0 0.0
    %3366 = vmatpush1.msra.mxu0 0.0
    %3367 = vmatprep.subr.mxu0 0.0
    %3368 = vmatpush1.msra.mxu0 0.0
    %3369 = vmatprep.subr.mxu0 0.0
    %3370 = vmatpush1.msra.mxu0 %v3334
    %3371 = vmatprep.subr.mxu0 0.0
    %3372 = vmatpush2.msra.mxu0 0.0
    %3373 = vmatprep.subr.mxu0 0.0
    %3374 = vmatpush2.msra.mxu0 0.0
    %3375 = vmatprep.subr.mxu0 0.0
    %3376 = vmatpush2.msra.mxu0 0.0
    %3377 = vmatprep.subr.mxu0 0.0
    %3378 = vmatpush2.msra.mxu0 0.0
    %3379 = vmatprep.subr.mxu0 0.0
    %3380 = vmatpush2.msra.mxu0 0.0
    %3381 = vmatprep.subr.mxu0 0.0
    %3382 = vmatpush2.msra.mxu0 0.0
    %3383 = vmatprep.subr.mxu0 0.0
    %3384 = vmatpush2.msra.mxu0 0.0
    %3385 = vmatprep.subr.mxu0 0.0
    %3386 = vmatpush2.msra.mxu0 0.0
    %3387 = vmatprep.subr.mxu0 0.0
    %3388 = vmatpush2.msra.mxu0 0.0
    %3389 = vmatprep.subr.mxu0 0.0
    %3390 = vmatpush2.msra.mxu0 0.0
    %3391 = vmatprep.subr.mxu0 0.0
    %3392 = vmatpush2.msra.mxu0 0.0
    %3393 = vmatprep.subr.mxu0 0.0
    %3394 = vmatpush2.msra.mxu0 0.0
    %3395 = vmatprep.subr.mxu0 0.0
    %3396 = vmatpush2.msra.mxu0 0.0
    %3397 = vmatprep.subr.mxu0 0.0
    %3398 = vmatpush2.msra.mxu0 0.0
    %3399 = vmatprep.subr.mxu0 0.0
    %3400 = vmatpush2.msra.mxu0 0.0
    %3401 = vmatprep.subr.mxu0 0.0
    %3402 = vmatpush2.msra.mxu0 0.0
    %3403 = vmatprep.mubr.f32.mxu0 0.0
    %3404 = vmatmul.mubr.f32.gmra.mxu0 %v3337
    %v3405 = vpop.f32.mrf.mxu0
    %v3406 = vadd.f32 0.0, %v3405
    %v3407 = vpop.f32.mrf.mxu0
    %3408 = vdwg.mxu0
    %3409 = vrot.lane.b32.xlu0 %v2172, 64
    %v3410 = vpop.permute.xlu0 %3409
    %v3413 = vsel %vm336, %v2876, 0
    %3415 = vmatprep.subr.mxu0 0.0
    %3416 = vmatpush1.msra.mxu0 0.0
    %3417 = vmatprep.subr.mxu0 0.0
    %3418 = vmatpush1.msra.mxu0 0.0
    %3419 = vmatprep.subr.mxu0 0.0
    %3420 = vmatpush1.msra.mxu0 0.0
    %3421 = vmatprep.subr.mxu0 0.0
    %3422 = vmatpush1.msra.mxu0 0.0
    %3423 = vmatprep.subr.mxu0 0.0
    %3424 = vmatpush1.msra.mxu0 0.0
    %3425 = vmatprep.subr.mxu0 0.0
    %3426 = vmatpush1.msra.mxu0 0.0
    %3427 = vmatprep.subr.mxu0 0.0
    %3428 = vmatpush1.msra.mxu0 0.0
    %3429 = vmatprep.subr.mxu0 0.0
    %3430 = vmatpush1.msra.mxu0 0.0
    %3431 = vmatprep.subr.mxu0 0.0
    %3432 = vmatpush1.msra.mxu0 0.0
    %3433 = vmatprep.subr.mxu0 0.0
    %3434 = vmatpush1.msra.mxu0 0.0
    %3435 = vmatprep.subr.mxu0 0.0
    %3436 = vmatpush1.msra.mxu0 0.0
    %3437 = vmatprep.subr.mxu0 0.0
    %3438 = vmatpush1.msra.mxu0 0.0
    %3439 = vmatprep.subr.mxu0 0.0
    %3440 = vmatpush1.msra.mxu0 0.0
    %3441 = vmatprep.subr.mxu0 0.0
    %3442 = vmatpush1.msra.mxu0 0.0
    %3443 = vmatprep.subr.mxu0 0.0
    %3444 = vmatpush1.msra.mxu0 0.0
    %3445 = vmatprep.subr.mxu0 0.0
    %3446 = vmatpush1.msra.mxu0 %v3410
    %3447 = vmatprep.subr.mxu0 0.0
    %3448 = vmatpush2.msra.mxu0 0.0
    %3449 = vmatprep.subr.mxu0 0.0
    %3450 = vmatpush2.msra.mxu0 0.0
    %3451 = vmatprep.subr.mxu0 0.0
    %3452 = vmatpush2.msra.mxu0 0.0
    %3453 = vmatprep.subr.mxu0 0.0
    %3454 = vmatpush2.msra.mxu0 0.0
    %3455 = vmatprep.subr.mxu0 0.0
    %3456 = vmatpush2.msra.mxu0 0.0
    %3457 = vmatprep.subr.mxu0 0.0
    %3458 = vmatpush2.msra.mxu0 0.0
    %3459 = vmatprep.subr.mxu0 0.0
    %3460 = vmatpush2.msra.mxu0 0.0
    %3461 = vmatprep.subr.mxu0 0.0
    %3462 = vmatpush2.msra.mxu0 0.0
    %3463 = vmatprep.subr.mxu0 0.0
    %3464 = vmatpush2.msra.mxu0 0.0
    %3465 = vmatprep.subr.mxu0 0.0
    %3466 = vmatpush2.msra.mxu0 0.0
    %3467 = vmatprep.subr.mxu0 0.0
    %3468 = vmatpush2.msra.mxu0 0.0
    %3469 = vmatprep.subr.mxu0 0.0
    %3470 = vmatpush2.msra.mxu0 0.0
    %3471 = vmatprep.subr.mxu0 0.0
    %3472 = vmatpush2.msra.mxu0 0.0
    %3473 = vmatprep.subr.mxu0 0.0
    %3474 = vmatpush2.msra.mxu0 0.0
    %3475 = vmatprep.subr.mxu0 0.0
    %3476 = vmatpush2.msra.mxu0 0.0
    %3477 = vmatprep.subr.mxu0 0.0
    %3478 = vmatpush2.msra.mxu0 0.0
    %3479 = vmatprep.mubr.f32.mxu0 0.0
    %3480 = vmatmul.mubr.f32.gmra.mxu0 %v3413
    %v3481 = vpop.f32.mrf.mxu0
    %v3482 = vadd.f32 0.0, %v3481
    %v3483 = vpop.f32.mrf.mxu0
    %3484 = vdwg.mxu0
    %3487 = vrot.lane.b32.xlu0 %v3102, 8
    %v3488 = vpop.permute.xlu0 %3487
    %3489 = vrot.lane.b32.xlu0 %v3178, 8
    %v3490 = vpop.permute.xlu0 %3489
    %3495 = vrot.lane.b32.xlu0 %v3254, 16
    %v3496 = vpop.permute.xlu0 %3495
    %3497 = vrot.lane.b32.xlu0 %v3330, 16
    %v3498 = vpop.permute.xlu0 %3497
    %3503 = vrot.lane.b32.xlu0 %v3406, 24
    %v3504 = vpop.permute.xlu0 %3503
    %3505 = vrot.lane.b32.xlu0 %v3482, 24
    %v3506 = vpop.permute.xlu0 %3505
    %v3509 = vsel %vm336, %v2950, %v3488
    %v3510 = vsel %vm336, %v3026, %v3490
    %v3511 = vsel %vm1673, %v3509, %v3496
    %v3512 = vsel %vm1673, %v3510, %v3498
    %v3513 = vsel %vm1676, %v3511, %v3504
    %v3514 = vsel %vm1676, %v3512, %v3506
    %v3516 = vlaneseq
    %v3517 = vshrl.u32 %v3516, 7
    %v3518 = vsub.s32 0, %v3517
    %v3519 = vrot.slane %v2045, %v3518
    %v3522 = vsel %vm238, %v3513, 0
    %v3525 = vsel %vm238, %v3514, 0
    %3527 = vmatprep.subr.mxu0 0.0
    %3528 = vmatpush1.msra.mxu0 0.0
    %3529 = vmatprep.subr.mxu0 0.0
    %3530 = vmatpush1.msra.mxu0 0.0
    %3531 = vmatprep.subr.mxu0 0.0
    %3532 = vmatpush1.msra.mxu0 0.0
    %3533 = vmatprep.subr.mxu0 0.0
    %3534 = vmatpush1.msra.mxu0 0.0
    %3535 = vmatprep.subr.mxu0 0.0
    %3536 = vmatpush1.msra.mxu0 0.0
    %3537 = vmatprep.subr.mxu0 0.0
    %3538 = vmatpush1.msra.mxu0 0.0
    %3539 = vmatprep.subr.mxu0 0.0
    %3540 = vmatpush1.msra.mxu0 0.0
    %3541 = vmatprep.subr.mxu0 0.0
    %3542 = vmatpush1.msra.mxu0 0.0
    %3543 = vmatprep.subr.mxu0 0.0
    %3544 = vmatpush1.msra.mxu0 0.0
    %3545 = vmatprep.subr.mxu0 0.0
    %3546 = vmatpush1.msra.mxu0 0.0
    %3547 = vmatprep.subr.mxu0 0.0
    %3548 = vmatpush1.msra.mxu0 0.0
    %3549 = vmatprep.subr.mxu0 0.0
    %3550 = vmatpush1.msra.mxu0 0.0
    %3551 = vmatprep.subr.mxu0 0.0
    %3552 = vmatpush1.msra.mxu0 %v2043
    %3553 = vmatprep.subr.mxu0 0.0
    %3554 = vmatpush1.msra.mxu0 %v2042
    %3555 = vmatprep.subr.mxu0 0.0
    %3556 = vmatpush1.msra.mxu0 %v2041
    %3557 = vmatprep.subr.mxu0 0.0
    %3558 = vmatpush1.msra.mxu0 %v2040
    %3559 = vmatprep.subr.mxu0 0.0
    %3560 = vmatpush2.msra.mxu0 0.0
    %3561 = vmatprep.subr.mxu0 0.0
    %3562 = vmatpush2.msra.mxu0 0.0
    %3563 = vmatprep.subr.mxu0 0.0
    %3564 = vmatpush2.msra.mxu0 0.0
    %3565 = vmatprep.subr.mxu0 0.0
    %3566 = vmatpush2.msra.mxu0 0.0
    %3567 = vmatprep.subr.mxu0 0.0
    %3568 = vmatpush2.msra.mxu0 0.0
    %3569 = vmatprep.subr.mxu0 0.0
    %3570 = vmatpush2.msra.mxu0 0.0
    %3571 = vmatprep.subr.mxu0 0.0
    %3572 = vmatpush2.msra.mxu0 0.0
    %3573 = vmatprep.subr.mxu0 0.0
    %3574 = vmatpush2.msra.mxu0 0.0
    %3575 = vmatprep.subr.mxu0 0.0
    %3576 = vmatpush2.msra.mxu0 0.0
    %3577 = vmatprep.subr.mxu0 0.0
    %3578 = vmatpush2.msra.mxu0 0.0
    %3579 = vmatprep.subr.mxu0 0.0
    %3580 = vmatpush2.msra.mxu0 0.0
    %3581 = vmatprep.subr.mxu0 0.0
    %3582 = vmatpush2.msra.mxu0 0.0
    %3583 = vmatprep.subr.mxu0 0.0
    %3584 = vmatpush2.msra.mxu0 0.0
    %3585 = vmatprep.subr.mxu0 0.0
    %3586 = vmatpush2.msra.mxu0 0.0
    %3587 = vmatprep.subr.mxu0 0.0
    %3588 = vmatpush2.msra.mxu0 0.0
    %3589 = vmatprep.subr.mxu0 0.0
    %3590 = vmatpush2.msra.mxu0 0.0
    %3591 = vmatprep.mubr.f32.mxu0 0.0
    %3592 = vmatmul.mubr.f32.gmra.mxu0 %v3522
    %v3593 = vpop.f32.mrf.mxu0
    %v3594 = vadd.f32 %v3519, %v3593
    %v3595 = vpop.f32.mrf.mxu0
    %3596 = vmatprep.mubr.f32.mxu0 0.0
    %3597 = vmatmul.mubr.f32.gmra.mxu0 %v3525
    %v3598 = vpop.f32.mrf.mxu0
    %v3599 = vadd.f32 %v3519, %v3598
    %v3600 = vpop.f32.mrf.mxu0
    %3601 = vdwg.mxu0
    %v3602 = vadd.f32 %v2030, %v3594
    %v3603 = vadd.f32 %v2031, %v3599
    %v3604 = vsel %vm238, %v3602, 0.0
    %3605 = vadd.xlane.f32.xlu0 %v3604
    %v3606 = vpop.xlane.xlu0 %3605
    %v3607 = vsel %vm238, %v3603, 0.0
    %3608 = vadd.xlane.f32.xlu0 %v3607
    %v3609 = vpop.xlane.xlu0 %3608
    %v3610 = vmul.f32 %v3606, %v1774
    %v3611 = vmul.f32 %v3609, %v1774
    %v3612 = vsub.f32 %v3602, %v3610
    %v3613 = vsub.f32 %v3603, %v3611
    %v3614 = vmul.f32 %v3612, %v3612
    %v3615 = vmul.f32 %v3613, %v3613
    %v3616 = vsel %vm238, %v3614, 0.0
    %3617 = vadd.xlane.f32.xlu0 %v3616
    %v3618 = vpop.xlane.xlu0 %3617
    %v3619 = vsel %vm238, %v3615, 0.0
    %3620 = vadd.xlane.f32.xlu0 %v3619
    %v3621 = vpop.xlane.xlu0 %3620
    %v3622 = vmul.f32 %v3618, %v1774
    %v3623 = vmul.f32 %v3621, %v1774
    %v3624 = vadd.f32 %v3622, 1e-05
    %v3625 = vadd.f32 %v3623, 1e-05
    %v3626 = vrsqrt.pop %v3624
    %v3627 = vrsqrt.pop %v3625
    %v3628 = vmul.f32 %v3612, %v3626
    %v3629 = vmul.f32 %v3613, %v3627
    %v3631 = vlaneseq
    %v3632 = vshrl.u32 %v3631, 7
    %v3633 = vsub.s32 0, %v3632
    %v3634 = vrot.slane %v2047, %v3633
    %v3636 = vmul.f32 %v3628, %v3634
    %v3637 = vmul.f32 %v3629, %v3634
    %v3639 = vlaneseq
    %v3640 = vshrl.u32 %v3639, 7
    %v3641 = vsub.s32 0, %v3640
    %v3642 = vrot.slane %v2049, %v3641
    %v3644 = vadd.f32 %v3636, %v3642
    %v3645 = vadd.f32 %v3637, %v3642
    %v3647 = vlaneseq
    %v3648 = vshrl.u32 %v3647, 7
    %v3649 = vsub.s32 0, %v3648
    %v3650 = vrot.slane %v2056, %v3649
    %v3653 = vsel %vm238, %v3644, 0
    %v3656 = vsel %vm238, %v3645, 0
    %3658 = vmatprep.subr.mxu0 0.0
    %3659 = vmatpush1.msra.mxu0 0.0
    %3660 = vmatprep.subr.mxu0 0.0
    %3661 = vmatpush1.msra.mxu0 0.0
    %3662 = vmatprep.subr.mxu0 0.0
    %3663 = vmatpush1.msra.mxu0 0.0
    %3664 = vmatprep.subr.mxu0 0.0
    %3665 = vmatpush1.msra.mxu0 0.0
    %3666 = vmatprep.subr.mxu0 0.0
    %3667 = vmatpush1.msra.mxu0 0.0
    %3668 = vmatprep.subr.mxu0 0.0
    %3669 = vmatpush1.msra.mxu0 0.0
    %3670 = vmatprep.subr.mxu0 0.0
    %3671 = vmatpush1.msra.mxu0 0.0
    %3672 = vmatprep.subr.mxu0 0.0
    %3673 = vmatpush1.msra.mxu0 0.0
    %3674 = vmatprep.subr.mxu0 0.0
    %3675 = vmatpush1.msra.mxu0 0.0
    %3676 = vmatprep.subr.mxu0 0.0
    %3677 = vmatpush1.msra.mxu0 0.0
    %3678 = vmatprep.subr.mxu0 0.0
    %3679 = vmatpush1.msra.mxu0 0.0
    %3680 = vmatprep.subr.mxu0 0.0
    %3681 = vmatpush1.msra.mxu0 0.0
    %3682 = vmatprep.subr.mxu0 0.0
    %3683 = vmatpush1.msra.mxu0 %v2054
    %3684 = vmatprep.subr.mxu0 0.0
    %3685 = vmatpush1.msra.mxu0 %v2053
    %3686 = vmatprep.subr.mxu0 0.0
    %3687 = vmatpush1.msra.mxu0 %v2052
    %3688 = vmatprep.subr.mxu0 0.0
    %3689 = vmatpush1.msra.mxu0 %v2051
    %3690 = vmatprep.subr.mxu0 0.0
    %3691 = vmatpush2.msra.mxu0 0.0
    %3692 = vmatprep.subr.mxu0 0.0
    %3693 = vmatpush2.msra.mxu0 0.0
    %3694 = vmatprep.subr.mxu0 0.0
    %3695 = vmatpush2.msra.mxu0 0.0
    %3696 = vmatprep.subr.mxu0 0.0
    %3697 = vmatpush2.msra.mxu0 0.0
    %3698 = vmatprep.subr.mxu0 0.0
    %3699 = vmatpush2.msra.mxu0 0.0
    %3700 = vmatprep.subr.mxu0 0.0
    %3701 = vmatpush2.msra.mxu0 0.0
    %3702 = vmatprep.subr.mxu0 0.0
    %3703 = vmatpush2.msra.mxu0 0.0
    %3704 = vmatprep.subr.mxu0 0.0
    %3705 = vmatpush2.msra.mxu0 0.0
    %3706 = vmatprep.subr.mxu0 0.0
    %3707 = vmatpush2.msra.mxu0 0.0
    %3708 = vmatprep.subr.mxu0 0.0
    %3709 = vmatpush2.msra.mxu0 0.0
    %3710 = vmatprep.subr.mxu0 0.0
    %3711 = vmatpush2.msra.mxu0 0.0
    %3712 = vmatprep.subr.mxu0 0.0
    %3713 = vmatpush2.msra.mxu0 0.0
    %3714 = vmatprep.subr.mxu0 0.0
    %3715 = vmatpush2.msra.mxu0 0.0
    %3716 = vmatprep.subr.mxu0 0.0
    %3717 = vmatpush2.msra.mxu0 0.0
    %3718 = vmatprep.subr.mxu0 0.0
    %3719 = vmatpush2.msra.mxu0 0.0
    %3720 = vmatprep.subr.mxu0 0.0
    %3721 = vmatpush2.msra.mxu0 0.0
    %3722 = vmatprep.mubr.f32.mxu0 0.0
    %3723 = vmatmul.mubr.f32.gmra.mxu0 %v3653
    %v3724 = vpop.f32.mrf.mxu0
    %v3725 = vadd.f32 %v3650, %v3724
    %v3726 = vpop.f32.mrf.mxu0
    %3727 = vmatprep.mubr.f32.mxu0 0.0
    %3728 = vmatmul.mubr.f32.gmra.mxu0 %v3656
    %v3729 = vpop.f32.mrf.mxu0
    %v3730 = vadd.f32 %v3650, %v3729
    %v3731 = vpop.f32.mrf.mxu0
    %3732 = vdwg.mxu0
    %v3733 = vmax.f32 %v3725, 0.0
    %v3734 = vmax.f32 %v3730, 0.0
    %v3736 = vlaneseq
    %v3737 = vshrl.u32 %v3736, 7
    %v3738 = vsub.s32 0, %v3737
    %v3739 = vrot.slane %v2067, %v3738
    %v3742 = vsel %vm1906, %v3733, 0
    %v3745 = vsel %vm1906, %v3734, 0
    %3747 = vmatprep.subr.mxu0 0.0
    %3748 = vmatpush1.msra.mxu0 0.0
    %3749 = vmatprep.subr.mxu0 0.0
    %3750 = vmatpush1.msra.mxu0 0.0
    %3751 = vmatprep.subr.mxu0 0.0
    %3752 = vmatpush1.msra.mxu0 0.0
    %3753 = vmatprep.subr.mxu0 0.0
    %3754 = vmatpush1.msra.mxu0 0.0
    %3755 = vmatprep.subr.mxu0 0.0
    %3756 = vmatpush1.msra.mxu0 0.0
    %3757 = vmatprep.subr.mxu0 0.0
    %3758 = vmatpush1.msra.mxu0 0.0
    %3759 = vmatprep.subr.mxu0 0.0
    %3760 = vmatpush1.msra.mxu0 0.0
    %3761 = vmatprep.subr.mxu0 0.0
    %3762 = vmatpush1.msra.mxu0 0.0
    %3763 = vmatprep.subr.mxu0 0.0
    %3764 = vmatpush1.msra.mxu0 %v2065
    %3765 = vmatprep.subr.mxu0 0.0
    %3766 = vmatpush1.msra.mxu0 %v2064
    %3767 = vmatprep.subr.mxu0 0.0
    %3768 = vmatpush1.msra.mxu0 %v2063
    %3769 = vmatprep.subr.mxu0 0.0
    %3770 = vmatpush1.msra.mxu0 %v2062
    %3771 = vmatprep.subr.mxu0 0.0
    %3772 = vmatpush1.msra.mxu0 %v2061
    %3773 = vmatprep.subr.mxu0 0.0
    %3774 = vmatpush1.msra.mxu0 %v2060
    %3775 = vmatprep.subr.mxu0 0.0
    %3776 = vmatpush1.msra.mxu0 %v2059
    %3777 = vmatprep.subr.mxu0 0.0
    %3778 = vmatpush1.msra.mxu0 %v2058
    %3779 = vmatprep.subr.mxu0 0.0
    %3780 = vmatpush2.msra.mxu0 0.0
    %3781 = vmatprep.subr.mxu0 0.0
    %3782 = vmatpush2.msra.mxu0 0.0
    %3783 = vmatprep.subr.mxu0 0.0
    %3784 = vmatpush2.msra.mxu0 0.0
    %3785 = vmatprep.subr.mxu0 0.0
    %3786 = vmatpush2.msra.mxu0 0.0
    %3787 = vmatprep.subr.mxu0 0.0
    %3788 = vmatpush2.msra.mxu0 0.0
    %3789 = vmatprep.subr.mxu0 0.0
    %3790 = vmatpush2.msra.mxu0 0.0
    %3791 = vmatprep.subr.mxu0 0.0
    %3792 = vmatpush2.msra.mxu0 0.0
    %3793 = vmatprep.subr.mxu0 0.0
    %3794 = vmatpush2.msra.mxu0 0.0
    %3795 = vmatprep.subr.mxu0 0.0
    %3796 = vmatpush2.msra.mxu0 0.0
    %3797 = vmatprep.subr.mxu0 0.0
    %3798 = vmatpush2.msra.mxu0 0.0
    %3799 = vmatprep.subr.mxu0 0.0
    %3800 = vmatpush2.msra.mxu0 0.0
    %3801 = vmatprep.subr.mxu0 0.0
    %3802 = vmatpush2.msra.mxu0 0.0
    %3803 = vmatprep.subr.mxu0 0.0
    %3804 = vmatpush2.msra.mxu0 0.0
    %3805 = vmatprep.subr.mxu0 0.0
    %3806 = vmatpush2.msra.mxu0 0.0
    %3807 = vmatprep.subr.mxu0 0.0
    %3808 = vmatpush2.msra.mxu0 0.0
    %3809 = vmatprep.subr.mxu0 0.0
    %3810 = vmatpush2.msra.mxu0 0.0
    %3811 = vmatprep.mubr.f32.mxu0 0.0
    %3812 = vmatmul.mubr.f32.gmra.mxu0 %v3742
    %v3813 = vpop.f32.mrf.mxu0
    %v3814 = vadd.f32 %v3739, %v3813
    %v3815 = vpop.f32.mrf.mxu0
    %3816 = vmatprep.mubr.f32.mxu0 0.0
    %3817 = vmatmul.mubr.f32.gmra.mxu0 %v3745
    %v3818 = vpop.f32.mrf.mxu0
    %v3819 = vadd.f32 %v3739, %v3818
    %v3820 = vpop.f32.mrf.mxu0
    %3821 = vdwg.mxu0
    %v3822 = vadd.f32 %v3644, %v3814
    %v3823 = vadd.f32 %v3645, %v3819
    %v3824 = vsel %vm238, %v3822, 0.0
    %3825 = vadd.xlane.f32.xlu0 %v3824
    %v3826 = vpop.xlane.xlu0 %3825
    %v3827 = vsel %vm238, %v3823, 0.0
    %3828 = vadd.xlane.f32.xlu0 %v3827
    %v3829 = vpop.xlane.xlu0 %3828
    %v3830 = vmul.f32 %v3826, %v1774
    %v3831 = vmul.f32 %v3829, %v1774
    %v3832 = vsub.f32 %v3822, %v3830
    %v3833 = vsub.f32 %v3823, %v3831
    %v3834 = vmul.f32 %v3832, %v3832
    %v3835 = vmul.f32 %v3833, %v3833
    %v3836 = vsel %vm238, %v3834, 0.0
    %3837 = vadd.xlane.f32.xlu0 %v3836
    %v3838 = vpop.xlane.xlu0 %3837
    %v3839 = vsel %vm238, %v3835, 0.0
    %3840 = vadd.xlane.f32.xlu0 %v3839
    %v3841 = vpop.xlane.xlu0 %3840
    %v3842 = vmul.f32 %v3838, %v1774
    %v3843 = vmul.f32 %v3841, %v1774
    %v3844 = vadd.f32 %v3842, 1e-05
    %v3845 = vadd.f32 %v3843, 1e-05
    %v3846 = vrsqrt.pop %v3844
    %v3847 = vrsqrt.pop %v3845
    %v3848 = vmul.f32 %v3832, %v3846
    %v3849 = vmul.f32 %v3833, %v3847
    %v3851 = vlaneseq
    %v3852 = vshrl.u32 %v3851, 7
    %v3853 = vsub.s32 0, %v3852
    %v3854 = vrot.slane %v2069, %v3853
    %v3856 = vmul.f32 %v3848, %v3854
    %v3857 = vmul.f32 %v3849, %v3854
    %v3859 = vlaneseq
    %v3860 = vshrl.u32 %v3859, 7
    %v3861 = vsub.s32 0, %v3860
    %v3862 = vrot.slane %v2071, %v3861
    %v3864 = vadd.f32 %v3856, %v3862
    %v3865 = vadd.f32 %v3857, %v3862
    %v3866 = vld [vmem:[%s15] sm:$0xff]
    %v3867 = vld [vmem:[%s15 + $0x8] sm:$0xff]
    %v3868 = vld [vmem:[%s15 + $0x10] sm:$0xff]
    %v3869 = vld [vmem:[%s15 + $0x18] sm:$0xff]
    %v3870 = vld [vmem:[%s16] sm:$0x1]
    %v3872 = vlaneseq
    %v3873 = vshrl.u32 %v3872, 7
    %v3874 = vsub.s32 0, %v3873
    %v3875 = vrot.slane %v3870, %v3874
    %v3879 = vrot.slane %v3864, 7
    %v3880 = vrot.slane %v3865, 6
    %vm3881 = vcmask 1041409
    %v3882 = vsel %vm3881, %v3880, %v3879
    %v3883 = vsel %vm238, %v3882, 0
    %3885 = vmatprep.subr.mxu0 0.0
    %3886 = vmatpush1.msra.mxu0 0.0
    %3887 = vmatprep.subr.mxu0 0.0
    %3888 = vmatpush1.msra.mxu0 0.0
    %3889 = vmatprep.subr.mxu0 0.0
    %3890 = vmatpush1.msra.mxu0 0.0
    %3891 = vmatprep.subr.mxu0 0.0
    %3892 = vmatpush1.msra.mxu0 0.0
    %3893 = vmatprep.subr.mxu0 0.0
    %3894 = vmatpush1.msra.mxu0 0.0
    %3895 = vmatprep.subr.mxu0 0.0
    %3896 = vmatpush1.msra.mxu0 0.0
    %3897 = vmatprep.subr.mxu0 0.0
    %3898 = vmatpush1.msra.mxu0 0.0
    %3899 = vmatprep.subr.mxu0 0.0
    %3900 = vmatpush1.msra.mxu0 0.0
    %3901 = vmatprep.subr.mxu0 0.0
    %3902 = vmatpush1.msra.mxu0 0.0
    %3903 = vmatprep.subr.mxu0 0.0
    %3904 = vmatpush1.msra.mxu0 0.0
    %3905 = vmatprep.subr.mxu0 0.0
    %3906 = vmatpush1.msra.mxu0 0.0
    %3907 = vmatprep.subr.mxu0 0.0
    %3908 = vmatpush1.msra.mxu0 0.0
    %3909 = vmatprep.subr.mxu0 0.0
    %3910 = vmatpush1.msra.mxu0 %v3869
    %3911 = vmatprep.subr.mxu0 0.0
    %3912 = vmatpush1.msra.mxu0 %v3868
    %3913 = vmatprep.subr.mxu0 0.0
    %3914 = vmatpush1.msra.mxu0 %v3867
    %3915 = vmatprep.subr.mxu0 0.0
    %3916 = vmatpush1.msra.mxu0 %v3866
    %3917 = vmatprep.subr.mxu0 0.0
    %3918 = vmatpush2.msra.mxu0 0.0
    %3919 = vmatprep.subr.mxu0 0.0
    %3920 = vmatpush2.msra.mxu0 0.0
    %3921 = vmatprep.subr.mxu0 0.0
    %3922 = vmatpush2.msra.mxu0 0.0
    %3923 = vmatprep.subr.mxu0 0.0
    %3924 = vmatpush2.msra.mxu0 0.0
    %3925 = vmatprep.subr.mxu0 0.0
    %3926 = vmatpush2.msra.mxu0 0.0
    %3927 = vmatprep.subr.mxu0 0.0
    %3928 = vmatpush2.msra.mxu0 0.0
    %3929 = vmatprep.subr.mxu0 0.0
    %3930 = vmatpush2.msra.mxu0 0.0
    %3931 = vmatprep.subr.mxu0 0.0
    %3932 = vmatpush2.msra.mxu0 0.0
    %3933 = vmatprep.subr.mxu0 0.0
    %3934 = vmatpush2.msra.mxu0 0.0
    %3935 = vmatprep.subr.mxu0 0.0
    %3936 = vmatpush2.msra.mxu0 0.0
    %3937 = vmatprep.subr.mxu0 0.0
    %3938 = vmatpush2.msra.mxu0 0.0
    %3939 = vmatprep.subr.mxu0 0.0
    %3940 = vmatpush2.msra.mxu0 0.0
    %3941 = vmatprep.subr.mxu0 0.0
    %3942 = vmatpush2.msra.mxu0 0.0
    %3943 = vmatprep.subr.mxu0 0.0
    %3944 = vmatpush2.msra.mxu0 0.0
    %3945 = vmatprep.subr.mxu0 0.0
    %3946 = vmatpush2.msra.mxu0 0.0
    %3947 = vmatprep.subr.mxu0 0.0
    %3948 = vmatpush2.msra.mxu0 0.0
    %3949 = vmatprep.mubr.f32.mxu0 0.0
    %3950 = vmatmul.mubr.f32.gmra.mxu0 %v3883
    %v3951 = vpop.f32.mrf.mxu0
    %v3952 = vadd.f32 %v3875, %v3951
    %v3953 = vpop.f32.mrf.mxu0
    %3954 = vdwg.mxu0
    %3955 = vst [vmem:[#allocation10] sm:$0x3] %v3952
    // Predicated region
    $region86: #{tpu_custom_call.1} parent=1 // pred_check
      _
    $region87: #{tpu_custom_call.1} parent=1 // pred_check_branch
      %3957 = sbr.rel (0) target = $region89
    $region88: #{tpu_custom_call.1} parent=1 // pred_region
      %s3959 = ssub.s32 32, 32
      %3960 = vsyncadd [#allocation4], %s3959
      %s3962 = sshll.u32 [#allocation10], 4
      %s3963 = int_to_ptr.vmem [resolvable:$true] %s3962
      %3965 = dma.vmem_to_hbm [thread:$0]  %s3963, 32, %s17, [#allocation4]
    $region89: #{tpu_custom_call.1} parent=1 // pred_fallthru
      _
    // Predicated region
    $region90: #{tpu_custom_call.1} parent=1 // pred_check
      _
    $region91: #{tpu_custom_call.1} parent=1 // pred_check_branch
      %3967 = sbr.rel (0) target = $region93
    $region92: #{tpu_custom_call.1} parent=1 // pred_region
      %3968 = dma.done [#allocation4], 32
    $region93: #{tpu_custom_call.1} parent=1 // pred_fallthru
      _
    %3969 = vsyncpa [#allocation3], 1
    %3970 = vsyncpa [#allocation6], 1
    %3971 = vsyncpa [#allocation9], 1
    %3972 = vsyncpa [#allocation4], 1

</llo_original>
